<compile_context>
chip_gen: v7x
topology: tpu7x:2x2x1
jax: 0.10.0
libtpu: 0.0.40
codegen_flags: <defaults>
</compile_context>

<pallas_src>
import functools
import math

import jax
import jax.numpy as jnp
from jax.experimental import pallas as pl
from jax.experimental.pallas import tpu as pltpu

IN_DIM = 28 * 28        # 784
HIDDEN = 512
OUT_DIM = 10
OUT_PAD = 128           # lane-dense padded output width (multiple of 128)
DROP_P = 0.2
TM_MAX = 256            # batch tile: multiple of 256 (v6e MXU), 128-aligned (v5e),
                        # and small enough to leave headroom in v7x's 64 MiB VMEM


def mlp_kernel(x_ref, mask_ref, w1_ref, b1_ref, w2_ref, b2_ref, o_ref):
    # ---- first linear (bf16 MXU inputs, f32 accumulate) + bias + ReLU ----
    h = jnp.dot(x_ref[...], w1_ref[...], preferred_element_type=jnp.float32)
    h = jnp.maximum(h + b1_ref[...], 0.0)                  # (TM, 512) f32

    # ---- dropout: mask_ref already holds 0.0 or 1/(1-p) ----
    # TODO(synk): the TPU hardware PRNG (pltpu.prng_seed/prng_random_bits) would
    # avoid streaming this mask from HBM, but it is not available on the interpret
    # path; the mask stream is also not bit-identical to torch.manual_seed(0) dropout.
    h = h * mask_ref[...]

    # ---- second linear (padded to 128 output lanes) + sigmoid ----
    y = jnp.dot(h.astype(w2_ref.dtype), w2_ref[...],
                preferred_element_type=jnp.float32)
    o_ref[...] = jax.nn.sigmoid(y + b2_ref[...])           # (TM, 128) f32


def _round_up(x, m):
    return (x + m - 1) // m * m


@functools.partial(jax.jit, static_argnames=("tm",))
def _forward_padded(x_pad, mask_pad, w1, b1, w2p, b2p, tm):
    bp = x_pad.shape[0]
    grid = (bp // tm,)

    # bf16 MXU inputs, f32 biases / mask / accumulation.
    x_bf = x_pad.astype(jnp.bfloat16)
    w1_bf = w1.astype(jnp.bfloat16)
    w2_bf = w2p.astype(jnp.bfloat16)

    return pl.pallas_call(
        mlp_kernel,
        out_shape=jax.ShapeDtypeStruct((bp, OUT_PAD), jnp.float32),
        grid=grid,
        in_specs=[
            pl.BlockSpec((tm, IN_DIM), lambda i: (i, 0)),      # x tile
            pl.BlockSpec((tm, HIDDEN), lambda i: (i, 0)),      # dropout multiplier tile
            pl.BlockSpec((IN_DIM, HIDDEN), lambda i: (0, 0)),  # w1 (VMEM-resident)
            pl.BlockSpec((1, HIDDEN), lambda i: (0, 0)),       # b1
            pl.BlockSpec((HIDDEN, OUT_PAD), lambda i: (0, 0)), # w2 (padded)
            pl.BlockSpec((1, OUT_PAD), lambda i: (0, 0)),      # b2 (padded)
        ],
        out_specs=pl.BlockSpec((tm, OUT_PAD), lambda i: (i, 0)),
        compiler_params=pltpu.CompilerParams(
            dimension_semantics=("parallel",),
        ),
    )(x_bf, mask_pad, w1_bf, b1, w2_bf, b2p)


def solution_forward(images, w1, b1, w2, b2, dropout_key, training=True):
    """Forward pass matching the torch module (train-mode dropout)."""
    B = images.shape[0]
    tm = min(TM_MAX, _round_up(B, 8))
    bp = _round_up(B, tm)
    if bp != B:
        images = jnp.pad(images, ((0, bp - B), (0, 0)))

    if training:
        keep = jax.random.bernoulli(dropout_key, 1.0 - DROP_P, (bp, HIDDEN))
        mask = keep.astype(jnp.float32) * (1.0 / (1.0 - DROP_P))
    else:
        mask = jnp.ones((bp, HIDDEN), jnp.float32)

    # Pad output dimension to 128 lanes (zero weights/bias); padded sigmoid columns
    # become 0.5 and are sliced away below.
    w2p = jnp.pad(w2, ((0, 0), (0, OUT_PAD - OUT_DIM)))
    b2p = jnp.pad(b2, ((0, 0), (0, OUT_PAD - OUT_DIM)))

    out = _forward_padded(images, mask, w1, b1, w2p, b2p, tm)
    return out[:B, :OUT_DIM]


def init_params(key):
    """Deterministic init mimicking torch.nn.Linear default (uniform +-1/sqrt(fan_in))."""
    k1, k2, k3, k4 = jax.random.split(key, 4)
    bound1 = 1.0 / math.sqrt(IN_DIM)
    bound2 = 1.0 / math.sqrt(HIDDEN)
    w1 = jax.random.uniform(k1, (IN_DIM, HIDDEN), jnp.float32, -bound1, bound1)
    b1 = jax.random.uniform(k2, (1, HIDDEN), jnp.float32, -bound1, bound1)
    w2 = jax.random.uniform(k3, (HIDDEN, OUT_DIM), jnp.float32, -bound2, bound2)
    b2 = jax.random.uniform(k4, (1, OUT_DIM), jnp.float32, -bound2, bound2)
    return w1, b1, w2, b2


if __name__ == "__main__":
    key = jax.random.PRNGKey(0)
    pkey, xkey, dkey = jax.random.split(key, 3)
    w1, b1, w2, b2 = init_params(pkey)

    B = 512  # two 256-row tiles -> grid=(2,), exercises pipelining; still tiny
    images = jax.random.normal(xkey, (B, IN_DIM), jnp.float32)

    out = solution_forward(images, w1, b1, w2, b2, dkey)
    out = jax.block_until_ready(out)

    assert out.shape == (B, OUT_DIM)
    assert bool(jnp.all(jnp.isfinite(out)))
    assert bool(jnp.all((out >= 0.0) & (out <= 1.0)))  # sigmoid range
    print("KERNEL_OK")
</pallas_src>

<mosaic_0001>
module attributes {stable_mosaic.version = 11 : i64} {
  func.func @mlp_kernel(%arg0: i32, %arg1: memref<256x784xbf16, #tpu.memory_space<vmem>>, %arg2: memref<256x512xf32, #tpu.memory_space<vmem>>, %arg3: memref<784x512xbf16, #tpu.memory_space<vmem>>, %arg4: memref<1x512xf32, #tpu.memory_space<vmem>>, %arg5: memref<512x128xbf16, #tpu.memory_space<vmem>>, %arg6: memref<1x128xf32, #tpu.memory_space<vmem>>, %arg7: memref<256x128xf32, #tpu.memory_space<vmem>>) attributes {dimension_semantics = [#tpu.dimension_semantics<parallel>], iteration_bounds = array<i64: 2>, scalar_prefetch = 0 : i64, scratch_operands = 0 : i64, tpu.core_type = #tpu.core_type<tc>, window_params = [{transform_indices = @transform_0, window_bounds = array<i64: 256, 784>}, {transform_indices = @transform_1, window_bounds = array<i64: 256, 512>}, {pipeline_mode = #tpu.pipeline_mode<synchronous>, transform_indices = @transform_2, window_bounds = array<i64: 784, 512>}, {pipeline_mode = #tpu.pipeline_mode<synchronous>, transform_indices = @transform_3, window_bounds = array<i64: 1, 512>}, {pipeline_mode = #tpu.pipeline_mode<synchronous>, transform_indices = @transform_4, window_bounds = array<i64: 512, 128>}, {pipeline_mode = #tpu.pipeline_mode<synchronous>, transform_indices = @transform_5, window_bounds = array<i64: 1, 128>}, {transform_indices = @transform_6, window_bounds = array<i64: 256, 128>}]} {
    %c0 = arith.constant 0 : index
    %c0_0 = arith.constant 0 : index
    %0 = vector.load %arg1[%c0, %c0_0] : memref<256x784xbf16, #tpu.memory_space<vmem>>, vector<256x784xbf16>
    %c0_1 = arith.constant 0 : index
    %c0_2 = arith.constant 0 : index
    %1 = vector.load %arg3[%c0_1, %c0_2] : memref<784x512xbf16, #tpu.memory_space<vmem>>, vector<784x512xbf16>
    %cst = arith.constant dense<0.000000e+00> : vector<256x512xf32>
    %2 = tpu.matmul %0, %1, %cst {dimension_numbers = #tpu.dot_dimension_numbers<[1], [0], [0], [1], [0, 0, 1, 1], [], []>} : vector<256x784xbf16>, vector<784x512xbf16>, vector<256x512xf32> -> vector<256x512xf32>
    %c0_3 = arith.constant 0 : index
    %c0_4 = arith.constant 0 : index
    %3 = vector.load %arg4[%c0_3, %c0_4] : memref<1x512xf32, #tpu.memory_space<vmem>>, vector<1x512xf32>
    %4 = vector.broadcast %3 : vector<1x512xf32> to vector<256x512xf32>
    %5 = arith.addf %2, %4 : vector<256x512xf32>
    %cst_5 = arith.constant 0.000000e+00 : f32
    %6 = vector.broadcast %cst_5 : f32 to vector<256x512xf32>
    %7 = arith.maximumf %5, %6 : vector<256x512xf32>
    %c0_6 = arith.constant 0 : index
    %c0_7 = arith.constant 0 : index
    %8 = vector.load %arg2[%c0_6, %c0_7] : memref<256x512xf32, #tpu.memory_space<vmem>>, vector<256x512xf32>
    %9 = arith.mulf %7, %8 : vector<256x512xf32>
    %10 = arith.truncf %9 : vector<256x512xf32> to vector<256x512xbf16>
    %c0_8 = arith.constant 0 : index
    %c0_9 = arith.constant 0 : index
    %11 = vector.load %arg5[%c0_8, %c0_9] : memref<512x128xbf16, #tpu.memory_space<vmem>>, vector<512x128xbf16>
    %cst_10 = arith.constant dense<0.000000e+00> : vector<256x128xf32>
    %12 = tpu.matmul %10, %11, %cst_10 {dimension_numbers = #tpu.dot_dimension_numbers<[1], [0], [0], [1], [0, 0, 1, 1], [], []>} : vector<256x512xbf16>, vector<512x128xbf16>, vector<256x128xf32> -> vector<256x128xf32>
    %c0_11 = arith.constant 0 : index
    %c0_12 = arith.constant 0 : index
    %13 = vector.load %arg6[%c0_11, %c0_12] : memref<1x128xf32, #tpu.memory_space<vmem>>, vector<1x128xf32>
    %14 = vector.broadcast %13 : vector<1x128xf32> to vector<256x128xf32>
    %15 = arith.addf %12, %14 : vector<256x128xf32>
    %16 = arith.negf %15 : vector<256x128xf32>
    %17 = math.exp %16 : vector<256x128xf32>
    %cst_13 = arith.constant 1.000000e+00 : f32
    %18 = vector.broadcast %cst_13 : f32 to vector<256x128xf32>
    %19 = arith.addf %18, %17 : vector<256x128xf32>
    %20 = arith.divf %18, %19 : vector<256x128xf32>
    %c0_14 = arith.constant 0 : index
    %c0_15 = arith.constant 0 : index
    %21 = vector.load %arg7[%c0_14, %c0_15] : memref<256x128xf32, #tpu.memory_space<vmem>>, vector<256x128xf32>
    tpu.vector_store %arg7[%c0_14, %c0_15], %20 {strides = array<i32>} : memref<256x128xf32, #tpu.memory_space<vmem>>, vector<256x128xf32>,
    return
  }
  func.func @transform_0(%arg0: i32) -> (i32, i32) {
    %c0_i32 = arith.constant 0 : i32
    %c0_i32_0 = arith.constant 0 : i32
    return %arg0, %c0_i32 : i32, i32
  }
  func.func @transform_1(%arg0: i32) -> (i32, i32) {
    %c0_i32 = arith.constant 0 : i32
    %c0_i32_0 = arith.constant 0 : i32
    return %arg0, %c0_i32 : i32, i32
  }
  func.func @transform_2(%arg0: i32) -> (i32, i32) {
    %c0_i32 = arith.constant 0 : i32
    %c0_i32_0 = arith.constant 0 : i32
    %c0_i32_1 = arith.constant 0 : i32
    return %c0_i32, %c0_i32_0 : i32, i32
  }
  func.func @transform_3(%arg0: i32) -> (i32, i32) {
    %c0_i32 = arith.constant 0 : i32
    %c0_i32_0 = arith.constant 0 : i32
    %c0_i32_1 = arith.constant 0 : i32
    return %c0_i32, %c0_i32_0 : i32, i32
  }
  func.func @transform_4(%arg0: i32) -> (i32, i32) {
    %c0_i32 = arith.constant 0 : i32
    %c0_i32_0 = arith.constant 0 : i32
    %c0_i32_1 = arith.constant 0 : i32
    return %c0_i32, %c0_i32_0 : i32, i32
  }
  func.func @transform_5(%arg0: i32) -> (i32, i32) {
    %c0_i32 = arith.constant 0 : i32
    %c0_i32_0 = arith.constant 0 : i32
    %c0_i32_1 = arith.constant 0 : i32
    return %c0_i32, %c0_i32_0 : i32, i32
  }
  func.func @transform_6(%arg0: i32) -> (i32, i32) {
    %c0_i32 = arith.constant 0 : i32
    %c0_i32_0 = arith.constant 0 : i32
    return %arg0, %c0_i32 : i32, i32
  }
}

</mosaic_0001>

<llo_original>
// kernel: _forward_padded.1
$region0: #{_forward_padded.1}
  #allocation0 [shape = 'u32[]', space=smem, size = 0x4, offset = 0x4, fixed_abs, tag = 'smem constant byte address 0x4 - core index']
  #allocation1 [shape = 'u32[144,128]{1,0:T(1,128)}', space=vmem, size = 0x12000, scoped, tag = 'internal scratch']
  %s0 = inlined_call_operand.vmem [shape: bf16[512,784], index: 0, kind: input, shape index: {}]
  %s1 = inlined_call_operand.vmem [shape: f32[512,512], index: 1, kind: input, shape index: {}]
  %s2 = inlined_call_operand.vmem [shape: bf16[784,512], index: 2, kind: input, shape index: {}]
  %s3 = inlined_call_operand.vmem [shape: f32[1,512], index: 3, kind: input, shape index: {}]
  %s4 = inlined_call_operand.vmem [shape: bf16[512,128], index: 4, kind: input, shape index: {}]
  %s5 = inlined_call_operand.vmem [shape: f32[1,128], index: 5, kind: input, shape index: {}]
  %s6 = inlined_call_operand.hbm [shape: f32[512,128], index: 6, kind: output, shape index: {}]
  %s7 = sld [smem:[#allocation0]]
  $region57: #{_forward_padded.1} parent=0
    _
  %s9 = ssub.s32 1, %s7
  %s10 = scalar_select 0, %s9, %s7
  $region1: #{_forward_padded.1} parent=0
    #allocation2 [shape = 'u8[262144]{0}', space=vmem, size = 0x40000, scoped, tag = 'output window, operand 0']
    #allocation3 [shape = 's32[2]{0}', space=sflag, size = 0x8, scoped, tag = 'scoped memory for _forward_padded.1']
    %11 = vsyncpa [#allocation3], 0
    %s12 = scalar_lea.sflag [#allocation3], 1
    %13 = vsyncpa %s12, 0
    loop: start=0, step=1, limit=4
    $region2: #{_forward_padded.1} parent=1 // loop_pre_header
      _
    $region3: #{_forward_padded.1} parent=1 // loop_header
      %s15 = sphi 0, %s19
      %p16 = scmp.ge.s32.totalorder %s15, 4
      %s25 = sphi 0, %s27
      %s28 = sphi 0, %s25
      %s29 = sphi 0, %s28
      %s45 = sphi 0, %s29
      %s51 = sphi 0, %s53
      %s54 = sphi 0, %s51
      %s55 = sphi 0, %s54
      %s71 = sphi 0, %s55
      %s75 = sphi 0, %s75
      %s77 = sphi 0, %s75
      %s78 = sphi 0, %s77
      %s92 = sphi 0, %s78
      %s96 = sphi 0, %s96
      %s98 = sphi 0, %s96
      %s99 = sphi 0, %s98
      %s113 = sphi 0, %s99
      %s117 = sphi 0, %s117
      %s119 = sphi 0, %s117
      %s120 = sphi 0, %s119
      %s134 = sphi 0, %s120
      %s138 = sphi 0, %s138
      %s140 = sphi 0, %s138
      %s141 = sphi 0, %s140
      %s155 = sphi 0, %s141
      %s161 = sphi 0, %s163
      %s164 = sphi 0, %s161
      %s165 = sphi 0, %s164
      %s181 = sphi 0, %s165
    $region4: #{_forward_padded.1} parent=1 // loop_header_branch
      %18 = sbr.rel (%p16) target = $region8
    $region5: #{_forward_padded.1} parent=1 // loop_body
      %s20 = ssub.s32 %s15, 1
      %s21 = ssub.s32 %s15, 2
      %s22 = sadd.s32 %s15, 1
      %s23 = ssub.s32 %s15, %s22
      %p24 = scmp.eq.s32.totalorder %s23, 0
      %s26 = sadd.s32 %s25, 1
      %s27 = scalar_select %p24, %s25, %s26
      %p30 = pneg %p24
      %p31 = scmp.eq.s32.totalorder %s15, 1
      %p32 = por %p30, %p31
      %p33 = scmp.ne.s32.totalorder %s25, %s28
      %p34 = scmp.eq.s32.totalorder %s15, 0
      %p35 = por %p33, %p34
      %p36 = scmp.ne.s32.totalorder %s25, %s28
      %p37 = scmp.eq.s32.totalorder %s20, 1
      %p38 = por %p36, %p37
      %p39 = scmp.ne.s32.totalorder %s28, %s29
      %p40 = scmp.eq.s32.totalorder %s20, 0
      %p41 = por %p39, %p40
      %p42 = scmp.ne.s32.totalorder %s28, %s29
      %p43 = scmp.eq.s32.totalorder %s21, 1
      %p44 = por %p42, %p43
      %p46 = scmp.ne.s32.totalorder %s29, %s45
      %p47 = scmp.eq.s32.totalorder %s21, 0
      %p48 = por %p46, %p47
      %s49 = ssub.s32 %s15, %s22
      %p50 = scmp.eq.s32.totalorder %s49, 0
      %s52 = sadd.s32 %s51, 1
      %s53 = scalar_select %p50, %s51, %s52
      %p56 = pneg %p50
      %p57 = scmp.eq.s32.totalorder %s15, 1
      %p58 = por %p56, %p57
      %p59 = scmp.ne.s32.totalorder %s51, %s54
      %p60 = scmp.eq.s32.totalorder %s15, 0
      %p61 = por %p59, %p60
      %p62 = scmp.ne.s32.totalorder %s51, %s54
      %p63 = scmp.eq.s32.totalorder %s20, 1
      %p64 = por %p62, %p63
      %p65 = scmp.ne.s32.totalorder %s54, %s55
      %p66 = scmp.eq.s32.totalorder %s20, 0
      %p67 = por %p65, %p66
      %p68 = scmp.ne.s32.totalorder %s54, %s55
      %p69 = scmp.eq.s32.totalorder %s21, 1
      %p70 = por %p68, %p69
      %p72 = scmp.ne.s32.totalorder %s55, %s71
      %p73 = scmp.eq.s32.totalorder %s21, 0
      %p74 = por %p72, %p73
      %s76 = sadd.s32 %s75, 1
      %p79 = scmp.eq.s32.totalorder %s15, 1
      %p80 = scmp.ne.s32.totalorder %s75, %s77
      %p81 = scmp.eq.s32.totalorder %s15, 0
      %p82 = por %p80, %p81
      %p83 = scmp.ne.s32.totalorder %s75, %s77
      %p84 = scmp.eq.s32.totalorder %s20, 1
      %p85 = por %p83, %p84
      %p86 = scmp.ne.s32.totalorder %s77, %s78
      %p87 = scmp.eq.s32.totalorder %s20, 0
      %p88 = por %p86, %p87
      %p89 = scmp.ne.s32.totalorder %s77, %s78
      %p90 = scmp.eq.s32.totalorder %s21, 1
      %p91 = por %p89, %p90
      %p93 = scmp.ne.s32.totalorder %s78, %s92
      %p94 = scmp.eq.s32.totalorder %s21, 0
      %p95 = por %p93, %p94
      %s97 = sadd.s32 %s96, 1
      %p100 = scmp.eq.s32.totalorder %s15, 1
      %p101 = scmp.ne.s32.totalorder %s96, %s98
      %p102 = scmp.eq.s32.totalorder %s15, 0
      %p103 = por %p101, %p102
      %p104 = scmp.ne.s32.totalorder %s96, %s98
      %p105 = scmp.eq.s32.totalorder %s20, 1
      %p106 = por %p104, %p105
      %p107 = scmp.ne.s32.totalorder %s98, %s99
      %p108 = scmp.eq.s32.totalorder %s20, 0
      %p109 = por %p107, %p108
      %p110 = scmp.ne.s32.totalorder %s98, %s99
      %p111 = scmp.eq.s32.totalorder %s21, 1
      %p112 = por %p110, %p111
      %p114 = scmp.ne.s32.totalorder %s99, %s113
      %p115 = scmp.eq.s32.totalorder %s21, 0
      %p116 = por %p114, %p115
      %s118 = sadd.s32 %s117, 1
      %p121 = scmp.eq.s32.totalorder %s15, 1
      %p122 = scmp.ne.s32.totalorder %s117, %s119
      %p123 = scmp.eq.s32.totalorder %s15, 0
      %p124 = por %p122, %p123
      %p125 = scmp.ne.s32.totalorder %s117, %s119
      %p126 = scmp.eq.s32.totalorder %s20, 1
      %p127 = por %p125, %p126
      %p128 = scmp.ne.s32.totalorder %s119, %s120
      %p129 = scmp.eq.s32.totalorder %s20, 0
      %p130 = por %p128, %p129
      %p131 = scmp.ne.s32.totalorder %s119, %s120
      %p132 = scmp.eq.s32.totalorder %s21, 1
      %p133 = por %p131, %p132
      %p135 = scmp.ne.s32.totalorder %s120, %s134
      %p136 = scmp.eq.s32.totalorder %s21, 0
      %p137 = por %p135, %p136
      %s139 = sadd.s32 %s138, 1
      %p142 = scmp.eq.s32.totalorder %s15, 1
      %p143 = scmp.ne.s32.totalorder %s138, %s140
      %p144 = scmp.eq.s32.totalorder %s15, 0
      %p145 = por %p143, %p144
      %p146 = scmp.ne.s32.totalorder %s138, %s140
      %p147 = scmp.eq.s32.totalorder %s20, 1
      %p148 = por %p146, %p147
      %p149 = scmp.ne.s32.totalorder %s140, %s141
      %p150 = scmp.eq.s32.totalorder %s20, 0
      %p151 = por %p149, %p150
      %p152 = scmp.ne.s32.totalorder %s140, %s141
      %p153 = scmp.eq.s32.totalorder %s21, 1
      %p154 = por %p152, %p153
      %p156 = scmp.ne.s32.totalorder %s141, %s155
      %p157 = scmp.eq.s32.totalorder %s21, 0
      %p158 = por %p156, %p157
      %s159 = ssub.s32 %s15, %s22
      %p160 = scmp.eq.s32.totalorder %s159, 0
      %s162 = sadd.s32 %s161, 1
      %s163 = scalar_select %p160, %s161, %s162
      %p166 = pneg %p160
      %p167 = scmp.eq.s32.totalorder %s15, 1
      %p168 = por %p166, %p167
      %p169 = scmp.ne.s32.totalorder %s161, %s164
      %p170 = scmp.eq.s32.totalorder %s15, 0
      %p171 = por %p169, %p170
      %p172 = scmp.ne.s32.totalorder %s161, %s164
      %p173 = scmp.eq.s32.totalorder %s20, 1
      %p174 = por %p172, %p173
      %p175 = scmp.ne.s32.totalorder %s164, %s165
      %p176 = scmp.eq.s32.totalorder %s20, 0
      %p177 = por %p175, %p176
      %p178 = scmp.ne.s32.totalorder %s164, %s165
      %p179 = scmp.eq.s32.totalorder %s21, 1
      %p180 = por %p178, %p179
      %p182 = scmp.ne.s32.totalorder %s165, %s181
      %p183 = scmp.eq.s32.totalorder %s21, 0
      %p184 = por %p182, %p183
      %p185 = scmp.le.s32.totalorder 1, %s15
      %p186 = scmp.lt.s32.totalorder %s15, 3
      %p187 = pnand %p185, %p186
      %p188 = pneg %p187
      // Predicated region
      $region9: #{_forward_padded.1} parent=5 // pred_check
        _
      $region10: #{_forward_padded.1} parent=5 // pred_check_branch
        %190 = sbr.rel (%p187) target = $region12
      $region11: #{_forward_padded.1} parent=5 // pred_region
        %s191 = ssub.s32 %s15, 1
        // Predicated region
        $region13: #{_forward_padded.1} parent=11 // pred_check
          %p192 = pneg %p88
        $region14: #{_forward_padded.1} parent=11 // pred_check_branch
          %194 = sbr.rel (%p192) target = $region16
        $region15: #{_forward_padded.1} parent=11 // pred_region
          _
        $region16: #{_forward_padded.1} parent=11 // pred_fallthru
          _
        // Predicated region
        $region17: #{_forward_padded.1} parent=11 // pred_check
          %p195 = pneg %p109
        $region18: #{_forward_padded.1} parent=11 // pred_check_branch
          %197 = sbr.rel (%p195) target = $region20
        $region19: #{_forward_padded.1} parent=11 // pred_region
          _
        $region20: #{_forward_padded.1} parent=11 // pred_fallthru
          _
        // Predicated region
        $region21: #{_forward_padded.1} parent=11 // pred_check
          %p198 = pneg %p130
        $region22: #{_forward_padded.1} parent=11 // pred_check_branch
          %200 = sbr.rel (%p198) target = $region24
        $region23: #{_forward_padded.1} parent=11 // pred_region
          _
        $region24: #{_forward_padded.1} parent=11 // pred_fallthru
          _
        // Predicated region
        $region25: #{_forward_padded.1} parent=11 // pred_check
          %p201 = pneg %p151
        $region26: #{_forward_padded.1} parent=11 // pred_check_branch
          %203 = sbr.rel (%p201) target = $region28
        $region27: #{_forward_padded.1} parent=11 // pred_region
          _
        $region28: #{_forward_padded.1} parent=11 // pred_fallthru
          _
      $region12: #{_forward_padded.1} parent=5 // pred_fallthru
        _
      %p204 = scmp.lt.s32.totalorder %s15, 2
      // Predicated region
      $region29: #{_forward_padded.1} parent=5 // pred_check
        %p205 = pneg %p204
      $region30: #{_forward_padded.1} parent=5 // pred_check_branch
        %207 = sbr.rel (%p205) target = $region32
      $region31: #{_forward_padded.1} parent=5 // pred_region
        // Predicated region
        $region33: #{_forward_padded.1} parent=31 // pred_check
          %p208 = pneg %p35
        $region34: #{_forward_padded.1} parent=31 // pred_check_branch
          %210 = sbr.rel (%p208) target = $region36
        $region35: #{_forward_padded.1} parent=31 // pred_region
          %s211 = smul.u32 32, %s15
          %p212 = scmp.lt.s32.totalorder %s211, 63
          %s213 = scalar_select %p212, %s211, 63
          %s214 = smul.addr %s213, 7
          %s215 = smul.addr %s214, 4
          %s216 = scalar_lea.vmem %s0, %s215
          %s217 = smul.u32 32, %s15
        $region36: #{_forward_padded.1} parent=31 // pred_fallthru
          _
        // Predicated region
        $region37: #{_forward_padded.1} parent=31 // pred_check
          %p218 = pneg %p61
        $region38: #{_forward_padded.1} parent=31 // pred_check_branch
          %220 = sbr.rel (%p218) target = $region40
        $region39: #{_forward_padded.1} parent=31 // pred_region
          %s221 = smul.u32 32, %s15
          %p222 = scmp.lt.s32.totalorder %s221, 63
          %s223 = scalar_select %p222, %s221, 63
          %s224 = smul.addr %s223, 4
          %s225 = smul.addr %s224, 8
          %s226 = scalar_lea.vmem %s1, %s225
          %s227 = smul.u32 32, %s15
        $region40: #{_forward_padded.1} parent=31 // pred_fallthru
          _
      $region32: #{_forward_padded.1} parent=5 // pred_fallthru
        _
      %p228 = scmp.le.s32.totalorder 1, %s15
      %p229 = scmp.lt.s32.totalorder %s15, 3
      %p230 = pnand %p228, %p229
      %p231 = pneg %p230
      // Predicated region
      $region41: #{_forward_padded.1} parent=5 // pred_check
        _
      $region42: #{_forward_padded.1} parent=5 // pred_check_branch
        %233 = sbr.rel (%p230) target = $region44
      $region43: #{_forward_padded.1} parent=5 // pred_region
        %s234 = ssub.s32 %s15, 1
        %s235 = smul.u32 32, %s20
        %p236 = scmp.lt.s32.totalorder %s235, 63
        %s237 = scalar_select %p236, %s235, 63
        %s238 = smul.addr %s237, 7
        %s239 = smul.addr %s238, 4
        %s240 = scalar_lea.vmem %s0, %s239
        %p241 = pneg %p41
        %p242 = pneg %p38
        %s243 = smul.u32 32, %s20
        %p244 = scmp.lt.s32.totalorder %s243, 63
        %s245 = scalar_select %p244, %s243, 63
        %s246 = smul.addr %s245, 4
        %s247 = smul.addr %s246, 8
        %s248 = scalar_lea.vmem %s1, %s247
        %p249 = pneg %p67
        %p250 = pneg %p64
        %p251 = pneg %p88
        %p252 = pneg %p85
        %p253 = pneg %p109
        %p254 = pneg %p106
        %p255 = pneg %p130
        %p256 = pneg %p127
        %p257 = pneg %p151
        %p258 = pneg %p148
        %p259 = pneg %p177
        %p260 = pneg %p174
        %s261 = sand.u32 %s164, 1
        %s262 = scalar_lea.sflag [#allocation3], %s261
        %s263 = sand.u32 %s164, 1
        %s264 = smul.addr %s263, 256
        %s265 = scalar_lea.vmem [#allocation2], %s264
        %s266 = smul.u32 32, %s20
        %p267 = scmp.lt.s32.totalorder %s266, 63
        %s268 = scalar_select %p267, %s266, 63
        %s269 = smul.addr %s268, 7
        %s270 = smul.addr %s269, 4
        %s271 = scalar_lea.vmem %s0, %s270
        %s272 = smul.u32 32, %s20
        %s273 = smul.u32 32, %s20
        %p274 = scmp.lt.s32.totalorder %s273, 63
        %s275 = scalar_select %p274, %s273, 63
        %s276 = smul.addr %s275, 4
        %s277 = smul.addr %s276, 8
        %s278 = scalar_lea.vmem %s1, %s277
        %s279 = smul.u32 32, %s20
        %s280 = smul.u32 32, %s20
        %v282 = vld [vmem:[%s271] sm:$0xff]
        %v283 = vld [vmem:[%s271 + $0x8] sm:$0xff]
        %v284 = vld [vmem:[%s271 + $0x10] sm:$0xff]
        %v285 = vld [vmem:[%s271 + $0x18] sm:$0xf]
        %v286 = vld [vmem:[%s271 + $0x1c] sm:$0xff]
        %v287 = vld [vmem:[%s271 + $0x24] sm:$0xff]
        %v288 = vld [vmem:[%s271 + $0x2c] sm:$0xff]
        %v289 = vld [vmem:[%s271 + $0x34] sm:$0xf]
        %v290 = vld [vmem:[%s271 + $0x38] sm:$0xff]
        %v291 = vld [vmem:[%s271 + $0x40] sm:$0xff]
        %v292 = vld [vmem:[%s271 + $0x48] sm:$0xff]
        %v293 = vld [vmem:[%s271 + $0x50] sm:$0xf]
        %v294 = vld [vmem:[%s271 + $0x54] sm:$0xff]
        %v295 = vld [vmem:[%s271 + $0x5c] sm:$0xff]
        %v296 = vld [vmem:[%s271 + $0x64] sm:$0xff]
        %v297 = vld [vmem:[%s271 + $0x6c] sm:$0xf]
        %v298 = vld [vmem:[%s271 + $0x70] sm:$0xff]
        %v299 = vld [vmem:[%s271 + $0x78] sm:$0xff]
        %v300 = vld [vmem:[%s271 + $0x80] sm:$0xff]
        %v301 = vld [vmem:[%s271 + $0x88] sm:$0xf]
        %v302 = vld [vmem:[%s271 + $0x8c] sm:$0xff]
        %v303 = vld [vmem:[%s271 + $0x94] sm:$0xff]
        %v304 = vld [vmem:[%s271 + $0x9c] sm:$0xff]
        %v305 = vld [vmem:[%s271 + $0xa4] sm:$0xf]
        %v306 = vld [vmem:[%s271 + $0xa8] sm:$0xff]
        %v307 = vld [vmem:[%s271 + $0xb0] sm:$0xff]
        %v308 = vld [vmem:[%s271 + $0xb8] sm:$0xff]
        %v309 = vld [vmem:[%s271 + $0xc0] sm:$0xf]
        %v310 = vld [vmem:[%s271 + $0xc4] sm:$0xff]
        %v311 = vld [vmem:[%s271 + $0xcc] sm:$0xff]
        %v312 = vld [vmem:[%s271 + $0xd4] sm:$0xff]
        %v313 = vld [vmem:[%s271 + $0xdc] sm:$0xf]
        %v314 = vld [vmem:[%s271 + $0xe0] sm:$0xff]
        %v315 = vld [vmem:[%s271 + $0xe8] sm:$0xff]
        %v316 = vld [vmem:[%s271 + $0xf0] sm:$0xff]
        %v317 = vld [vmem:[%s271 + $0xf8] sm:$0xf]
        %v318 = vld [vmem:[%s271 + $0xfc] sm:$0xff]
        %v319 = vld [vmem:[%s271 + $0x104] sm:$0xff]
        %v320 = vld [vmem:[%s271 + $0x10c] sm:$0xff]
        %v321 = vld [vmem:[%s271 + $0x114] sm:$0xf]
        %v322 = vld [vmem:[%s271 + $0x118] sm:$0xff]
        %v323 = vld [vmem:[%s271 + $0x120] sm:$0xff]
        %v324 = vld [vmem:[%s271 + $0x128] sm:$0xff]
        %v325 = vld [vmem:[%s271 + $0x130] sm:$0xf]
        %v326 = vld [vmem:[%s271 + $0x134] sm:$0xff]
        %v327 = vld [vmem:[%s271 + $0x13c] sm:$0xff]
        %v328 = vld [vmem:[%s271 + $0x144] sm:$0xff]
        %v329 = vld [vmem:[%s271 + $0x14c] sm:$0xf]
        %v330 = vld [vmem:[%s271 + $0x150] sm:$0xff]
        %v331 = vld [vmem:[%s271 + $0x158] sm:$0xff]
        %v332 = vld [vmem:[%s271 + $0x160] sm:$0xff]
        %v333 = vld [vmem:[%s271 + $0x168] sm:$0xf]
        %v334 = vld [vmem:[%s271 + $0x16c] sm:$0xff]
        %v335 = vld [vmem:[%s271 + $0x174] sm:$0xff]
        %v336 = vld [vmem:[%s271 + $0x17c] sm:$0xff]
        %v337 = vld [vmem:[%s271 + $0x184] sm:$0xf]
        %v338 = vld [vmem:[%s271 + $0x188] sm:$0xff]
        %v339 = vld [vmem:[%s271 + $0x190] sm:$0xff]
        %v340 = vld [vmem:[%s271 + $0x198] sm:$0xff]
        %v341 = vld [vmem:[%s271 + $0x1a0] sm:$0xf]
        %v342 = vld [vmem:[%s271 + $0x1a4] sm:$0xff]
        %v343 = vld [vmem:[%s271 + $0x1ac] sm:$0xff]
        %v344 = vld [vmem:[%s271 + $0x1b4] sm:$0xff]
        %v345 = vld [vmem:[%s271 + $0x1bc] sm:$0xf]
        %v346 = vld [vmem:[%s271 + $0x1c0] sm:$0xff]
        %v347 = vld [vmem:[%s271 + $0x1c8] sm:$0xff]
        %v348 = vld [vmem:[%s271 + $0x1d0] sm:$0xff]
        %v349 = vld [vmem:[%s271 + $0x1d8] sm:$0xf]
        %v350 = vld [vmem:[%s271 + $0x1dc] sm:$0xff]
        %v351 = vld [vmem:[%s271 + $0x1e4] sm:$0xff]
        %v352 = vld [vmem:[%s271 + $0x1ec] sm:$0xff]
        %v353 = vld [vmem:[%s271 + $0x1f4] sm:$0xf]
        %v354 = vld [vmem:[%s271 + $0x1f8] sm:$0xff]
        %v355 = vld [vmem:[%s271 + $0x200] sm:$0xff]
        %v356 = vld [vmem:[%s271 + $0x208] sm:$0xff]
        %v357 = vld [vmem:[%s271 + $0x210] sm:$0xf]
        %v358 = vld [vmem:[%s271 + $0x214] sm:$0xff]
        %v359 = vld [vmem:[%s271 + $0x21c] sm:$0xff]
        %v360 = vld [vmem:[%s271 + $0x224] sm:$0xff]
        %v361 = vld [vmem:[%s271 + $0x22c] sm:$0xf]
        %v362 = vld [vmem:[%s271 + $0x230] sm:$0xff]
        %v363 = vld [vmem:[%s271 + $0x238] sm:$0xff]
        %v364 = vld [vmem:[%s271 + $0x240] sm:$0xff]
        %v365 = vld [vmem:[%s271 + $0x248] sm:$0xf]
        %v366 = vld [vmem:[%s271 + $0x24c] sm:$0xff]
        %v367 = vld [vmem:[%s271 + $0x254] sm:$0xff]
        %v368 = vld [vmem:[%s271 + $0x25c] sm:$0xff]
        %v369 = vld [vmem:[%s271 + $0x264] sm:$0xf]
        %v370 = vld [vmem:[%s271 + $0x268] sm:$0xff]
        %v371 = vld [vmem:[%s271 + $0x270] sm:$0xff]
        %v372 = vld [vmem:[%s271 + $0x278] sm:$0xff]
        %v373 = vld [vmem:[%s271 + $0x280] sm:$0xf]
        %v374 = vld [vmem:[%s271 + $0x284] sm:$0xff]
        %v375 = vld [vmem:[%s271 + $0x28c] sm:$0xff]
        %v376 = vld [vmem:[%s271 + $0x294] sm:$0xff]
        %v377 = vld [vmem:[%s271 + $0x29c] sm:$0xf]
        %v378 = vld [vmem:[%s271 + $0x2a0] sm:$0xff]
        %v379 = vld [vmem:[%s271 + $0x2a8] sm:$0xff]
        %v380 = vld [vmem:[%s271 + $0x2b0] sm:$0xff]
        %v381 = vld [vmem:[%s271 + $0x2b8] sm:$0xf]
        %v382 = vld [vmem:[%s271 + $0x2bc] sm:$0xff]
        %v383 = vld [vmem:[%s271 + $0x2c4] sm:$0xff]
        %v384 = vld [vmem:[%s271 + $0x2cc] sm:$0xff]
        %v385 = vld [vmem:[%s271 + $0x2d4] sm:$0xf]
        %v386 = vld [vmem:[%s271 + $0x2d8] sm:$0xff]
        %v387 = vld [vmem:[%s271 + $0x2e0] sm:$0xff]
        %v388 = vld [vmem:[%s271 + $0x2e8] sm:$0xff]
        %v389 = vld [vmem:[%s271 + $0x2f0] sm:$0xf]
        %v390 = vld [vmem:[%s271 + $0x2f4] sm:$0xff]
        %v391 = vld [vmem:[%s271 + $0x2fc] sm:$0xff]
        %v392 = vld [vmem:[%s271 + $0x304] sm:$0xff]
        %v393 = vld [vmem:[%s271 + $0x30c] sm:$0xf]
        %v394 = vld [vmem:[%s271 + $0x310] sm:$0xff]
        %v395 = vld [vmem:[%s271 + $0x318] sm:$0xff]
        %v396 = vld [vmem:[%s271 + $0x320] sm:$0xff]
        %v397 = vld [vmem:[%s271 + $0x328] sm:$0xf]
        %v398 = vld [vmem:[%s271 + $0x32c] sm:$0xff]
        %v399 = vld [vmem:[%s271 + $0x334] sm:$0xff]
        %v400 = vld [vmem:[%s271 + $0x33c] sm:$0xff]
        %v401 = vld [vmem:[%s271 + $0x344] sm:$0xf]
        %v402 = vld [vmem:[%s271 + $0x348] sm:$0xff]
        %v403 = vld [vmem:[%s271 + $0x350] sm:$0xff]
        %v404 = vld [vmem:[%s271 + $0x358] sm:$0xff]
        %v405 = vld [vmem:[%s271 + $0x360] sm:$0xf]
        %v406 = vld [vmem:[%s271 + $0x364] sm:$0xff]
        %v407 = vld [vmem:[%s271 + $0x36c] sm:$0xff]
        %v408 = vld [vmem:[%s271 + $0x374] sm:$0xff]
        %v409 = vld [vmem:[%s271 + $0x37c] sm:$0xf]
        %v410 = vld [vmem:[%s2] sm:$0xff]
        %v411 = vld [vmem:[%s2 + $0x8] sm:$0xff]
        %v412 = vld [vmem:[%s2 + $0x10] sm:$0xff]
        %v413 = vld [vmem:[%s2 + $0x18] sm:$0xff]
        %v414 = vld [vmem:[%s2 + $0x20] sm:$0xff]
        %v415 = vld [vmem:[%s2 + $0x28] sm:$0xff]
        %v416 = vld [vmem:[%s2 + $0x30] sm:$0xff]
        %v417 = vld [vmem:[%s2 + $0x38] sm:$0xff]
        %v418 = vld [vmem:[%s2 + $0x40] sm:$0xff]
        %v419 = vld [vmem:[%s2 + $0x48] sm:$0xff]
        %v420 = vld [vmem:[%s2 + $0x50] sm:$0xff]
        %v421 = vld [vmem:[%s2 + $0x58] sm:$0xff]
        %v422 = vld [vmem:[%s2 + $0x60] sm:$0xff]
        %v423 = vld [vmem:[%s2 + $0x68] sm:$0xff]
        %v424 = vld [vmem:[%s2 + $0x70] sm:$0xff]
        %v425 = vld [vmem:[%s2 + $0x78] sm:$0xff]
        %v426 = vld [vmem:[%s2 + $0x80] sm:$0xff]
        %v427 = vld [vmem:[%s2 + $0x88] sm:$0xff]
        %v428 = vld [vmem:[%s2 + $0x90] sm:$0xff]
        %v429 = vld [vmem:[%s2 + $0x98] sm:$0xff]
        %v430 = vld [vmem:[%s2 + $0xa0] sm:$0xff]
        %v431 = vld [vmem:[%s2 + $0xa8] sm:$0xff]
        %v432 = vld [vmem:[%s2 + $0xb0] sm:$0xff]
        %v433 = vld [vmem:[%s2 + $0xb8] sm:$0xff]
        %v434 = vld [vmem:[%s2 + $0xc0] sm:$0xff]
        %v435 = vld [vmem:[%s2 + $0xc8] sm:$0xff]
        %v436 = vld [vmem:[%s2 + $0xd0] sm:$0xff]
        %v437 = vld [vmem:[%s2 + $0xd8] sm:$0xff]
        %v438 = vld [vmem:[%s2 + $0xe0] sm:$0xff]
        %v439 = vld [vmem:[%s2 + $0xe8] sm:$0xff]
        %v440 = vld [vmem:[%s2 + $0xf0] sm:$0xff]
        %v441 = vld [vmem:[%s2 + $0xf8] sm:$0xff]
        %v442 = vld [vmem:[%s2 + $0x100] sm:$0xff]
        %v443 = vld [vmem:[%s2 + $0x108] sm:$0xff]
        %v444 = vld [vmem:[%s2 + $0x110] sm:$0xff]
        %v445 = vld [vmem:[%s2 + $0x118] sm:$0xff]
        %v446 = vld [vmem:[%s2 + $0x120] sm:$0xff]
        %v447 = vld [vmem:[%s2 + $0x128] sm:$0xff]
        %v448 = vld [vmem:[%s2 + $0x130] sm:$0xff]
        %v449 = vld [vmem:[%s2 + $0x138] sm:$0xff]
        %v450 = vld [vmem:[%s2 + $0x140] sm:$0xff]
        %v451 = vld [vmem:[%s2 + $0x148] sm:$0xff]
        %v452 = vld [vmem:[%s2 + $0x150] sm:$0xff]
        %v453 = vld [vmem:[%s2 + $0x158] sm:$0xff]
        %v454 = vld [vmem:[%s2 + $0x160] sm:$0xff]
        %v455 = vld [vmem:[%s2 + $0x168] sm:$0xff]
        %v456 = vld [vmem:[%s2 + $0x170] sm:$0xff]
        %v457 = vld [vmem:[%s2 + $0x178] sm:$0xff]
        %v458 = vld [vmem:[%s2 + $0x180] sm:$0xff]
        %v459 = vld [vmem:[%s2 + $0x188] sm:$0xff]
        %v460 = vld [vmem:[%s2 + $0x190] sm:$0xff]
        %v461 = vld [vmem:[%s2 + $0x198] sm:$0xff]
        %v462 = vld [vmem:[%s2 + $0x1a0] sm:$0xff]
        %v463 = vld [vmem:[%s2 + $0x1a8] sm:$0xff]
        %v464 = vld [vmem:[%s2 + $0x1b0] sm:$0xff]
        %v465 = vld [vmem:[%s2 + $0x1b8] sm:$0xff]
        %v466 = vld [vmem:[%s2 + $0x1c0] sm:$0xff]
        %v467 = vld [vmem:[%s2 + $0x1c8] sm:$0xff]
        %v468 = vld [vmem:[%s2 + $0x1d0] sm:$0xff]
        %v469 = vld [vmem:[%s2 + $0x1d8] sm:$0xff]
        %v470 = vld [vmem:[%s2 + $0x1e0] sm:$0xff]
        %v471 = vld [vmem:[%s2 + $0x1e8] sm:$0xff]
        %v472 = vld [vmem:[%s2 + $0x1f0] sm:$0xff]
        %v473 = vld [vmem:[%s2 + $0x1f8] sm:$0xff]
        %v474 = vld [vmem:[%s2 + $0x200] sm:$0xff]
        %v475 = vld [vmem:[%s2 + $0x208] sm:$0xff]
        %v476 = vld [vmem:[%s2 + $0x210] sm:$0xff]
        %v477 = vld [vmem:[%s2 + $0x218] sm:$0xff]
        %v478 = vld [vmem:[%s2 + $0x220] sm:$0xff]
        %v479 = vld [vmem:[%s2 + $0x228] sm:$0xff]
        %v480 = vld [vmem:[%s2 + $0x230] sm:$0xff]
        %v481 = vld [vmem:[%s2 + $0x238] sm:$0xff]
        %v482 = vld [vmem:[%s2 + $0x240] sm:$0xff]
        %v483 = vld [vmem:[%s2 + $0x248] sm:$0xff]
        %v484 = vld [vmem:[%s2 + $0x250] sm:$0xff]
        %v485 = vld [vmem:[%s2 + $0x258] sm:$0xff]
        %v486 = vld [vmem:[%s2 + $0x260] sm:$0xff]
        %v487 = vld [vmem:[%s2 + $0x268] sm:$0xff]
        %v488 = vld [vmem:[%s2 + $0x270] sm:$0xff]
        %v489 = vld [vmem:[%s2 + $0x278] sm:$0xff]
        %v490 = vld [vmem:[%s2 + $0x280] sm:$0xff]
        %v491 = vld [vmem:[%s2 + $0x288] sm:$0xff]
        %v492 = vld [vmem:[%s2 + $0x290] sm:$0xff]
        %v493 = vld [vmem:[%s2 + $0x298] sm:$0xff]
        %v494 = vld [vmem:[%s2 + $0x2a0] sm:$0xff]
        %v495 = vld [vmem:[%s2 + $0x2a8] sm:$0xff]
        %v496 = vld [vmem:[%s2 + $0x2b0] sm:$0xff]
        %v497 = vld [vmem:[%s2 + $0x2b8] sm:$0xff]
        %v498 = vld [vmem:[%s2 + $0x2c0] sm:$0xff]
        %v499 = vld [vmem:[%s2 + $0x2c8] sm:$0xff]
        %v500 = vld [vmem:[%s2 + $0x2d0] sm:$0xff]
        %v501 = vld [vmem:[%s2 + $0x2d8] sm:$0xff]
        %v502 = vld [vmem:[%s2 + $0x2e0] sm:$0xff]
        %v503 = vld [vmem:[%s2 + $0x2e8] sm:$0xff]
        %v504 = vld [vmem:[%s2 + $0x2f0] sm:$0xff]
        %v505 = vld [vmem:[%s2 + $0x2f8] sm:$0xff]
        %v506 = vld [vmem:[%s2 + $0x300] sm:$0xff]
        %v507 = vld [vmem:[%s2 + $0x308] sm:$0xff]
        %v508 = vld [vmem:[%s2 + $0x310] sm:$0xff]
        %v509 = vld [vmem:[%s2 + $0x318] sm:$0xff]
        %v510 = vld [vmem:[%s2 + $0x320] sm:$0xff]
        %v511 = vld [vmem:[%s2 + $0x328] sm:$0xff]
        %v512 = vld [vmem:[%s2 + $0x330] sm:$0xff]
        %v513 = vld [vmem:[%s2 + $0x338] sm:$0xff]
        %v514 = vld [vmem:[%s2 + $0x340] sm:$0xff]
        %v515 = vld [vmem:[%s2 + $0x348] sm:$0xff]
        %v516 = vld [vmem:[%s2 + $0x350] sm:$0xff]
        %v517 = vld [vmem:[%s2 + $0x358] sm:$0xff]
        %v518 = vld [vmem:[%s2 + $0x360] sm:$0xff]
        %v519 = vld [vmem:[%s2 + $0x368] sm:$0xff]
        %v520 = vld [vmem:[%s2 + $0x370] sm:$0xff]
        %v521 = vld [vmem:[%s2 + $0x378] sm:$0xff]
        %v522 = vld [vmem:[%s2 + $0x380] sm:$0xff]
        %v523 = vld [vmem:[%s2 + $0x388] sm:$0xff]
        %v524 = vld [vmem:[%s2 + $0x390] sm:$0xff]
        %v525 = vld [vmem:[%s2 + $0x398] sm:$0xff]
        %v526 = vld [vmem:[%s2 + $0x3a0] sm:$0xff]
        %v527 = vld [vmem:[%s2 + $0x3a8] sm:$0xff]
        %v528 = vld [vmem:[%s2 + $0x3b0] sm:$0xff]
        %v529 = vld [vmem:[%s2 + $0x3b8] sm:$0xff]
        %v530 = vld [vmem:[%s2 + $0x3c0] sm:$0xff]
        %v531 = vld [vmem:[%s2 + $0x3c8] sm:$0xff]
        %v532 = vld [vmem:[%s2 + $0x3d0] sm:$0xff]
        %v533 = vld [vmem:[%s2 + $0x3d8] sm:$0xff]
        %v534 = vld [vmem:[%s2 + $0x3e0] sm:$0xff]
        %v535 = vld [vmem:[%s2 + $0x3e8] sm:$0xff]
        %v536 = vld [vmem:[%s2 + $0x3f0] sm:$0xff]
        %v537 = vld [vmem:[%s2 + $0x3f8] sm:$0xff]
        %v538 = vld [vmem:[%s2 + $0x400] sm:$0xff]
        %v539 = vld [vmem:[%s2 + $0x408] sm:$0xff]
        %v540 = vld [vmem:[%s2 + $0x410] sm:$0xff]
        %v541 = vld [vmem:[%s2 + $0x418] sm:$0xff]
        %v542 = vld [vmem:[%s2 + $0x420] sm:$0xff]
        %v543 = vld [vmem:[%s2 + $0x428] sm:$0xff]
        %v544 = vld [vmem:[%s2 + $0x430] sm:$0xff]
        %v545 = vld [vmem:[%s2 + $0x438] sm:$0xff]
        %v546 = vld [vmem:[%s2 + $0x440] sm:$0xff]
        %v547 = vld [vmem:[%s2 + $0x448] sm:$0xff]
        %v548 = vld [vmem:[%s2 + $0x450] sm:$0xff]
        %v549 = vld [vmem:[%s2 + $0x458] sm:$0xff]
        %v550 = vld [vmem:[%s2 + $0x460] sm:$0xff]
        %v551 = vld [vmem:[%s2 + $0x468] sm:$0xff]
        %v552 = vld [vmem:[%s2 + $0x470] sm:$0xff]
        %v553 = vld [vmem:[%s2 + $0x478] sm:$0xff]
        %v554 = vld [vmem:[%s2 + $0x480] sm:$0xff]
        %v555 = vld [vmem:[%s2 + $0x488] sm:$0xff]
        %v556 = vld [vmem:[%s2 + $0x490] sm:$0xff]
        %v557 = vld [vmem:[%s2 + $0x498] sm:$0xff]
        %v558 = vld [vmem:[%s2 + $0x4a0] sm:$0xff]
        %v559 = vld [vmem:[%s2 + $0x4a8] sm:$0xff]
        %v560 = vld [vmem:[%s2 + $0x4b0] sm:$0xff]
        %v561 = vld [vmem:[%s2 + $0x4b8] sm:$0xff]
        %v562 = vld [vmem:[%s2 + $0x4c0] sm:$0xff]
        %v563 = vld [vmem:[%s2 + $0x4c8] sm:$0xff]
        %v564 = vld [vmem:[%s2 + $0x4d0] sm:$0xff]
        %v565 = vld [vmem:[%s2 + $0x4d8] sm:$0xff]
        %v566 = vld [vmem:[%s2 + $0x4e0] sm:$0xff]
        %v567 = vld [vmem:[%s2 + $0x4e8] sm:$0xff]
        %v568 = vld [vmem:[%s2 + $0x4f0] sm:$0xff]
        %v569 = vld [vmem:[%s2 + $0x4f8] sm:$0xff]
        %v570 = vld [vmem:[%s2 + $0x500] sm:$0xff]
        %v571 = vld [vmem:[%s2 + $0x508] sm:$0xff]
        %v572 = vld [vmem:[%s2 + $0x510] sm:$0xff]
        %v573 = vld [vmem:[%s2 + $0x518] sm:$0xff]
        %v574 = vld [vmem:[%s2 + $0x520] sm:$0xff]
        %v575 = vld [vmem:[%s2 + $0x528] sm:$0xff]
        %v576 = vld [vmem:[%s2 + $0x530] sm:$0xff]
        %v577 = vld [vmem:[%s2 + $0x538] sm:$0xff]
        %v578 = vld [vmem:[%s2 + $0x540] sm:$0xff]
        %v579 = vld [vmem:[%s2 + $0x548] sm:$0xff]
        %v580 = vld [vmem:[%s2 + $0x550] sm:$0xff]
        %v581 = vld [vmem:[%s2 + $0x558] sm:$0xff]
        %v582 = vld [vmem:[%s2 + $0x560] sm:$0xff]
        %v583 = vld [vmem:[%s2 + $0x568] sm:$0xff]
        %v584 = vld [vmem:[%s2 + $0x570] sm:$0xff]
        %v585 = vld [vmem:[%s2 + $0x578] sm:$0xff]
        %v586 = vld [vmem:[%s2 + $0x580] sm:$0xff]
        %v587 = vld [vmem:[%s2 + $0x588] sm:$0xff]
        %v588 = vld [vmem:[%s2 + $0x590] sm:$0xff]
        %v589 = vld [vmem:[%s2 + $0x598] sm:$0xff]
        %v590 = vld [vmem:[%s2 + $0x5a0] sm:$0xff]
        %v591 = vld [vmem:[%s2 + $0x5a8] sm:$0xff]
        %v592 = vld [vmem:[%s2 + $0x5b0] sm:$0xff]
        %v593 = vld [vmem:[%s2 + $0x5b8] sm:$0xff]
        %v594 = vld [vmem:[%s2 + $0x5c0] sm:$0xff]
        %v595 = vld [vmem:[%s2 + $0x5c8] sm:$0xff]
        %v596 = vld [vmem:[%s2 + $0x5d0] sm:$0xff]
        %v597 = vld [vmem:[%s2 + $0x5d8] sm:$0xff]
        %v598 = vld [vmem:[%s2 + $0x5e0] sm:$0xff]
        %v599 = vld [vmem:[%s2 + $0x5e8] sm:$0xff]
        %v600 = vld [vmem:[%s2 + $0x5f0] sm:$0xff]
        %v601 = vld [vmem:[%s2 + $0x5f8] sm:$0xff]
        %v602 = vld [vmem:[%s2 + $0x600] sm:$0xff]
        %v603 = vld [vmem:[%s2 + $0x608] sm:$0xff]
        %v604 = vld [vmem:[%s2 + $0x610] sm:$0xff]
        %v605 = vld [vmem:[%s2 + $0x618] sm:$0xff]
        %v606 = vld [vmem:[%s3] sm:$0xf]
        %v608 = vlaneseq
        %v609 = vshrl.u32 %v608, 7
        %v610 = vsub.s32 0, %v609
        %v611 = vrot.slane %v606, %v610
        %v612 = vlaneseq
        %v613 = vshrl.u32 %v612, 7
        %v614 = vsub.s32 1, %v613
        %v615 = vrot.slane %v606, %v614
        %v616 = vlaneseq
        %v617 = vshrl.u32 %v616, 7
        %v618 = vsub.s32 2, %v617
        %v619 = vrot.slane %v606, %v618
        %v620 = vlaneseq
        %v621 = vshrl.u32 %v620, 7
        %v622 = vsub.s32 3, %v621
        %v623 = vrot.slane %v606, %v622
        %v756 = vunpack.c.l.b16 %v282
        %v757 = vunpack.c.h.b16 %v282
        %v758 = vunpack.c.l.b16 %v283
        %v759 = vunpack.c.h.b16 %v283
        %v760 = vunpack.c.l.b16 %v284
        %v761 = vunpack.c.h.b16 %v284
        %v762 = vunpack.c.l.b16 %v285
        %v763 = vunpack.c.l.b16 %v286
        %v764 = vunpack.c.h.b16 %v286
        %v765 = vunpack.c.l.b16 %v287
        %v766 = vunpack.c.h.b16 %v287
        %v767 = vunpack.c.l.b16 %v288
        %v768 = vunpack.c.h.b16 %v288
        %v769 = vunpack.c.l.b16 %v289
        %v770 = vunpack.c.l.b16 %v290
        %v771 = vunpack.c.h.b16 %v290
        %v772 = vunpack.c.l.b16 %v291
        %v773 = vunpack.c.h.b16 %v291
        %v774 = vunpack.c.l.b16 %v292
        %v775 = vunpack.c.h.b16 %v292
        %v776 = vunpack.c.l.b16 %v293
        %v777 = vunpack.c.l.b16 %v294
        %v778 = vunpack.c.h.b16 %v294
        %v779 = vunpack.c.l.b16 %v295
        %v780 = vunpack.c.h.b16 %v295
        %v781 = vunpack.c.l.b16 %v296
        %v782 = vunpack.c.h.b16 %v296
        %v783 = vunpack.c.l.b16 %v297
        %v784 = vunpack.c.l.b16 %v298
        %v785 = vunpack.c.h.b16 %v298
        %v786 = vunpack.c.l.b16 %v299
        %v787 = vunpack.c.h.b16 %v299
        %v788 = vunpack.c.l.b16 %v300
        %v789 = vunpack.c.h.b16 %v300
        %v790 = vunpack.c.l.b16 %v301
        %v791 = vunpack.c.l.b16 %v302
        %v792 = vunpack.c.h.b16 %v302
        %v793 = vunpack.c.l.b16 %v303
        %v794 = vunpack.c.h.b16 %v303
        %v795 = vunpack.c.l.b16 %v304
        %v796 = vunpack.c.h.b16 %v304
        %v797 = vunpack.c.l.b16 %v305
        %v798 = vunpack.c.l.b16 %v306
        %v799 = vunpack.c.h.b16 %v306
        %v800 = vunpack.c.l.b16 %v307
        %v801 = vunpack.c.h.b16 %v307
        %v802 = vunpack.c.l.b16 %v308
        %v803 = vunpack.c.h.b16 %v308
        %v804 = vunpack.c.l.b16 %v309
        %v805 = vunpack.c.l.b16 %v310
        %v806 = vunpack.c.h.b16 %v310
        %v807 = vunpack.c.l.b16 %v311
        %v808 = vunpack.c.h.b16 %v311
        %v809 = vunpack.c.l.b16 %v312
        %v810 = vunpack.c.h.b16 %v312
        %v811 = vunpack.c.l.b16 %v313
        %v812 = vunpack.c.l.b16 %v314
        %v813 = vunpack.c.h.b16 %v314
        %v814 = vunpack.c.l.b16 %v315
        %v815 = vunpack.c.h.b16 %v315
        %v816 = vunpack.c.l.b16 %v316
        %v817 = vunpack.c.h.b16 %v316
        %v818 = vunpack.c.l.b16 %v317
        %v819 = vunpack.c.l.b16 %v318
        %v820 = vunpack.c.h.b16 %v318
        %v821 = vunpack.c.l.b16 %v319
        %v822 = vunpack.c.h.b16 %v319
        %v823 = vunpack.c.l.b16 %v320
        %v824 = vunpack.c.h.b16 %v320
        %v825 = vunpack.c.l.b16 %v321
        %v826 = vunpack.c.l.b16 %v322
        %v827 = vunpack.c.h.b16 %v322
        %v828 = vunpack.c.l.b16 %v323
        %v829 = vunpack.c.h.b16 %v323
        %v830 = vunpack.c.l.b16 %v324
        %v831 = vunpack.c.h.b16 %v324
        %v832 = vunpack.c.l.b16 %v325
        %v833 = vunpack.c.l.b16 %v326
        %v834 = vunpack.c.h.b16 %v326
        %v835 = vunpack.c.l.b16 %v327
        %v836 = vunpack.c.h.b16 %v327
        %v837 = vunpack.c.l.b16 %v328
        %v838 = vunpack.c.h.b16 %v328
        %v839 = vunpack.c.l.b16 %v329
        %v840 = vunpack.c.l.b16 %v330
        %v841 = vunpack.c.h.b16 %v330
        %v842 = vunpack.c.l.b16 %v331
        %v843 = vunpack.c.h.b16 %v331
        %v844 = vunpack.c.l.b16 %v332
        %v845 = vunpack.c.h.b16 %v332
        %v846 = vunpack.c.l.b16 %v333
        %v847 = vunpack.c.l.b16 %v334
        %v848 = vunpack.c.h.b16 %v334
        %v849 = vunpack.c.l.b16 %v335
        %v850 = vunpack.c.h.b16 %v335
        %v851 = vunpack.c.l.b16 %v336
        %v852 = vunpack.c.h.b16 %v336
        %v853 = vunpack.c.l.b16 %v337
        %v854 = vunpack.c.l.b16 %v338
        %v855 = vunpack.c.h.b16 %v338
        %v856 = vunpack.c.l.b16 %v339
        %v857 = vunpack.c.h.b16 %v339
        %v858 = vunpack.c.l.b16 %v340
        %v859 = vunpack.c.h.b16 %v340
        %v860 = vunpack.c.l.b16 %v341
        %v861 = vunpack.c.l.b16 %v342
        %v862 = vunpack.c.h.b16 %v342
        %v863 = vunpack.c.l.b16 %v343
        %v864 = vunpack.c.h.b16 %v343
        %v865 = vunpack.c.l.b16 %v344
        %v866 = vunpack.c.h.b16 %v344
        %v867 = vunpack.c.l.b16 %v345
        %v868 = vunpack.c.l.b16 %v346
        %v869 = vunpack.c.h.b16 %v346
        %v870 = vunpack.c.l.b16 %v347
        %v871 = vunpack.c.h.b16 %v347
        %v872 = vunpack.c.l.b16 %v348
        %v873 = vunpack.c.h.b16 %v348
        %v874 = vunpack.c.l.b16 %v349
        %v875 = vunpack.c.l.b16 %v350
        %v876 = vunpack.c.h.b16 %v350
        %v877 = vunpack.c.l.b16 %v351
        %v878 = vunpack.c.h.b16 %v351
        %v879 = vunpack.c.l.b16 %v352
        %v880 = vunpack.c.h.b16 %v352
        %v881 = vunpack.c.l.b16 %v353
        %v882 = vunpack.c.l.b16 %v354
        %v883 = vunpack.c.h.b16 %v354
        %v884 = vunpack.c.l.b16 %v355
        %v885 = vunpack.c.h.b16 %v355
        %v886 = vunpack.c.l.b16 %v356
        %v887 = vunpack.c.h.b16 %v356
        %v888 = vunpack.c.l.b16 %v357
        %v889 = vunpack.c.l.b16 %v358
        %v890 = vunpack.c.h.b16 %v358
        %v891 = vunpack.c.l.b16 %v359
        %v892 = vunpack.c.h.b16 %v359
        %v893 = vunpack.c.l.b16 %v360
        %v894 = vunpack.c.h.b16 %v360
        %v895 = vunpack.c.l.b16 %v361
        %v896 = vunpack.c.l.b16 %v362
        %v897 = vunpack.c.h.b16 %v362
        %v898 = vunpack.c.l.b16 %v363
        %v899 = vunpack.c.h.b16 %v363
        %v900 = vunpack.c.l.b16 %v364
        %v901 = vunpack.c.h.b16 %v364
        %v902 = vunpack.c.l.b16 %v365
        %v903 = vunpack.c.l.b16 %v366
        %v904 = vunpack.c.h.b16 %v366
        %v905 = vunpack.c.l.b16 %v367
        %v906 = vunpack.c.h.b16 %v367
        %v907 = vunpack.c.l.b16 %v368
        %v908 = vunpack.c.h.b16 %v368
        %v909 = vunpack.c.l.b16 %v369
        %v910 = vunpack.c.l.b16 %v370
        %v911 = vunpack.c.h.b16 %v370
        %v912 = vunpack.c.l.b16 %v371
        %v913 = vunpack.c.h.b16 %v371
        %v914 = vunpack.c.l.b16 %v372
        %v915 = vunpack.c.h.b16 %v372
        %v916 = vunpack.c.l.b16 %v373
        %v917 = vunpack.c.l.b16 %v374
        %v918 = vunpack.c.h.b16 %v374
        %v919 = vunpack.c.l.b16 %v375
        %v920 = vunpack.c.h.b16 %v375
        %v921 = vunpack.c.l.b16 %v376
        %v922 = vunpack.c.h.b16 %v376
        %v923 = vunpack.c.l.b16 %v377
        %v924 = vunpack.c.l.b16 %v378
        %v925 = vunpack.c.h.b16 %v378
        %v926 = vunpack.c.l.b16 %v379
        %v927 = vunpack.c.h.b16 %v379
        %v928 = vunpack.c.l.b16 %v380
        %v929 = vunpack.c.h.b16 %v380
        %v930 = vunpack.c.l.b16 %v381
        %v931 = vunpack.c.l.b16 %v382
        %v932 = vunpack.c.h.b16 %v382
        %v933 = vunpack.c.l.b16 %v383
        %v934 = vunpack.c.h.b16 %v383
        %v935 = vunpack.c.l.b16 %v384
        %v936 = vunpack.c.h.b16 %v384
        %v937 = vunpack.c.l.b16 %v385
        %v938 = vunpack.c.l.b16 %v386
        %v939 = vunpack.c.h.b16 %v386
        %v940 = vunpack.c.l.b16 %v387
        %v941 = vunpack.c.h.b16 %v387
        %v942 = vunpack.c.l.b16 %v388
        %v943 = vunpack.c.h.b16 %v388
        %v944 = vunpack.c.l.b16 %v389
        %v945 = vunpack.c.l.b16 %v390
        %v946 = vunpack.c.h.b16 %v390
        %v947 = vunpack.c.l.b16 %v391
        %v948 = vunpack.c.h.b16 %v391
        %v949 = vunpack.c.l.b16 %v392
        %v950 = vunpack.c.h.b16 %v392
        %v951 = vunpack.c.l.b16 %v393
        %v952 = vunpack.c.l.b16 %v394
        %v953 = vunpack.c.h.b16 %v394
        %v954 = vunpack.c.l.b16 %v395
        %v955 = vunpack.c.h.b16 %v395
        %v956 = vunpack.c.l.b16 %v396
        %v957 = vunpack.c.h.b16 %v396
        %v958 = vunpack.c.l.b16 %v397
        %v959 = vunpack.c.l.b16 %v398
        %v960 = vunpack.c.h.b16 %v398
        %v961 = vunpack.c.l.b16 %v399
        %v962 = vunpack.c.h.b16 %v399
        %v963 = vunpack.c.l.b16 %v400
        %v964 = vunpack.c.h.b16 %v400
        %v965 = vunpack.c.l.b16 %v401
        %v966 = vunpack.c.l.b16 %v402
        %v967 = vunpack.c.h.b16 %v402
        %v968 = vunpack.c.l.b16 %v403
        %v969 = vunpack.c.h.b16 %v403
        %v970 = vunpack.c.l.b16 %v404
        %v971 = vunpack.c.h.b16 %v404
        %v972 = vunpack.c.l.b16 %v405
        %v973 = vunpack.c.l.b16 %v406
        %v974 = vunpack.c.h.b16 %v406
        %v975 = vunpack.c.l.b16 %v407
        %v976 = vunpack.c.h.b16 %v407
        %v977 = vunpack.c.l.b16 %v408
        %v978 = vunpack.c.h.b16 %v408
        %v979 = vunpack.c.l.b16 %v409
        %v980 = vpack.c.b16 %v763, %v756
        %v981 = vpack.c.b16 %v764, %v757
        %v982 = vpack.c.b16 %v765, %v758
        %v983 = vpack.c.b16 %v766, %v759
        %v984 = vpack.c.b16 %v767, %v760
        %v985 = vpack.c.b16 %v768, %v761
        %v986 = vpack.c.b16 %v769, %v762
        %v987 = vpack.c.b16 %v777, %v770
        %v988 = vpack.c.b16 %v778, %v771
        %v989 = vpack.c.b16 %v779, %v772
        %v990 = vpack.c.b16 %v780, %v773
        %v991 = vpack.c.b16 %v781, %v774
        %v992 = vpack.c.b16 %v782, %v775
        %v993 = vpack.c.b16 %v783, %v776
        %v994 = vpack.c.b16 %v791, %v784
        %v995 = vpack.c.b16 %v792, %v785
        %v996 = vpack.c.b16 %v793, %v786
        %v997 = vpack.c.b16 %v794, %v787
        %v998 = vpack.c.b16 %v795, %v788
        %v999 = vpack.c.b16 %v796, %v789
        %v1000 = vpack.c.b16 %v797, %v790
        %v1001 = vpack.c.b16 %v805, %v798
        %v1002 = vpack.c.b16 %v806, %v799
        %v1003 = vpack.c.b16 %v807, %v800
        %v1004 = vpack.c.b16 %v808, %v801
        %v1005 = vpack.c.b16 %v809, %v802
        %v1006 = vpack.c.b16 %v810, %v803
        %v1007 = vpack.c.b16 %v811, %v804
        %v1008 = vpack.c.b16 %v819, %v812
        %v1009 = vpack.c.b16 %v820, %v813
        %v1010 = vpack.c.b16 %v821, %v814
        %v1011 = vpack.c.b16 %v822, %v815
        %v1012 = vpack.c.b16 %v823, %v816
        %v1013 = vpack.c.b16 %v824, %v817
        %v1014 = vpack.c.b16 %v825, %v818
        %v1015 = vpack.c.b16 %v833, %v826
        %v1016 = vpack.c.b16 %v834, %v827
        %v1017 = vpack.c.b16 %v835, %v828
        %v1018 = vpack.c.b16 %v836, %v829
        %v1019 = vpack.c.b16 %v837, %v830
        %v1020 = vpack.c.b16 %v838, %v831
        %v1021 = vpack.c.b16 %v839, %v832
        %v1022 = vpack.c.b16 %v847, %v840
        %v1023 = vpack.c.b16 %v848, %v841
        %v1024 = vpack.c.b16 %v849, %v842
        %v1025 = vpack.c.b16 %v850, %v843
        %v1026 = vpack.c.b16 %v851, %v844
        %v1027 = vpack.c.b16 %v852, %v845
        %v1028 = vpack.c.b16 %v853, %v846
        %v1029 = vpack.c.b16 %v861, %v854
        %v1030 = vpack.c.b16 %v862, %v855
        %v1031 = vpack.c.b16 %v863, %v856
        %v1032 = vpack.c.b16 %v864, %v857
        %v1033 = vpack.c.b16 %v865, %v858
        %v1034 = vpack.c.b16 %v866, %v859
        %v1035 = vpack.c.b16 %v867, %v860
        %v1036 = vpack.c.b16 %v875, %v868
        %v1037 = vpack.c.b16 %v876, %v869
        %v1038 = vpack.c.b16 %v877, %v870
        %v1039 = vpack.c.b16 %v878, %v871
        %v1040 = vpack.c.b16 %v879, %v872
        %v1041 = vpack.c.b16 %v880, %v873
        %v1042 = vpack.c.b16 %v881, %v874
        %v1043 = vpack.c.b16 %v889, %v882
        %v1044 = vpack.c.b16 %v890, %v883
        %v1045 = vpack.c.b16 %v891, %v884
        %v1046 = vpack.c.b16 %v892, %v885
        %v1047 = vpack.c.b16 %v893, %v886
        %v1048 = vpack.c.b16 %v894, %v887
        %v1049 = vpack.c.b16 %v895, %v888
        %v1050 = vpack.c.b16 %v903, %v896
        %v1051 = vpack.c.b16 %v904, %v897
        %v1052 = vpack.c.b16 %v905, %v898
        %v1053 = vpack.c.b16 %v906, %v899
        %v1054 = vpack.c.b16 %v907, %v900
        %v1055 = vpack.c.b16 %v908, %v901
        %v1056 = vpack.c.b16 %v909, %v902
        %v1057 = vpack.c.b16 %v917, %v910
        %v1058 = vpack.c.b16 %v918, %v911
        %v1059 = vpack.c.b16 %v919, %v912
        %v1060 = vpack.c.b16 %v920, %v913
        %v1061 = vpack.c.b16 %v921, %v914
        %v1062 = vpack.c.b16 %v922, %v915
        %v1063 = vpack.c.b16 %v923, %v916
        %v1064 = vpack.c.b16 %v931, %v924
        %v1065 = vpack.c.b16 %v932, %v925
        %v1066 = vpack.c.b16 %v933, %v926
        %v1067 = vpack.c.b16 %v934, %v927
        %v1068 = vpack.c.b16 %v935, %v928
        %v1069 = vpack.c.b16 %v936, %v929
        %v1070 = vpack.c.b16 %v937, %v930
        %v1071 = vpack.c.b16 %v945, %v938
        %v1072 = vpack.c.b16 %v946, %v939
        %v1073 = vpack.c.b16 %v947, %v940
        %v1074 = vpack.c.b16 %v948, %v941
        %v1075 = vpack.c.b16 %v949, %v942
        %v1076 = vpack.c.b16 %v950, %v943
        %v1077 = vpack.c.b16 %v951, %v944
        %v1078 = vpack.c.b16 %v959, %v952
        %v1079 = vpack.c.b16 %v960, %v953
        %v1080 = vpack.c.b16 %v961, %v954
        %v1081 = vpack.c.b16 %v962, %v955
        %v1082 = vpack.c.b16 %v963, %v956
        %v1083 = vpack.c.b16 %v964, %v957
        %v1084 = vpack.c.b16 %v965, %v958
        %v1085 = vpack.c.b16 %v973, %v966
        %v1086 = vpack.c.b16 %v974, %v967
        %v1087 = vpack.c.b16 %v975, %v968
        %v1088 = vpack.c.b16 %v976, %v969
        %v1089 = vpack.c.b16 %v977, %v970
        %v1090 = vpack.c.b16 %v978, %v971
        %v1091 = vpack.c.b16 %v979, %v972
        %v1384 = vunpack.c.l.b16 %v410
        %v1385 = vunpack.c.h.b16 %v410
        %v1386 = vunpack.c.l.b16 %v411
        %v1387 = vunpack.c.h.b16 %v411
        %v1388 = vunpack.c.l.b16 %v412
        %v1389 = vunpack.c.h.b16 %v412
        %v1390 = vunpack.c.l.b16 %v413
        %v1391 = vunpack.c.h.b16 %v413
        %v1392 = vunpack.c.l.b16 %v414
        %v1393 = vunpack.c.h.b16 %v414
        %v1394 = vunpack.c.l.b16 %v415
        %v1395 = vunpack.c.h.b16 %v415
        %v1396 = vunpack.c.l.b16 %v416
        %v1397 = vunpack.c.h.b16 %v416
        %v1398 = vunpack.c.l.b16 %v417
        %v1399 = vunpack.c.h.b16 %v417
        %v1400 = vunpack.c.l.b16 %v418
        %v1401 = vunpack.c.h.b16 %v418
        %v1402 = vunpack.c.l.b16 %v419
        %v1403 = vunpack.c.h.b16 %v419
        %v1404 = vunpack.c.l.b16 %v420
        %v1405 = vunpack.c.h.b16 %v420
        %v1406 = vunpack.c.l.b16 %v421
        %v1407 = vunpack.c.h.b16 %v421
        %v1408 = vunpack.c.l.b16 %v422
        %v1409 = vunpack.c.h.b16 %v422
        %v1410 = vunpack.c.l.b16 %v423
        %v1411 = vunpack.c.h.b16 %v423
        %v1412 = vunpack.c.l.b16 %v424
        %v1413 = vunpack.c.h.b16 %v424
        %v1414 = vunpack.c.l.b16 %v425
        %v1415 = vunpack.c.h.b16 %v425
        %v1416 = vunpack.c.l.b16 %v426
        %v1417 = vunpack.c.h.b16 %v426
        %v1418 = vunpack.c.l.b16 %v427
        %v1419 = vunpack.c.h.b16 %v427
        %v1420 = vunpack.c.l.b16 %v428
        %v1421 = vunpack.c.h.b16 %v428
        %v1422 = vunpack.c.l.b16 %v429
        %v1423 = vunpack.c.h.b16 %v429
        %v1424 = vunpack.c.l.b16 %v430
        %v1425 = vunpack.c.h.b16 %v430
        %v1426 = vunpack.c.l.b16 %v431
        %v1427 = vunpack.c.h.b16 %v431
        %v1428 = vunpack.c.l.b16 %v432
        %v1429 = vunpack.c.h.b16 %v432
        %v1430 = vunpack.c.l.b16 %v433
        %v1431 = vunpack.c.h.b16 %v433
        %v1432 = vunpack.c.l.b16 %v434
        %v1433 = vunpack.c.h.b16 %v434
        %v1434 = vunpack.c.l.b16 %v435
        %v1435 = vunpack.c.h.b16 %v435
        %v1436 = vunpack.c.l.b16 %v436
        %v1437 = vunpack.c.h.b16 %v436
        %v1438 = vunpack.c.l.b16 %v437
        %v1439 = vunpack.c.h.b16 %v437
        %v1440 = vunpack.c.l.b16 %v438
        %v1441 = vunpack.c.h.b16 %v438
        %v1442 = vunpack.c.l.b16 %v439
        %v1443 = vunpack.c.h.b16 %v439
        %v1444 = vunpack.c.l.b16 %v440
        %v1445 = vunpack.c.h.b16 %v440
        %v1446 = vunpack.c.l.b16 %v441
        %v1447 = vunpack.c.h.b16 %v441
        %v1448 = vunpack.c.l.b16 %v442
        %v1449 = vunpack.c.h.b16 %v442
        %v1450 = vunpack.c.l.b16 %v443
        %v1451 = vunpack.c.h.b16 %v443
        %v1452 = vunpack.c.l.b16 %v444
        %v1453 = vunpack.c.h.b16 %v444
        %v1454 = vunpack.c.l.b16 %v445
        %v1455 = vunpack.c.h.b16 %v445
        %v1456 = vunpack.c.l.b16 %v446
        %v1457 = vunpack.c.h.b16 %v446
        %v1458 = vunpack.c.l.b16 %v447
        %v1459 = vunpack.c.h.b16 %v447
        %v1460 = vunpack.c.l.b16 %v448
        %v1461 = vunpack.c.h.b16 %v448
        %v1462 = vunpack.c.l.b16 %v449
        %v1463 = vunpack.c.h.b16 %v449
        %v1464 = vunpack.c.l.b16 %v450
        %v1465 = vunpack.c.h.b16 %v450
        %v1466 = vunpack.c.l.b16 %v451
        %v1467 = vunpack.c.h.b16 %v451
        %v1468 = vunpack.c.l.b16 %v452
        %v1469 = vunpack.c.h.b16 %v452
        %v1470 = vunpack.c.l.b16 %v453
        %v1471 = vunpack.c.h.b16 %v453
        %v1472 = vunpack.c.l.b16 %v454
        %v1473 = vunpack.c.h.b16 %v454
        %v1474 = vunpack.c.l.b16 %v455
        %v1475 = vunpack.c.h.b16 %v455
        %v1476 = vunpack.c.l.b16 %v456
        %v1477 = vunpack.c.h.b16 %v456
        %v1478 = vunpack.c.l.b16 %v457
        %v1479 = vunpack.c.h.b16 %v457
        %v1480 = vunpack.c.l.b16 %v458
        %v1481 = vunpack.c.h.b16 %v458
        %v1482 = vunpack.c.l.b16 %v459
        %v1483 = vunpack.c.h.b16 %v459
        %v1484 = vunpack.c.l.b16 %v460
        %v1485 = vunpack.c.h.b16 %v460
        %v1486 = vunpack.c.l.b16 %v461
        %v1487 = vunpack.c.h.b16 %v461
        %v1488 = vunpack.c.l.b16 %v462
        %v1489 = vunpack.c.h.b16 %v462
        %v1490 = vunpack.c.l.b16 %v463
        %v1491 = vunpack.c.h.b16 %v463
        %v1492 = vunpack.c.l.b16 %v464
        %v1493 = vunpack.c.h.b16 %v464
        %v1494 = vunpack.c.l.b16 %v465
        %v1495 = vunpack.c.h.b16 %v465
        %v1496 = vunpack.c.l.b16 %v466
        %v1497 = vunpack.c.h.b16 %v466
        %v1498 = vunpack.c.l.b16 %v467
        %v1499 = vunpack.c.h.b16 %v467
        %v1500 = vunpack.c.l.b16 %v468
        %v1501 = vunpack.c.h.b16 %v468
        %v1502 = vunpack.c.l.b16 %v469
        %v1503 = vunpack.c.h.b16 %v469
        %v1504 = vunpack.c.l.b16 %v470
        %v1505 = vunpack.c.h.b16 %v470
        %v1506 = vunpack.c.l.b16 %v471
        %v1507 = vunpack.c.h.b16 %v471
        %v1508 = vunpack.c.l.b16 %v472
        %v1509 = vunpack.c.h.b16 %v472
        %v1510 = vunpack.c.l.b16 %v473
        %v1511 = vunpack.c.h.b16 %v473
        %v1512 = vunpack.c.l.b16 %v474
        %v1513 = vunpack.c.h.b16 %v474
        %v1514 = vunpack.c.l.b16 %v475
        %v1515 = vunpack.c.h.b16 %v475
        %v1516 = vunpack.c.l.b16 %v476
        %v1517 = vunpack.c.h.b16 %v476
        %v1518 = vunpack.c.l.b16 %v477
        %v1519 = vunpack.c.h.b16 %v477
        %v1520 = vunpack.c.l.b16 %v478
        %v1521 = vunpack.c.h.b16 %v478
        %v1522 = vunpack.c.l.b16 %v479
        %v1523 = vunpack.c.h.b16 %v479
        %v1524 = vunpack.c.l.b16 %v480
        %v1525 = vunpack.c.h.b16 %v480
        %v1526 = vunpack.c.l.b16 %v481
        %v1527 = vunpack.c.h.b16 %v481
        %v1528 = vunpack.c.l.b16 %v482
        %v1529 = vunpack.c.h.b16 %v482
        %v1530 = vunpack.c.l.b16 %v483
        %v1531 = vunpack.c.h.b16 %v483
        %v1532 = vunpack.c.l.b16 %v484
        %v1533 = vunpack.c.h.b16 %v484
        %v1534 = vunpack.c.l.b16 %v485
        %v1535 = vunpack.c.h.b16 %v485
        %v1536 = vunpack.c.l.b16 %v486
        %v1537 = vunpack.c.h.b16 %v486
        %v1538 = vunpack.c.l.b16 %v487
        %v1539 = vunpack.c.h.b16 %v487
        %v1540 = vunpack.c.l.b16 %v488
        %v1541 = vunpack.c.h.b16 %v488
        %v1542 = vunpack.c.l.b16 %v489
        %v1543 = vunpack.c.h.b16 %v489
        %v1544 = vunpack.c.l.b16 %v490
        %v1545 = vunpack.c.h.b16 %v490
        %v1546 = vunpack.c.l.b16 %v491
        %v1547 = vunpack.c.h.b16 %v491
        %v1548 = vunpack.c.l.b16 %v492
        %v1549 = vunpack.c.h.b16 %v492
        %v1550 = vunpack.c.l.b16 %v493
        %v1551 = vunpack.c.h.b16 %v493
        %v1552 = vunpack.c.l.b16 %v494
        %v1553 = vunpack.c.h.b16 %v494
        %v1554 = vunpack.c.l.b16 %v495
        %v1555 = vunpack.c.h.b16 %v495
        %v1556 = vunpack.c.l.b16 %v496
        %v1557 = vunpack.c.h.b16 %v496
        %v1558 = vunpack.c.l.b16 %v497
        %v1559 = vunpack.c.h.b16 %v497
        %v1560 = vunpack.c.l.b16 %v498
        %v1561 = vunpack.c.h.b16 %v498
        %v1562 = vunpack.c.l.b16 %v499
        %v1563 = vunpack.c.h.b16 %v499
        %v1564 = vunpack.c.l.b16 %v500
        %v1565 = vunpack.c.h.b16 %v500
        %v1566 = vunpack.c.l.b16 %v501
        %v1567 = vunpack.c.h.b16 %v501
        %v1568 = vunpack.c.l.b16 %v502
        %v1569 = vunpack.c.h.b16 %v502
        %v1570 = vunpack.c.l.b16 %v503
        %v1571 = vunpack.c.h.b16 %v503
        %v1572 = vunpack.c.l.b16 %v504
        %v1573 = vunpack.c.h.b16 %v504
        %v1574 = vunpack.c.l.b16 %v505
        %v1575 = vunpack.c.h.b16 %v505
        %v1576 = vunpack.c.l.b16 %v506
        %v1577 = vunpack.c.h.b16 %v506
        %v1578 = vunpack.c.l.b16 %v507
        %v1579 = vunpack.c.h.b16 %v507
        %v1580 = vunpack.c.l.b16 %v508
        %v1581 = vunpack.c.h.b16 %v508
        %v1582 = vunpack.c.l.b16 %v509
        %v1583 = vunpack.c.h.b16 %v509
        %v1584 = vunpack.c.l.b16 %v510
        %v1585 = vunpack.c.h.b16 %v510
        %v1586 = vunpack.c.l.b16 %v511
        %v1587 = vunpack.c.h.b16 %v511
        %v1588 = vunpack.c.l.b16 %v512
        %v1589 = vunpack.c.h.b16 %v512
        %v1590 = vunpack.c.l.b16 %v513
        %v1591 = vunpack.c.h.b16 %v513
        %v1592 = vunpack.c.l.b16 %v514
        %v1593 = vunpack.c.h.b16 %v514
        %v1594 = vunpack.c.l.b16 %v515
        %v1595 = vunpack.c.h.b16 %v515
        %v1596 = vunpack.c.l.b16 %v516
        %v1597 = vunpack.c.h.b16 %v516
        %v1598 = vunpack.c.l.b16 %v517
        %v1599 = vunpack.c.h.b16 %v517
        %v1600 = vunpack.c.l.b16 %v518
        %v1601 = vunpack.c.h.b16 %v518
        %v1602 = vunpack.c.l.b16 %v519
        %v1603 = vunpack.c.h.b16 %v519
        %v1604 = vunpack.c.l.b16 %v520
        %v1605 = vunpack.c.h.b16 %v520
        %v1606 = vunpack.c.l.b16 %v521
        %v1607 = vunpack.c.h.b16 %v521
        %v1608 = vunpack.c.l.b16 %v522
        %v1609 = vunpack.c.h.b16 %v522
        %v1610 = vunpack.c.l.b16 %v523
        %v1611 = vunpack.c.h.b16 %v523
        %v1612 = vunpack.c.l.b16 %v524
        %v1613 = vunpack.c.h.b16 %v524
        %v1614 = vunpack.c.l.b16 %v525
        %v1615 = vunpack.c.h.b16 %v525
        %v1616 = vunpack.c.l.b16 %v526
        %v1617 = vunpack.c.h.b16 %v526
        %v1618 = vunpack.c.l.b16 %v527
        %v1619 = vunpack.c.h.b16 %v527
        %v1620 = vunpack.c.l.b16 %v528
        %v1621 = vunpack.c.h.b16 %v528
        %v1622 = vunpack.c.l.b16 %v529
        %v1623 = vunpack.c.h.b16 %v529
        %v1624 = vunpack.c.l.b16 %v530
        %v1625 = vunpack.c.h.b16 %v530
        %v1626 = vunpack.c.l.b16 %v531
        %v1627 = vunpack.c.h.b16 %v531
        %v1628 = vunpack.c.l.b16 %v532
        %v1629 = vunpack.c.h.b16 %v532
        %v1630 = vunpack.c.l.b16 %v533
        %v1631 = vunpack.c.h.b16 %v533
        %v1632 = vunpack.c.l.b16 %v534
        %v1633 = vunpack.c.h.b16 %v534
        %v1634 = vunpack.c.l.b16 %v535
        %v1635 = vunpack.c.h.b16 %v535
        %v1636 = vunpack.c.l.b16 %v536
        %v1637 = vunpack.c.h.b16 %v536
        %v1638 = vunpack.c.l.b16 %v537
        %v1639 = vunpack.c.h.b16 %v537
        %v1640 = vunpack.c.l.b16 %v538
        %v1641 = vunpack.c.h.b16 %v538
        %v1642 = vunpack.c.l.b16 %v539
        %v1643 = vunpack.c.h.b16 %v539
        %v1644 = vunpack.c.l.b16 %v540
        %v1645 = vunpack.c.h.b16 %v540
        %v1646 = vunpack.c.l.b16 %v541
        %v1647 = vunpack.c.h.b16 %v541
        %v1648 = vunpack.c.l.b16 %v542
        %v1649 = vunpack.c.h.b16 %v542
        %v1650 = vunpack.c.l.b16 %v543
        %v1651 = vunpack.c.h.b16 %v543
        %v1652 = vunpack.c.l.b16 %v544
        %v1653 = vunpack.c.h.b16 %v544
        %v1654 = vunpack.c.l.b16 %v545
        %v1655 = vunpack.c.h.b16 %v545
        %v1656 = vunpack.c.l.b16 %v546
        %v1657 = vunpack.c.h.b16 %v546
        %v1658 = vunpack.c.l.b16 %v547
        %v1659 = vunpack.c.h.b16 %v547
        %v1660 = vunpack.c.l.b16 %v548
        %v1661 = vunpack.c.h.b16 %v548
        %v1662 = vunpack.c.l.b16 %v549
        %v1663 = vunpack.c.h.b16 %v549
        %v1664 = vunpack.c.l.b16 %v550
        %v1665 = vunpack.c.h.b16 %v550
        %v1666 = vunpack.c.l.b16 %v551
        %v1667 = vunpack.c.h.b16 %v551
        %v1668 = vunpack.c.l.b16 %v552
        %v1669 = vunpack.c.h.b16 %v552
        %v1670 = vunpack.c.l.b16 %v553
        %v1671 = vunpack.c.h.b16 %v553
        %v1672 = vunpack.c.l.b16 %v554
        %v1673 = vunpack.c.h.b16 %v554
        %v1674 = vunpack.c.l.b16 %v555
        %v1675 = vunpack.c.h.b16 %v555
        %v1676 = vunpack.c.l.b16 %v556
        %v1677 = vunpack.c.h.b16 %v556
        %v1678 = vunpack.c.l.b16 %v557
        %v1679 = vunpack.c.h.b16 %v557
        %v1680 = vunpack.c.l.b16 %v558
        %v1681 = vunpack.c.h.b16 %v558
        %v1682 = vunpack.c.l.b16 %v559
        %v1683 = vunpack.c.h.b16 %v559
        %v1684 = vunpack.c.l.b16 %v560
        %v1685 = vunpack.c.h.b16 %v560
        %v1686 = vunpack.c.l.b16 %v561
        %v1687 = vunpack.c.h.b16 %v561
        %v1688 = vunpack.c.l.b16 %v562
        %v1689 = vunpack.c.h.b16 %v562
        %v1690 = vunpack.c.l.b16 %v563
        %v1691 = vunpack.c.h.b16 %v563
        %v1692 = vunpack.c.l.b16 %v564
        %v1693 = vunpack.c.h.b16 %v564
        %v1694 = vunpack.c.l.b16 %v565
        %v1695 = vunpack.c.h.b16 %v565
        %v1696 = vunpack.c.l.b16 %v566
        %v1697 = vunpack.c.h.b16 %v566
        %v1698 = vunpack.c.l.b16 %v567
        %v1699 = vunpack.c.h.b16 %v567
        %v1700 = vunpack.c.l.b16 %v568
        %v1701 = vunpack.c.h.b16 %v568
        %v1702 = vunpack.c.l.b16 %v569
        %v1703 = vunpack.c.h.b16 %v569
        %v1704 = vunpack.c.l.b16 %v570
        %v1705 = vunpack.c.h.b16 %v570
        %v1706 = vunpack.c.l.b16 %v571
        %v1707 = vunpack.c.h.b16 %v571
        %v1708 = vunpack.c.l.b16 %v572
        %v1709 = vunpack.c.h.b16 %v572
        %v1710 = vunpack.c.l.b16 %v573
        %v1711 = vunpack.c.h.b16 %v573
        %v1712 = vunpack.c.l.b16 %v574
        %v1713 = vunpack.c.h.b16 %v574
        %v1714 = vunpack.c.l.b16 %v575
        %v1715 = vunpack.c.h.b16 %v575
        %v1716 = vunpack.c.l.b16 %v576
        %v1717 = vunpack.c.h.b16 %v576
        %v1718 = vunpack.c.l.b16 %v577
        %v1719 = vunpack.c.h.b16 %v577
        %v1720 = vunpack.c.l.b16 %v578
        %v1721 = vunpack.c.h.b16 %v578
        %v1722 = vunpack.c.l.b16 %v579
        %v1723 = vunpack.c.h.b16 %v579
        %v1724 = vunpack.c.l.b16 %v580
        %v1725 = vunpack.c.h.b16 %v580
        %v1726 = vunpack.c.l.b16 %v581
        %v1727 = vunpack.c.h.b16 %v581
        %v1728 = vunpack.c.l.b16 %v582
        %v1729 = vunpack.c.h.b16 %v582
        %v1730 = vunpack.c.l.b16 %v583
        %v1731 = vunpack.c.h.b16 %v583
        %v1732 = vunpack.c.l.b16 %v584
        %v1733 = vunpack.c.h.b16 %v584
        %v1734 = vunpack.c.l.b16 %v585
        %v1735 = vunpack.c.h.b16 %v585
        %v1736 = vunpack.c.l.b16 %v586
        %v1737 = vunpack.c.h.b16 %v586
        %v1738 = vunpack.c.l.b16 %v587
        %v1739 = vunpack.c.h.b16 %v587
        %v1740 = vunpack.c.l.b16 %v588
        %v1741 = vunpack.c.h.b16 %v588
        %v1742 = vunpack.c.l.b16 %v589
        %v1743 = vunpack.c.h.b16 %v589
        %v1744 = vunpack.c.l.b16 %v590
        %v1745 = vunpack.c.h.b16 %v590
        %v1746 = vunpack.c.l.b16 %v591
        %v1747 = vunpack.c.h.b16 %v591
        %v1748 = vunpack.c.l.b16 %v592
        %v1749 = vunpack.c.h.b16 %v592
        %v1750 = vunpack.c.l.b16 %v593
        %v1751 = vunpack.c.h.b16 %v593
        %v1752 = vunpack.c.l.b16 %v594
        %v1753 = vunpack.c.h.b16 %v594
        %v1754 = vunpack.c.l.b16 %v595
        %v1755 = vunpack.c.h.b16 %v595
        %v1756 = vunpack.c.l.b16 %v596
        %v1757 = vunpack.c.h.b16 %v596
        %v1758 = vunpack.c.l.b16 %v597
        %v1759 = vunpack.c.h.b16 %v597
        %v1760 = vunpack.c.l.b16 %v598
        %v1761 = vunpack.c.h.b16 %v598
        %v1762 = vunpack.c.l.b16 %v599
        %v1763 = vunpack.c.h.b16 %v599
        %v1764 = vunpack.c.l.b16 %v600
        %v1765 = vunpack.c.h.b16 %v600
        %v1766 = vunpack.c.l.b16 %v601
        %v1767 = vunpack.c.h.b16 %v601
        %v1768 = vunpack.c.l.b16 %v602
        %v1769 = vunpack.c.h.b16 %v602
        %v1770 = vunpack.c.l.b16 %v603
        %v1771 = vunpack.c.h.b16 %v603
        %v1772 = vunpack.c.l.b16 %v604
        %v1773 = vunpack.c.h.b16 %v604
        %v1774 = vunpack.c.l.b16 %v605
        %v1775 = vunpack.c.h.b16 %v605
        %v1776 = vpack.c.b16 %v1388, %v1384
        %v1777 = vpack.c.b16 %v1389, %v1385
        %v1778 = vpack.c.b16 %v1390, %v1386
        %v1779 = vpack.c.b16 %v1391, %v1387
        %v1780 = vpack.c.b16 %v1396, %v1392
        %v1781 = vpack.c.b16 %v1397, %v1393
        %v1782 = vpack.c.b16 %v1398, %v1394
        %v1783 = vpack.c.b16 %v1399, %v1395
        %v1784 = vpack.c.b16 %v1404, %v1400
        %v1785 = vpack.c.b16 %v1405, %v1401
        %v1786 = vpack.c.b16 %v1406, %v1402
        %v1787 = vpack.c.b16 %v1407, %v1403
        %v1788 = vpack.c.b16 %v1412, %v1408
        %v1789 = vpack.c.b16 %v1413, %v1409
        %v1790 = vpack.c.b16 %v1414, %v1410
        %v1791 = vpack.c.b16 %v1415, %v1411
        %v1792 = vpack.c.b16 %v1420, %v1416
        %v1793 = vpack.c.b16 %v1421, %v1417
        %v1794 = vpack.c.b16 %v1422, %v1418
        %v1795 = vpack.c.b16 %v1423, %v1419
        %v1796 = vpack.c.b16 %v1428, %v1424
        %v1797 = vpack.c.b16 %v1429, %v1425
        %v1798 = vpack.c.b16 %v1430, %v1426
        %v1799 = vpack.c.b16 %v1431, %v1427
        %v1800 = vpack.c.b16 %v1436, %v1432
        %v1801 = vpack.c.b16 %v1437, %v1433
        %v1802 = vpack.c.b16 %v1438, %v1434
        %v1803 = vpack.c.b16 %v1439, %v1435
        %v1804 = vpack.c.b16 %v1444, %v1440
        %v1805 = vpack.c.b16 %v1445, %v1441
        %v1806 = vpack.c.b16 %v1446, %v1442
        %v1807 = vpack.c.b16 %v1447, %v1443
        %v1808 = vpack.c.b16 %v1452, %v1448
        %v1809 = vpack.c.b16 %v1453, %v1449
        %v1810 = vpack.c.b16 %v1454, %v1450
        %v1811 = vpack.c.b16 %v1455, %v1451
        %v1812 = vpack.c.b16 %v1460, %v1456
        %v1813 = vpack.c.b16 %v1461, %v1457
        %v1814 = vpack.c.b16 %v1462, %v1458
        %v1815 = vpack.c.b16 %v1463, %v1459
        %v1816 = vpack.c.b16 %v1468, %v1464
        %v1817 = vpack.c.b16 %v1469, %v1465
        %v1818 = vpack.c.b16 %v1470, %v1466
        %v1819 = vpack.c.b16 %v1471, %v1467
        %v1820 = vpack.c.b16 %v1476, %v1472
        %v1821 = vpack.c.b16 %v1477, %v1473
        %v1822 = vpack.c.b16 %v1478, %v1474
        %v1823 = vpack.c.b16 %v1479, %v1475
        %v1824 = vpack.c.b16 %v1484, %v1480
        %v1825 = vpack.c.b16 %v1485, %v1481
        %v1826 = vpack.c.b16 %v1486, %v1482
        %v1827 = vpack.c.b16 %v1487, %v1483
        %v1828 = vpack.c.b16 %v1492, %v1488
        %v1829 = vpack.c.b16 %v1493, %v1489
        %v1830 = vpack.c.b16 %v1494, %v1490
        %v1831 = vpack.c.b16 %v1495, %v1491
        %v1832 = vpack.c.b16 %v1500, %v1496
        %v1833 = vpack.c.b16 %v1501, %v1497
        %v1834 = vpack.c.b16 %v1502, %v1498
        %v1835 = vpack.c.b16 %v1503, %v1499
        %v1836 = vpack.c.b16 %v1508, %v1504
        %v1837 = vpack.c.b16 %v1509, %v1505
        %v1838 = vpack.c.b16 %v1510, %v1506
        %v1839 = vpack.c.b16 %v1511, %v1507
        %v1840 = vpack.c.b16 %v1516, %v1512
        %v1841 = vpack.c.b16 %v1517, %v1513
        %v1842 = vpack.c.b16 %v1518, %v1514
        %v1843 = vpack.c.b16 %v1519, %v1515
        %v1844 = vpack.c.b16 %v1524, %v1520
        %v1845 = vpack.c.b16 %v1525, %v1521
        %v1846 = vpack.c.b16 %v1526, %v1522
        %v1847 = vpack.c.b16 %v1527, %v1523
        %v1848 = vpack.c.b16 %v1532, %v1528
        %v1849 = vpack.c.b16 %v1533, %v1529
        %v1850 = vpack.c.b16 %v1534, %v1530
        %v1851 = vpack.c.b16 %v1535, %v1531
        %v1852 = vpack.c.b16 %v1540, %v1536
        %v1853 = vpack.c.b16 %v1541, %v1537
        %v1854 = vpack.c.b16 %v1542, %v1538
        %v1855 = vpack.c.b16 %v1543, %v1539
        %v1856 = vpack.c.b16 %v1548, %v1544
        %v1857 = vpack.c.b16 %v1549, %v1545
        %v1858 = vpack.c.b16 %v1550, %v1546
        %v1859 = vpack.c.b16 %v1551, %v1547
        %v1860 = vpack.c.b16 %v1556, %v1552
        %v1861 = vpack.c.b16 %v1557, %v1553
        %v1862 = vpack.c.b16 %v1558, %v1554
        %v1863 = vpack.c.b16 %v1559, %v1555
        %v1864 = vpack.c.b16 %v1564, %v1560
        %v1865 = vpack.c.b16 %v1565, %v1561
        %v1866 = vpack.c.b16 %v1566, %v1562
        %v1867 = vpack.c.b16 %v1567, %v1563
        %v1868 = vpack.c.b16 %v1572, %v1568
        %v1869 = vpack.c.b16 %v1573, %v1569
        %v1870 = vpack.c.b16 %v1574, %v1570
        %v1871 = vpack.c.b16 %v1575, %v1571
        %v1872 = vpack.c.b16 %v1580, %v1576
        %v1873 = vpack.c.b16 %v1581, %v1577
        %v1874 = vpack.c.b16 %v1582, %v1578
        %v1875 = vpack.c.b16 %v1583, %v1579
        %v1876 = vpack.c.b16 %v1588, %v1584
        %v1877 = vpack.c.b16 %v1589, %v1585
        %v1878 = vpack.c.b16 %v1590, %v1586
        %v1879 = vpack.c.b16 %v1591, %v1587
        %v1880 = vpack.c.b16 %v1596, %v1592
        %v1881 = vpack.c.b16 %v1597, %v1593
        %v1882 = vpack.c.b16 %v1598, %v1594
        %v1883 = vpack.c.b16 %v1599, %v1595
        %v1884 = vpack.c.b16 %v1604, %v1600
        %v1885 = vpack.c.b16 %v1605, %v1601
        %v1886 = vpack.c.b16 %v1606, %v1602
        %v1887 = vpack.c.b16 %v1607, %v1603
        %v1888 = vpack.c.b16 %v1612, %v1608
        %v1889 = vpack.c.b16 %v1613, %v1609
        %v1890 = vpack.c.b16 %v1614, %v1610
        %v1891 = vpack.c.b16 %v1615, %v1611
        %v1892 = vpack.c.b16 %v1620, %v1616
        %v1893 = vpack.c.b16 %v1621, %v1617
        %v1894 = vpack.c.b16 %v1622, %v1618
        %v1895 = vpack.c.b16 %v1623, %v1619
        %v1896 = vpack.c.b16 %v1628, %v1624
        %v1897 = vpack.c.b16 %v1629, %v1625
        %v1898 = vpack.c.b16 %v1630, %v1626
        %v1899 = vpack.c.b16 %v1631, %v1627
        %v1900 = vpack.c.b16 %v1636, %v1632
        %v1901 = vpack.c.b16 %v1637, %v1633
        %v1902 = vpack.c.b16 %v1638, %v1634
        %v1903 = vpack.c.b16 %v1639, %v1635
        %v1904 = vpack.c.b16 %v1644, %v1640
        %v1905 = vpack.c.b16 %v1645, %v1641
        %v1906 = vpack.c.b16 %v1646, %v1642
        %v1907 = vpack.c.b16 %v1647, %v1643
        %v1908 = vpack.c.b16 %v1652, %v1648
        %v1909 = vpack.c.b16 %v1653, %v1649
        %v1910 = vpack.c.b16 %v1654, %v1650
        %v1911 = vpack.c.b16 %v1655, %v1651
        %v1912 = vpack.c.b16 %v1660, %v1656
        %v1913 = vpack.c.b16 %v1661, %v1657
        %v1914 = vpack.c.b16 %v1662, %v1658
        %v1915 = vpack.c.b16 %v1663, %v1659
        %v1916 = vpack.c.b16 %v1668, %v1664
        %v1917 = vpack.c.b16 %v1669, %v1665
        %v1918 = vpack.c.b16 %v1670, %v1666
        %v1919 = vpack.c.b16 %v1671, %v1667
        %v1920 = vpack.c.b16 %v1676, %v1672
        %v1921 = vpack.c.b16 %v1677, %v1673
        %v1922 = vpack.c.b16 %v1678, %v1674
        %v1923 = vpack.c.b16 %v1679, %v1675
        %v1924 = vpack.c.b16 %v1684, %v1680
        %v1925 = vpack.c.b16 %v1685, %v1681
        %v1926 = vpack.c.b16 %v1686, %v1682
        %v1927 = vpack.c.b16 %v1687, %v1683
        %v1928 = vpack.c.b16 %v1692, %v1688
        %v1929 = vpack.c.b16 %v1693, %v1689
        %v1930 = vpack.c.b16 %v1694, %v1690
        %v1931 = vpack.c.b16 %v1695, %v1691
        %v1932 = vpack.c.b16 %v1700, %v1696
        %v1933 = vpack.c.b16 %v1701, %v1697
        %v1934 = vpack.c.b16 %v1702, %v1698
        %v1935 = vpack.c.b16 %v1703, %v1699
        %v1936 = vpack.c.b16 %v1708, %v1704
        %v1937 = vpack.c.b16 %v1709, %v1705
        %v1938 = vpack.c.b16 %v1710, %v1706
        %v1939 = vpack.c.b16 %v1711, %v1707
        %v1940 = vpack.c.b16 %v1716, %v1712
        %v1941 = vpack.c.b16 %v1717, %v1713
        %v1942 = vpack.c.b16 %v1718, %v1714
        %v1943 = vpack.c.b16 %v1719, %v1715
        %v1944 = vpack.c.b16 %v1724, %v1720
        %v1945 = vpack.c.b16 %v1725, %v1721
        %v1946 = vpack.c.b16 %v1726, %v1722
        %v1947 = vpack.c.b16 %v1727, %v1723
        %v1948 = vpack.c.b16 %v1732, %v1728
        %v1949 = vpack.c.b16 %v1733, %v1729
        %v1950 = vpack.c.b16 %v1734, %v1730
        %v1951 = vpack.c.b16 %v1735, %v1731
        %v1952 = vpack.c.b16 %v1740, %v1736
        %v1953 = vpack.c.b16 %v1741, %v1737
        %v1954 = vpack.c.b16 %v1742, %v1738
        %v1955 = vpack.c.b16 %v1743, %v1739
        %v1956 = vpack.c.b16 %v1748, %v1744
        %v1957 = vpack.c.b16 %v1749, %v1745
        %v1958 = vpack.c.b16 %v1750, %v1746
        %v1959 = vpack.c.b16 %v1751, %v1747
        %v1960 = vpack.c.b16 %v1756, %v1752
        %v1961 = vpack.c.b16 %v1757, %v1753
        %v1962 = vpack.c.b16 %v1758, %v1754
        %v1963 = vpack.c.b16 %v1759, %v1755
        %v1964 = vpack.c.b16 %v1764, %v1760
        %v1965 = vpack.c.b16 %v1765, %v1761
        %v1966 = vpack.c.b16 %v1766, %v1762
        %v1967 = vpack.c.b16 %v1767, %v1763
        %v1968 = vpack.c.b16 %v1772, %v1768
        %v1969 = vpack.c.b16 %v1773, %v1769
        %v1970 = vpack.c.b16 %v1774, %v1770
        %v1971 = vpack.c.b16 %v1775, %v1771
        %vm2168 = vcmask 130048
        %v2170 = vsel %vm2168, %v986, 0
        %v2173 = vsel %vm2168, %v993, 0
        %v2176 = vsel %vm2168, %v1000, 0
        %v2179 = vsel %vm2168, %v1007, 0
        %v2182 = vsel %vm2168, %v1014, 0
        %v2185 = vsel %vm2168, %v1021, 0
        %v2188 = vsel %vm2168, %v1028, 0
        %v2191 = vsel %vm2168, %v1035, 0
        %v2194 = vsel %vm2168, %v1042, 0
        %v2197 = vsel %vm2168, %v1049, 0
        %v2200 = vsel %vm2168, %v1056, 0
        %v2203 = vsel %vm2168, %v1063, 0
        %v2206 = vsel %vm2168, %v1070, 0
        %v2209 = vsel %vm2168, %v1077, 0
        %v2212 = vsel %vm2168, %v1084, 0
        %v2215 = vsel %vm2168, %v1091, 0
        %2217 = vmatprep.subr.bf16.mxu0 %v1777
        %2218 = vmatpush1.bf16.msra.mxu0 %v1776
        %2219 = vmatprep.subr.bf16.mxu0 %v1781
        %2220 = vmatpush1.bf16.msra.mxu0 %v1780
        %2221 = vmatprep.subr.bf16.mxu0 %v1785
        %2222 = vmatpush1.bf16.msra.mxu0 %v1784
        %2223 = vmatprep.subr.bf16.mxu0 %v1789
        %2224 = vmatpush1.bf16.msra.mxu0 %v1788
        %2225 = vmatprep.subr.bf16.mxu0 %v1793
        %2226 = vmatpush1.bf16.msra.mxu0 %v1792
        %2227 = vmatprep.subr.bf16.mxu0 %v1797
        %2228 = vmatpush1.bf16.msra.mxu0 %v1796
        %2229 = vmatprep.subr.bf16.mxu0 %v1801
        %2230 = vmatpush1.bf16.msra.mxu0 %v1800
        %2231 = vmatprep.subr.bf16.mxu0 %v1805
        %2232 = vmatpush1.bf16.msra.mxu0 %v1804
        %2233 = vmatprep.subr.bf16.mxu0 %v1809
        %2234 = vmatpush1.bf16.msra.mxu0 %v1808
        %2235 = vmatprep.subr.bf16.mxu0 %v1813
        %2236 = vmatpush1.bf16.msra.mxu0 %v1812
        %2237 = vmatprep.subr.bf16.mxu0 %v1817
        %2238 = vmatpush1.bf16.msra.mxu0 %v1816
        %2239 = vmatprep.subr.bf16.mxu0 %v1821
        %2240 = vmatpush1.bf16.msra.mxu0 %v1820
        %2241 = vmatprep.subr.bf16.mxu0 %v1825
        %2242 = vmatpush1.bf16.msra.mxu0 %v1824
        %2243 = vmatprep.subr.bf16.mxu0 %v1829
        %2244 = vmatpush1.bf16.msra.mxu0 %v1828
        %2245 = vmatprep.subr.bf16.mxu0 %v1833
        %2246 = vmatpush1.bf16.msra.mxu0 %v1832
        %2247 = vmatprep.subr.bf16.mxu0 %v1837
        %2248 = vmatpush1.bf16.msra.mxu0 %v1836
        %2249 = vmatprep.mubr.bf16.mxu0 %v981
        %2250 = vmatmul.mubr.bf16.gmra.mrb[0].mxu0 %v980
        %v2251 = vpop.f32.mrb[0].mxu0
        %v2252 = vadd.f32 %v611, %v2251
        %v2253 = vpop.f32.mrb[0].mxu0
        %v2254 = vadd.f32 %v615, %v2253
        %v2255 = vpop.f32.mrb[0].mxu0
        %v2256 = vadd.f32 %v611, %v2255
        %v2257 = vpop.f32.mrb[0].mxu0
        %v2258 = vadd.f32 %v615, %v2257
        %2259 = vmatprep.mubr.bf16.mxu0 %v988
        %2260 = vmatmul.mubr.bf16.gmra.mrb[0].mxu0 %v987
        %v2261 = vpop.f32.mrb[0].mxu0
        %v2262 = vadd.f32 %v611, %v2261
        %v2263 = vpop.f32.mrb[0].mxu0
        %v2264 = vadd.f32 %v615, %v2263
        %v2265 = vpop.f32.mrb[0].mxu0
        %v2266 = vadd.f32 %v611, %v2265
        %v2267 = vpop.f32.mrb[0].mxu0
        %v2268 = vadd.f32 %v615, %v2267
        %2269 = vmatprep.mubr.bf16.mxu0 %v995
        %2270 = vmatmul.mubr.bf16.gmra.mrb[0].mxu0 %v994
        %v2271 = vpop.f32.mrb[0].mxu0
        %v2272 = vadd.f32 %v611, %v2271
        %v2273 = vpop.f32.mrb[0].mxu0
        %v2274 = vadd.f32 %v615, %v2273
        %v2275 = vpop.f32.mrb[0].mxu0
        %v2276 = vadd.f32 %v611, %v2275
        %v2277 = vpop.f32.mrb[0].mxu0
        %v2278 = vadd.f32 %v615, %v2277
        %2279 = vmatprep.mubr.bf16.mxu0 %v1002
        %2280 = vmatmul.mubr.bf16.gmra.mrb[0].mxu0 %v1001
        %v2281 = vpop.f32.mrb[0].mxu0
        %v2282 = vadd.f32 %v611, %v2281
        %v2283 = vpop.f32.mrb[0].mxu0
        %v2284 = vadd.f32 %v615, %v2283
        %v2285 = vpop.f32.mrb[0].mxu0
        %v2286 = vadd.f32 %v611, %v2285
        %v2287 = vpop.f32.mrb[0].mxu0
        %v2288 = vadd.f32 %v615, %v2287
        %2289 = vmatprep.mubr.bf16.mxu0 %v1009
        %2290 = vmatmul.mubr.bf16.gmra.mrb[0].mxu0 %v1008
        %v2291 = vpop.f32.mrb[0].mxu0
        %v2292 = vadd.f32 %v611, %v2291
        %v2293 = vpop.f32.mrb[0].mxu0
        %v2294 = vadd.f32 %v615, %v2293
        %v2295 = vpop.f32.mrb[0].mxu0
        %v2296 = vadd.f32 %v611, %v2295
        %v2297 = vpop.f32.mrb[0].mxu0
        %v2298 = vadd.f32 %v615, %v2297
        %2299 = vmatprep.mubr.bf16.mxu0 %v1016
        %2300 = vmatmul.mubr.bf16.gmra.mrb[0].mxu0 %v1015
        %v2301 = vpop.f32.mrb[0].mxu0
        %v2302 = vadd.f32 %v611, %v2301
        %v2303 = vpop.f32.mrb[0].mxu0
        %v2304 = vadd.f32 %v615, %v2303
        %v2305 = vpop.f32.mrb[0].mxu0
        %v2306 = vadd.f32 %v611, %v2305
        %v2307 = vpop.f32.mrb[0].mxu0
        %v2308 = vadd.f32 %v615, %v2307
        %2309 = vmatprep.mubr.bf16.mxu0 %v1023
        %2310 = vmatmul.mubr.bf16.gmra.mrb[0].mxu0 %v1022
        %v2311 = vpop.f32.mrb[0].mxu0
        %v2312 = vadd.f32 %v611, %v2311
        %v2313 = vpop.f32.mrb[0].mxu0
        %v2314 = vadd.f32 %v615, %v2313
        %v2315 = vpop.f32.mrb[0].mxu0
        %v2316 = vadd.f32 %v611, %v2315
        %v2317 = vpop.f32.mrb[0].mxu0
        %v2318 = vadd.f32 %v615, %v2317
        %2319 = vmatprep.mubr.bf16.mxu0 %v1030
        %2320 = vmatmul.mubr.bf16.gmra.mrb[0].mxu0 %v1029
        %v2321 = vpop.f32.mrb[0].mxu0
        %v2322 = vadd.f32 %v611, %v2321
        %v2323 = vpop.f32.mrb[0].mxu0
        %v2324 = vadd.f32 %v615, %v2323
        %v2325 = vpop.f32.mrb[0].mxu0
        %v2326 = vadd.f32 %v611, %v2325
        %v2327 = vpop.f32.mrb[0].mxu0
        %v2328 = vadd.f32 %v615, %v2327
        %2329 = vmatprep.mubr.bf16.mxu0 %v1037
        %2330 = vmatmul.mubr.bf16.gmra.mrb[0].mxu0 %v1036
        %v2331 = vpop.f32.mrb[0].mxu0
        %v2332 = vadd.f32 %v611, %v2331
        %v2333 = vpop.f32.mrb[0].mxu0
        %v2334 = vadd.f32 %v615, %v2333
        %v2335 = vpop.f32.mrb[0].mxu0
        %v2336 = vadd.f32 %v611, %v2335
        %v2337 = vpop.f32.mrb[0].mxu0
        %v2338 = vadd.f32 %v615, %v2337
        %2339 = vmatprep.mubr.bf16.mxu0 %v1044
        %2340 = vmatmul.mubr.bf16.gmra.mrb[0].mxu0 %v1043
        %v2341 = vpop.f32.mrb[0].mxu0
        %v2342 = vadd.f32 %v611, %v2341
        %v2343 = vpop.f32.mrb[0].mxu0
        %v2344 = vadd.f32 %v615, %v2343
        %v2345 = vpop.f32.mrb[0].mxu0
        %v2346 = vadd.f32 %v611, %v2345
        %v2347 = vpop.f32.mrb[0].mxu0
        %v2348 = vadd.f32 %v615, %v2347
        %2349 = vmatprep.mubr.bf16.mxu0 %v1051
        %2350 = vmatmul.mubr.bf16.gmra.mrb[0].mxu0 %v1050
        %v2351 = vpop.f32.mrb[0].mxu0
        %v2352 = vadd.f32 %v611, %v2351
        %v2353 = vpop.f32.mrb[0].mxu0
        %v2354 = vadd.f32 %v615, %v2353
        %v2355 = vpop.f32.mrb[0].mxu0
        %v2356 = vadd.f32 %v611, %v2355
        %v2357 = vpop.f32.mrb[0].mxu0
        %v2358 = vadd.f32 %v615, %v2357
        %2359 = vmatprep.mubr.bf16.mxu0 %v1058
        %2360 = vmatmul.mubr.bf16.gmra.mrb[0].mxu0 %v1057
        %v2361 = vpop.f32.mrb[0].mxu0
        %v2362 = vadd.f32 %v611, %v2361
        %v2363 = vpop.f32.mrb[0].mxu0
        %v2364 = vadd.f32 %v615, %v2363
        %v2365 = vpop.f32.mrb[0].mxu0
        %v2366 = vadd.f32 %v611, %v2365
        %v2367 = vpop.f32.mrb[0].mxu0
        %v2368 = vadd.f32 %v615, %v2367
        %2369 = vmatprep.mubr.bf16.mxu0 %v1065
        %2370 = vmatmul.mubr.bf16.gmra.mrb[0].mxu0 %v1064
        %v2371 = vpop.f32.mrb[0].mxu0
        %v2372 = vadd.f32 %v611, %v2371
        %v2373 = vpop.f32.mrb[0].mxu0
        %v2374 = vadd.f32 %v615, %v2373
        %v2375 = vpop.f32.mrb[0].mxu0
        %v2376 = vadd.f32 %v611, %v2375
        %v2377 = vpop.f32.mrb[0].mxu0
        %v2378 = vadd.f32 %v615, %v2377
        %2379 = vmatprep.mubr.bf16.mxu0 %v1072
        %2380 = vmatmul.mubr.bf16.gmra.mrb[0].mxu0 %v1071
        %v2381 = vpop.f32.mrb[0].mxu0
        %v2382 = vadd.f32 %v611, %v2381
        %v2383 = vpop.f32.mrb[0].mxu0
        %v2384 = vadd.f32 %v615, %v2383
        %v2385 = vpop.f32.mrb[0].mxu0
        %v2386 = vadd.f32 %v611, %v2385
        %v2387 = vpop.f32.mrb[0].mxu0
        %v2388 = vadd.f32 %v615, %v2387
        %2389 = vmatprep.mubr.bf16.mxu0 %v1079
        %2390 = vmatmul.mubr.bf16.gmra.mrb[0].mxu0 %v1078
        %v2391 = vpop.f32.mrb[0].mxu0
        %v2392 = vadd.f32 %v611, %v2391
        %v2393 = vpop.f32.mrb[0].mxu0
        %v2394 = vadd.f32 %v615, %v2393
        %v2395 = vpop.f32.mrb[0].mxu0
        %v2396 = vadd.f32 %v611, %v2395
        %v2397 = vpop.f32.mrb[0].mxu0
        %v2398 = vadd.f32 %v615, %v2397
        %2399 = vmatprep.mubr.bf16.mxu0 %v1086
        %2400 = vmatmul.mubr.bf16.gmra.mrb[0].mxu0 %v1085
        %v2401 = vpop.f32.mrb[0].mxu0
        %v2402 = vadd.f32 %v611, %v2401
        %v2403 = vpop.f32.mrb[0].mxu0
        %v2404 = vadd.f32 %v615, %v2403
        %v2405 = vpop.f32.mrb[0].mxu0
        %v2406 = vadd.f32 %v611, %v2405
        %v2407 = vpop.f32.mrb[0].mxu0
        %v2408 = vadd.f32 %v615, %v2407
        %2409 = vdwg.mxu0
        %2410 = vmatprep.subr.bf16.mxu0 %v1841
        %2411 = vmatpush1.bf16.msra.mxu0 %v1840
        %2412 = vmatprep.subr.bf16.mxu0 %v1845
        %2413 = vmatpush1.bf16.msra.mxu0 %v1844
        %2414 = vmatprep.subr.bf16.mxu0 %v1849
        %2415 = vmatpush1.bf16.msra.mxu0 %v1848
        %2416 = vmatprep.subr.bf16.mxu0 %v1853
        %2417 = vmatpush1.bf16.msra.mxu0 %v1852
        %2418 = vmatprep.subr.bf16.mxu0 %v1857
        %2419 = vmatpush1.bf16.msra.mxu0 %v1856
        %2420 = vmatprep.subr.bf16.mxu0 %v1861
        %2421 = vmatpush1.bf16.msra.mxu0 %v1860
        %2422 = vmatprep.subr.bf16.mxu0 %v1865
        %2423 = vmatpush1.bf16.msra.mxu0 %v1864
        %2424 = vmatprep.subr.bf16.mxu0 %v1869
        %2425 = vmatpush1.bf16.msra.mxu0 %v1868
        %2426 = vmatprep.subr.bf16.mxu0 %v1873
        %2427 = vmatpush1.bf16.msra.mxu0 %v1872
        %2428 = vmatprep.subr.bf16.mxu0 %v1877
        %2429 = vmatpush1.bf16.msra.mxu0 %v1876
        %2430 = vmatprep.subr.bf16.mxu0 %v1881
        %2431 = vmatpush1.bf16.msra.mxu0 %v1880
        %2432 = vmatprep.subr.bf16.mxu0 %v1885
        %2433 = vmatpush1.bf16.msra.mxu0 %v1884
        %2434 = vmatprep.subr.bf16.mxu0 %v1889
        %2435 = vmatpush1.bf16.msra.mxu0 %v1888
        %2436 = vmatprep.subr.bf16.mxu0 %v1893
        %2437 = vmatpush1.bf16.msra.mxu0 %v1892
        %2438 = vmatprep.subr.bf16.mxu0 %v1897
        %2439 = vmatpush1.bf16.msra.mxu0 %v1896
        %2440 = vmatprep.subr.bf16.mxu0 %v1901
        %2441 = vmatpush1.bf16.msra.mxu0 %v1900
        %2442 = vmatprep.mubr.bf16.mxu0 %v983
        %2443 = vmatmul.mubr.bf16.gmra.mrb[0].mxu0 %v982
        %v2444 = vpop.f32.mrb[0].mxu0
        %v2445 = vadd.f32 %v2252, %v2444
        %v2446 = vpop.f32.mrb[0].mxu0
        %v2447 = vadd.f32 %v2254, %v2446
        %v2448 = vpop.f32.mrb[0].mxu0
        %v2449 = vadd.f32 %v2256, %v2448
        %v2450 = vpop.f32.mrb[0].mxu0
        %v2451 = vadd.f32 %v2258, %v2450
        %2452 = vmatprep.mubr.bf16.mxu0 %v990
        %2453 = vmatmul.mubr.bf16.gmra.mrb[0].mxu0 %v989
        %v2454 = vpop.f32.mrb[0].mxu0
        %v2455 = vadd.f32 %v2262, %v2454
        %v2456 = vpop.f32.mrb[0].mxu0
        %v2457 = vadd.f32 %v2264, %v2456
        %v2458 = vpop.f32.mrb[0].mxu0
        %v2459 = vadd.f32 %v2266, %v2458
        %v2460 = vpop.f32.mrb[0].mxu0
        %v2461 = vadd.f32 %v2268, %v2460
        %2462 = vmatprep.mubr.bf16.mxu0 %v997
        %2463 = vmatmul.mubr.bf16.gmra.mrb[0].mxu0 %v996
        %v2464 = vpop.f32.mrb[0].mxu0
        %v2465 = vadd.f32 %v2272, %v2464
        %v2466 = vpop.f32.mrb[0].mxu0
        %v2467 = vadd.f32 %v2274, %v2466
        %v2468 = vpop.f32.mrb[0].mxu0
        %v2469 = vadd.f32 %v2276, %v2468
        %v2470 = vpop.f32.mrb[0].mxu0
        %v2471 = vadd.f32 %v2278, %v2470
        %2472 = vmatprep.mubr.bf16.mxu0 %v1004
        %2473 = vmatmul.mubr.bf16.gmra.mrb[0].mxu0 %v1003
        %v2474 = vpop.f32.mrb[0].mxu0
        %v2475 = vadd.f32 %v2282, %v2474
        %v2476 = vpop.f32.mrb[0].mxu0
        %v2477 = vadd.f32 %v2284, %v2476
        %v2478 = vpop.f32.mrb[0].mxu0
        %v2479 = vadd.f32 %v2286, %v2478
        %v2480 = vpop.f32.mrb[0].mxu0
        %v2481 = vadd.f32 %v2288, %v2480
        %2482 = vmatprep.mubr.bf16.mxu0 %v1011
        %2483 = vmatmul.mubr.bf16.gmra.mrb[0].mxu0 %v1010
        %v2484 = vpop.f32.mrb[0].mxu0
        %v2485 = vadd.f32 %v2292, %v2484
        %v2486 = vpop.f32.mrb[0].mxu0
        %v2487 = vadd.f32 %v2294, %v2486
        %v2488 = vpop.f32.mrb[0].mxu0
        %v2489 = vadd.f32 %v2296, %v2488
        %v2490 = vpop.f32.mrb[0].mxu0
        %v2491 = vadd.f32 %v2298, %v2490
        %2492 = vmatprep.mubr.bf16.mxu0 %v1018
        %2493 = vmatmul.mubr.bf16.gmra.mrb[0].mxu0 %v1017
        %v2494 = vpop.f32.mrb[0].mxu0
        %v2495 = vadd.f32 %v2302, %v2494
        %v2496 = vpop.f32.mrb[0].mxu0
        %v2497 = vadd.f32 %v2304, %v2496
        %v2498 = vpop.f32.mrb[0].mxu0
        %v2499 = vadd.f32 %v2306, %v2498
        %v2500 = vpop.f32.mrb[0].mxu0
        %v2501 = vadd.f32 %v2308, %v2500
        %2502 = vmatprep.mubr.bf16.mxu0 %v1025
        %2503 = vmatmul.mubr.bf16.gmra.mrb[0].mxu0 %v1024
        %v2504 = vpop.f32.mrb[0].mxu0
        %v2505 = vadd.f32 %v2312, %v2504
        %v2506 = vpop.f32.mrb[0].mxu0
        %v2507 = vadd.f32 %v2314, %v2506
        %v2508 = vpop.f32.mrb[0].mxu0
        %v2509 = vadd.f32 %v2316, %v2508
        %v2510 = vpop.f32.mrb[0].mxu0
        %v2511 = vadd.f32 %v2318, %v2510
        %2512 = vmatprep.mubr.bf16.mxu0 %v1032
        %2513 = vmatmul.mubr.bf16.gmra.mrb[0].mxu0 %v1031
        %v2514 = vpop.f32.mrb[0].mxu0
        %v2515 = vadd.f32 %v2322, %v2514
        %v2516 = vpop.f32.mrb[0].mxu0
        %v2517 = vadd.f32 %v2324, %v2516
        %v2518 = vpop.f32.mrb[0].mxu0
        %v2519 = vadd.f32 %v2326, %v2518
        %v2520 = vpop.f32.mrb[0].mxu0
        %v2521 = vadd.f32 %v2328, %v2520
        %2522 = vmatprep.mubr.bf16.mxu0 %v1039
        %2523 = vmatmul.mubr.bf16.gmra.mrb[0].mxu0 %v1038
        %v2524 = vpop.f32.mrb[0].mxu0
        %v2525 = vadd.f32 %v2332, %v2524
        %v2526 = vpop.f32.mrb[0].mxu0
        %v2527 = vadd.f32 %v2334, %v2526
        %v2528 = vpop.f32.mrb[0].mxu0
        %v2529 = vadd.f32 %v2336, %v2528
        %v2530 = vpop.f32.mrb[0].mxu0
        %v2531 = vadd.f32 %v2338, %v2530
        %2532 = vmatprep.mubr.bf16.mxu0 %v1046
        %2533 = vmatmul.mubr.bf16.gmra.mrb[0].mxu0 %v1045
        %v2534 = vpop.f32.mrb[0].mxu0
        %v2535 = vadd.f32 %v2342, %v2534
        %v2536 = vpop.f32.mrb[0].mxu0
        %v2537 = vadd.f32 %v2344, %v2536
        %v2538 = vpop.f32.mrb[0].mxu0
        %v2539 = vadd.f32 %v2346, %v2538
        %v2540 = vpop.f32.mrb[0].mxu0
        %v2541 = vadd.f32 %v2348, %v2540
        %2542 = vmatprep.mubr.bf16.mxu0 %v1053
        %2543 = vmatmul.mubr.bf16.gmra.mrb[0].mxu0 %v1052
        %v2544 = vpop.f32.mrb[0].mxu0
        %v2545 = vadd.f32 %v2352, %v2544
        %v2546 = vpop.f32.mrb[0].mxu0
        %v2547 = vadd.f32 %v2354, %v2546
        %v2548 = vpop.f32.mrb[0].mxu0
        %v2549 = vadd.f32 %v2356, %v2548
        %v2550 = vpop.f32.mrb[0].mxu0
        %v2551 = vadd.f32 %v2358, %v2550
        %2552 = vmatprep.mubr.bf16.mxu0 %v1060
        %2553 = vmatmul.mubr.bf16.gmra.mrb[0].mxu0 %v1059
        %v2554 = vpop.f32.mrb[0].mxu0
        %v2555 = vadd.f32 %v2362, %v2554
        %v2556 = vpop.f32.mrb[0].mxu0
        %v2557 = vadd.f32 %v2364, %v2556
        %v2558 = vpop.f32.mrb[0].mxu0
        %v2559 = vadd.f32 %v2366, %v2558
        %v2560 = vpop.f32.mrb[0].mxu0
        %v2561 = vadd.f32 %v2368, %v2560
        %2562 = vmatprep.mubr.bf16.mxu0 %v1067
        %2563 = vmatmul.mubr.bf16.gmra.mrb[0].mxu0 %v1066
        %v2564 = vpop.f32.mrb[0].mxu0
        %v2565 = vadd.f32 %v2372, %v2564
        %v2566 = vpop.f32.mrb[0].mxu0
        %v2567 = vadd.f32 %v2374, %v2566
        %v2568 = vpop.f32.mrb[0].mxu0
        %v2569 = vadd.f32 %v2376, %v2568
        %v2570 = vpop.f32.mrb[0].mxu0
        %v2571 = vadd.f32 %v2378, %v2570
        %2572 = vmatprep.mubr.bf16.mxu0 %v1074
        %2573 = vmatmul.mubr.bf16.gmra.mrb[0].mxu0 %v1073
        %v2574 = vpop.f32.mrb[0].mxu0
        %v2575 = vadd.f32 %v2382, %v2574
        %v2576 = vpop.f32.mrb[0].mxu0
        %v2577 = vadd.f32 %v2384, %v2576
        %v2578 = vpop.f32.mrb[0].mxu0
        %v2579 = vadd.f32 %v2386, %v2578
        %v2580 = vpop.f32.mrb[0].mxu0
        %v2581 = vadd.f32 %v2388, %v2580
        %2582 = vmatprep.mubr.bf16.mxu0 %v1081
        %2583 = vmatmul.mubr.bf16.gmra.mrb[0].mxu0 %v1080
        %v2584 = vpop.f32.mrb[0].mxu0
        %v2585 = vadd.f32 %v2392, %v2584
        %v2586 = vpop.f32.mrb[0].mxu0
        %v2587 = vadd.f32 %v2394, %v2586
        %v2588 = vpop.f32.mrb[0].mxu0
        %v2589 = vadd.f32 %v2396, %v2588
        %v2590 = vpop.f32.mrb[0].mxu0
        %v2591 = vadd.f32 %v2398, %v2590
        %2592 = vmatprep.mubr.bf16.mxu0 %v1088
        %2593 = vmatmul.mubr.bf16.gmra.mrb[0].mxu0 %v1087
        %v2594 = vpop.f32.mrb[0].mxu0
        %v2595 = vadd.f32 %v2402, %v2594
        %v2596 = vpop.f32.mrb[0].mxu0
        %v2597 = vadd.f32 %v2404, %v2596
        %v2598 = vpop.f32.mrb[0].mxu0
        %v2599 = vadd.f32 %v2406, %v2598
        %v2600 = vpop.f32.mrb[0].mxu0
        %v2601 = vadd.f32 %v2408, %v2600
        %2602 = vdwg.mxu0
        %2603 = vmatprep.subr.bf16.mxu0 %v1905
        %2604 = vmatpush1.bf16.msra.mxu0 %v1904
        %2605 = vmatprep.subr.bf16.mxu0 %v1909
        %2606 = vmatpush1.bf16.msra.mxu0 %v1908
        %2607 = vmatprep.subr.bf16.mxu0 %v1913
        %2608 = vmatpush1.bf16.msra.mxu0 %v1912
        %2609 = vmatprep.subr.bf16.mxu0 %v1917
        %2610 = vmatpush1.bf16.msra.mxu0 %v1916
        %2611 = vmatprep.subr.bf16.mxu0 %v1921
        %2612 = vmatpush1.bf16.msra.mxu0 %v1920
        %2613 = vmatprep.subr.bf16.mxu0 %v1925
        %2614 = vmatpush1.bf16.msra.mxu0 %v1924
        %2615 = vmatprep.subr.bf16.mxu0 %v1929
        %2616 = vmatpush1.bf16.msra.mxu0 %v1928
        %2617 = vmatprep.subr.bf16.mxu0 %v1933
        %2618 = vmatpush1.bf16.msra.mxu0 %v1932
        %2619 = vmatprep.subr.bf16.mxu0 %v1937
        %2620 = vmatpush1.bf16.msra.mxu0 %v1936
        %2621 = vmatprep.subr.bf16.mxu0 %v1941
        %2622 = vmatpush1.bf16.msra.mxu0 %v1940
        %2623 = vmatprep.subr.bf16.mxu0 %v1945
        %2624 = vmatpush1.bf16.msra.mxu0 %v1944
        %2625 = vmatprep.subr.bf16.mxu0 %v1949
        %2626 = vmatpush1.bf16.msra.mxu0 %v1948
        %2627 = vmatprep.subr.bf16.mxu0 %v1953
        %2628 = vmatpush1.bf16.msra.mxu0 %v1952
        %2629 = vmatprep.subr.bf16.mxu0 %v1957
        %2630 = vmatpush1.bf16.msra.mxu0 %v1956
        %2631 = vmatprep.subr.bf16.mxu0 %v1961
        %2632 = vmatpush1.bf16.msra.mxu0 %v1960
        %2633 = vmatprep.subr.bf16.mxu0 %v1965
        %2634 = vmatpush1.bf16.msra.mxu0 %v1964
        %2635 = vmatprep.mubr.bf16.mxu0 %v985
        %2636 = vmatmul.mubr.bf16.gmra.mrb[0].mxu0 %v984
        %v2637 = vpop.f32.mrb[0].mxu0
        %v2638 = vadd.f32 %v2445, %v2637
        %v2639 = vpop.f32.mrb[0].mxu0
        %v2640 = vadd.f32 %v2447, %v2639
        %v2641 = vpop.f32.mrb[0].mxu0
        %v2642 = vadd.f32 %v2449, %v2641
        %v2643 = vpop.f32.mrb[0].mxu0
        %v2644 = vadd.f32 %v2451, %v2643
        %2645 = vmatprep.mubr.bf16.mxu0 %v992
        %2646 = vmatmul.mubr.bf16.gmra.mrb[0].mxu0 %v991
        %v2647 = vpop.f32.mrb[0].mxu0
        %v2648 = vadd.f32 %v2455, %v2647
        %v2649 = vpop.f32.mrb[0].mxu0
        %v2650 = vadd.f32 %v2457, %v2649
        %v2651 = vpop.f32.mrb[0].mxu0
        %v2652 = vadd.f32 %v2459, %v2651
        %v2653 = vpop.f32.mrb[0].mxu0
        %v2654 = vadd.f32 %v2461, %v2653
        %2655 = vmatprep.mubr.bf16.mxu0 %v999
        %2656 = vmatmul.mubr.bf16.gmra.mrb[0].mxu0 %v998
        %v2657 = vpop.f32.mrb[0].mxu0
        %v2658 = vadd.f32 %v2465, %v2657
        %v2659 = vpop.f32.mrb[0].mxu0
        %v2660 = vadd.f32 %v2467, %v2659
        %v2661 = vpop.f32.mrb[0].mxu0
        %v2662 = vadd.f32 %v2469, %v2661
        %v2663 = vpop.f32.mrb[0].mxu0
        %v2664 = vadd.f32 %v2471, %v2663
        %2665 = vmatprep.mubr.bf16.mxu0 %v1006
        %2666 = vmatmul.mubr.bf16.gmra.mrb[0].mxu0 %v1005
        %v2667 = vpop.f32.mrb[0].mxu0
        %v2668 = vadd.f32 %v2475, %v2667
        %v2669 = vpop.f32.mrb[0].mxu0
        %v2670 = vadd.f32 %v2477, %v2669
        %v2671 = vpop.f32.mrb[0].mxu0
        %v2672 = vadd.f32 %v2479, %v2671
        %v2673 = vpop.f32.mrb[0].mxu0
        %v2674 = vadd.f32 %v2481, %v2673
        %2675 = vmatprep.mubr.bf16.mxu0 %v1013
        %2676 = vmatmul.mubr.bf16.gmra.mrb[0].mxu0 %v1012
        %v2677 = vpop.f32.mrb[0].mxu0
        %v2678 = vadd.f32 %v2485, %v2677
        %v2679 = vpop.f32.mrb[0].mxu0
        %v2680 = vadd.f32 %v2487, %v2679
        %v2681 = vpop.f32.mrb[0].mxu0
        %v2682 = vadd.f32 %v2489, %v2681
        %v2683 = vpop.f32.mrb[0].mxu0
        %v2684 = vadd.f32 %v2491, %v2683
        %2685 = vmatprep.mubr.bf16.mxu0 %v1020
        %2686 = vmatmul.mubr.bf16.gmra.mrb[0].mxu0 %v1019
        %v2687 = vpop.f32.mrb[0].mxu0
        %v2688 = vadd.f32 %v2495, %v2687
        %v2689 = vpop.f32.mrb[0].mxu0
        %v2690 = vadd.f32 %v2497, %v2689
        %v2691 = vpop.f32.mrb[0].mxu0
        %v2692 = vadd.f32 %v2499, %v2691
        %v2693 = vpop.f32.mrb[0].mxu0
        %v2694 = vadd.f32 %v2501, %v2693
        %2695 = vmatprep.mubr.bf16.mxu0 %v1027
        %2696 = vmatmul.mubr.bf16.gmra.mrb[0].mxu0 %v1026
        %v2697 = vpop.f32.mrb[0].mxu0
        %v2698 = vadd.f32 %v2505, %v2697
        %v2699 = vpop.f32.mrb[0].mxu0
        %v2700 = vadd.f32 %v2507, %v2699
        %v2701 = vpop.f32.mrb[0].mxu0
        %v2702 = vadd.f32 %v2509, %v2701
        %v2703 = vpop.f32.mrb[0].mxu0
        %v2704 = vadd.f32 %v2511, %v2703
        %2705 = vmatprep.mubr.bf16.mxu0 %v1034
        %2706 = vmatmul.mubr.bf16.gmra.mrb[0].mxu0 %v1033
        %v2707 = vpop.f32.mrb[0].mxu0
        %v2708 = vadd.f32 %v2515, %v2707
        %v2709 = vpop.f32.mrb[0].mxu0
        %v2710 = vadd.f32 %v2517, %v2709
        %v2711 = vpop.f32.mrb[0].mxu0
        %v2712 = vadd.f32 %v2519, %v2711
        %v2713 = vpop.f32.mrb[0].mxu0
        %v2714 = vadd.f32 %v2521, %v2713
        %2715 = vmatprep.mubr.bf16.mxu0 %v1041
        %2716 = vmatmul.mubr.bf16.gmra.mrb[0].mxu0 %v1040
        %v2717 = vpop.f32.mrb[0].mxu0
        %v2718 = vadd.f32 %v2525, %v2717
        %v2719 = vpop.f32.mrb[0].mxu0
        %v2720 = vadd.f32 %v2527, %v2719
        %v2721 = vpop.f32.mrb[0].mxu0
        %v2722 = vadd.f32 %v2529, %v2721
        %v2723 = vpop.f32.mrb[0].mxu0
        %v2724 = vadd.f32 %v2531, %v2723
        %2725 = vmatprep.mubr.bf16.mxu0 %v1048
        %2726 = vmatmul.mubr.bf16.gmra.mrb[0].mxu0 %v1047
        %v2727 = vpop.f32.mrb[0].mxu0
        %v2728 = vadd.f32 %v2535, %v2727
        %v2729 = vpop.f32.mrb[0].mxu0
        %v2730 = vadd.f32 %v2537, %v2729
        %v2731 = vpop.f32.mrb[0].mxu0
        %v2732 = vadd.f32 %v2539, %v2731
        %v2733 = vpop.f32.mrb[0].mxu0
        %v2734 = vadd.f32 %v2541, %v2733
        %2735 = vmatprep.mubr.bf16.mxu0 %v1055
        %2736 = vmatmul.mubr.bf16.gmra.mrb[0].mxu0 %v1054
        %v2737 = vpop.f32.mrb[0].mxu0
        %v2738 = vadd.f32 %v2545, %v2737
        %v2739 = vpop.f32.mrb[0].mxu0
        %v2740 = vadd.f32 %v2547, %v2739
        %v2741 = vpop.f32.mrb[0].mxu0
        %v2742 = vadd.f32 %v2549, %v2741
        %v2743 = vpop.f32.mrb[0].mxu0
        %v2744 = vadd.f32 %v2551, %v2743
        %2745 = vmatprep.mubr.bf16.mxu0 %v1062
        %2746 = vmatmul.mubr.bf16.gmra.mrb[0].mxu0 %v1061
        %v2747 = vpop.f32.mrb[0].mxu0
        %v2748 = vadd.f32 %v2555, %v2747
        %v2749 = vpop.f32.mrb[0].mxu0
        %v2750 = vadd.f32 %v2557, %v2749
        %v2751 = vpop.f32.mrb[0].mxu0
        %v2752 = vadd.f32 %v2559, %v2751
        %v2753 = vpop.f32.mrb[0].mxu0
        %v2754 = vadd.f32 %v2561, %v2753
        %2755 = vmatprep.mubr.bf16.mxu0 %v1069
        %2756 = vmatmul.mubr.bf16.gmra.mrb[0].mxu0 %v1068
        %v2757 = vpop.f32.mrb[0].mxu0
        %v2758 = vadd.f32 %v2565, %v2757
        %v2759 = vpop.f32.mrb[0].mxu0
        %v2760 = vadd.f32 %v2567, %v2759
        %v2761 = vpop.f32.mrb[0].mxu0
        %v2762 = vadd.f32 %v2569, %v2761
        %v2763 = vpop.f32.mrb[0].mxu0
        %v2764 = vadd.f32 %v2571, %v2763
        %2765 = vmatprep.mubr.bf16.mxu0 %v1076
        %2766 = vmatmul.mubr.bf16.gmra.mrb[0].mxu0 %v1075
        %v2767 = vpop.f32.mrb[0].mxu0
        %v2768 = vadd.f32 %v2575, %v2767
        %v2769 = vpop.f32.mrb[0].mxu0
        %v2770 = vadd.f32 %v2577, %v2769
        %v2771 = vpop.f32.mrb[0].mxu0
        %v2772 = vadd.f32 %v2579, %v2771
        %v2773 = vpop.f32.mrb[0].mxu0
        %v2774 = vadd.f32 %v2581, %v2773
        %2775 = vmatprep.mubr.bf16.mxu0 %v1083
        %2776 = vmatmul.mubr.bf16.gmra.mrb[0].mxu0 %v1082
        %v2777 = vpop.f32.mrb[0].mxu0
        %v2778 = vadd.f32 %v2585, %v2777
        %v2779 = vpop.f32.mrb[0].mxu0
        %v2780 = vadd.f32 %v2587, %v2779
        %v2781 = vpop.f32.mrb[0].mxu0
        %v2782 = vadd.f32 %v2589, %v2781
        %v2783 = vpop.f32.mrb[0].mxu0
        %v2784 = vadd.f32 %v2591, %v2783
        %2785 = vmatprep.mubr.bf16.mxu0 %v1090
        %2786 = vmatmul.mubr.bf16.gmra.mrb[0].mxu0 %v1089
        %v2787 = vpop.f32.mrb[0].mxu0
        %v2788 = vadd.f32 %v2595, %v2787
        %v2789 = vpop.f32.mrb[0].mxu0
        %v2790 = vadd.f32 %v2597, %v2789
        %v2791 = vpop.f32.mrb[0].mxu0
        %v2792 = vadd.f32 %v2599, %v2791
        %v2793 = vpop.f32.mrb[0].mxu0
        %v2794 = vadd.f32 %v2601, %v2793
        %2795 = vdwg.mxu0
        %2796 = vmatprep.subr.bf16.mxu0 %v1969
        %2797 = vmatpush1.bf16.msra.mxu0 %v1968
        %2798 = vmatprep.subr.bf16.mxu0 0
        %2799 = vmatpush1.bf16.msra.mxu0 0
        %2800 = vmatprep.subr.bf16.mxu0 0
        %2801 = vmatpush1.bf16.msra.mxu0 0
        %2802 = vmatprep.subr.bf16.mxu0 0
        %2803 = vmatpush1.bf16.msra.mxu0 0
        %2804 = vmatprep.subr.bf16.mxu0 0
        %2805 = vmatpush1.bf16.msra.mxu0 0
        %2806 = vmatprep.subr.bf16.mxu0 0
        %2807 = vmatpush1.bf16.msra.mxu0 0
        %2808 = vmatprep.subr.bf16.mxu0 0
        %2809 = vmatpush1.bf16.msra.mxu0 0
        %2810 = vmatprep.subr.bf16.mxu0 0
        %2811 = vmatpush1.bf16.msra.mxu0 0
        %2812 = vmatprep.subr.bf16.mxu0 0
        %2813 = vmatpush1.bf16.msra.mxu0 0
        %2814 = vmatprep.subr.bf16.mxu0 0
        %2815 = vmatpush1.bf16.msra.mxu0 0
        %2816 = vmatprep.subr.bf16.mxu0 0
        %2817 = vmatpush1.bf16.msra.mxu0 0
        %2818 = vmatprep.subr.bf16.mxu0 0
        %2819 = vmatpush1.bf16.msra.mxu0 0
        %2820 = vmatprep.subr.bf16.mxu0 0
        %2821 = vmatpush1.bf16.msra.mxu0 0
        %2822 = vmatprep.subr.bf16.mxu0 0
        %2823 = vmatpush1.bf16.msra.mxu0 0
        %2824 = vmatprep.subr.bf16.mxu0 0
        %2825 = vmatpush1.bf16.msra.mxu0 0
        %2826 = vmatprep.subr.bf16.mxu0 0
        %2827 = vmatpush1.bf16.msra.mxu0 0
        %2828 = vmatprep.mubr.bf16.mxu0 0
        %2829 = vmatmul.mubr.bf16.gmra.mrb[0].mxu0 %v2170
        %v2830 = vpop.f32.mrb[0].mxu0
        %v2831 = vadd.f32 %v2638, %v2830
        %v2832 = vpop.f32.mrb[0].mxu0
        %v2833 = vadd.f32 %v2640, %v2832
        %v2834 = vpop.f32.mrb[0].mxu0
        %v2835 = vadd.f32 %v2642, %v2834
        %v2836 = vpop.f32.mrb[0].mxu0
        %v2837 = vadd.f32 %v2644, %v2836
        %2838 = vmatprep.mubr.bf16.mxu0 0
        %2839 = vmatmul.mubr.bf16.gmra.mrb[0].mxu0 %v2173
        %v2840 = vpop.f32.mrb[0].mxu0
        %v2841 = vadd.f32 %v2648, %v2840
        %v2842 = vpop.f32.mrb[0].mxu0
        %v2843 = vadd.f32 %v2650, %v2842
        %v2844 = vpop.f32.mrb[0].mxu0
        %v2845 = vadd.f32 %v2652, %v2844
        %v2846 = vpop.f32.mrb[0].mxu0
        %v2847 = vadd.f32 %v2654, %v2846
        %2848 = vmatprep.mubr.bf16.mxu0 0
        %2849 = vmatmul.mubr.bf16.gmra.mrb[0].mxu0 %v2176
        %v2850 = vpop.f32.mrb[0].mxu0
        %v2851 = vadd.f32 %v2658, %v2850
        %v2852 = vpop.f32.mrb[0].mxu0
        %v2853 = vadd.f32 %v2660, %v2852
        %v2854 = vpop.f32.mrb[0].mxu0
        %v2855 = vadd.f32 %v2662, %v2854
        %v2856 = vpop.f32.mrb[0].mxu0
        %v2857 = vadd.f32 %v2664, %v2856
        %2858 = vmatprep.mubr.bf16.mxu0 0
        %2859 = vmatmul.mubr.bf16.gmra.mrb[0].mxu0 %v2179
        %v2860 = vpop.f32.mrb[0].mxu0
        %v2861 = vadd.f32 %v2668, %v2860
        %v2862 = vpop.f32.mrb[0].mxu0
        %v2863 = vadd.f32 %v2670, %v2862
        %v2864 = vpop.f32.mrb[0].mxu0
        %v2865 = vadd.f32 %v2672, %v2864
        %v2866 = vpop.f32.mrb[0].mxu0
        %v2867 = vadd.f32 %v2674, %v2866
        %2868 = vmatprep.mubr.bf16.mxu0 0
        %2869 = vmatmul.mubr.bf16.gmra.mrb[0].mxu0 %v2182
        %v2870 = vpop.f32.mrb[0].mxu0
        %v2871 = vadd.f32 %v2678, %v2870
        %v2872 = vpop.f32.mrb[0].mxu0
        %v2873 = vadd.f32 %v2680, %v2872
        %v2874 = vpop.f32.mrb[0].mxu0
        %v2875 = vadd.f32 %v2682, %v2874
        %v2876 = vpop.f32.mrb[0].mxu0
        %v2877 = vadd.f32 %v2684, %v2876
        %2878 = vmatprep.mubr.bf16.mxu0 0
        %2879 = vmatmul.mubr.bf16.gmra.mrb[0].mxu0 %v2185
        %v2880 = vpop.f32.mrb[0].mxu0
        %v2881 = vadd.f32 %v2688, %v2880
        %v2882 = vpop.f32.mrb[0].mxu0
        %v2883 = vadd.f32 %v2690, %v2882
        %v2884 = vpop.f32.mrb[0].mxu0
        %v2885 = vadd.f32 %v2692, %v2884
        %v2886 = vpop.f32.mrb[0].mxu0
        %v2887 = vadd.f32 %v2694, %v2886
        %2888 = vmatprep.mubr.bf16.mxu0 0
        %2889 = vmatmul.mubr.bf16.gmra.mrb[0].mxu0 %v2188
        %v2890 = vpop.f32.mrb[0].mxu0
        %v2891 = vadd.f32 %v2698, %v2890
        %v2892 = vpop.f32.mrb[0].mxu0
        %v2893 = vadd.f32 %v2700, %v2892
        %v2894 = vpop.f32.mrb[0].mxu0
        %v2895 = vadd.f32 %v2702, %v2894
        %v2896 = vpop.f32.mrb[0].mxu0
        %v2897 = vadd.f32 %v2704, %v2896
        %2898 = vmatprep.mubr.bf16.mxu0 0
        %2899 = vmatmul.mubr.bf16.gmra.mrb[0].mxu0 %v2191
        %v2900 = vpop.f32.mrb[0].mxu0
        %v2901 = vadd.f32 %v2708, %v2900
        %v2902 = vpop.f32.mrb[0].mxu0
        %v2903 = vadd.f32 %v2710, %v2902
        %v2904 = vpop.f32.mrb[0].mxu0
        %v2905 = vadd.f32 %v2712, %v2904
        %v2906 = vpop.f32.mrb[0].mxu0
        %v2907 = vadd.f32 %v2714, %v2906
        %2908 = vmatprep.mubr.bf16.mxu0 0
        %2909 = vmatmul.mubr.bf16.gmra.mrb[0].mxu0 %v2194
        %v2910 = vpop.f32.mrb[0].mxu0
        %v2911 = vadd.f32 %v2718, %v2910
        %v2912 = vpop.f32.mrb[0].mxu0
        %v2913 = vadd.f32 %v2720, %v2912
        %v2914 = vpop.f32.mrb[0].mxu0
        %v2915 = vadd.f32 %v2722, %v2914
        %v2916 = vpop.f32.mrb[0].mxu0
        %v2917 = vadd.f32 %v2724, %v2916
        %2918 = vmatprep.mubr.bf16.mxu0 0
        %2919 = vmatmul.mubr.bf16.gmra.mrb[0].mxu0 %v2197
        %v2920 = vpop.f32.mrb[0].mxu0
        %v2921 = vadd.f32 %v2728, %v2920
        %v2922 = vpop.f32.mrb[0].mxu0
        %v2923 = vadd.f32 %v2730, %v2922
        %v2924 = vpop.f32.mrb[0].mxu0
        %v2925 = vadd.f32 %v2732, %v2924
        %v2926 = vpop.f32.mrb[0].mxu0
        %v2927 = vadd.f32 %v2734, %v2926
        %2928 = vmatprep.mubr.bf16.mxu0 0
        %2929 = vmatmul.mubr.bf16.gmra.mrb[0].mxu0 %v2200
        %v2930 = vpop.f32.mrb[0].mxu0
        %v2931 = vadd.f32 %v2738, %v2930
        %v2932 = vpop.f32.mrb[0].mxu0
        %v2933 = vadd.f32 %v2740, %v2932
        %v2934 = vpop.f32.mrb[0].mxu0
        %v2935 = vadd.f32 %v2742, %v2934
        %v2936 = vpop.f32.mrb[0].mxu0
        %v2937 = vadd.f32 %v2744, %v2936
        %2938 = vmatprep.mubr.bf16.mxu0 0
        %2939 = vmatmul.mubr.bf16.gmra.mrb[0].mxu0 %v2203
        %v2940 = vpop.f32.mrb[0].mxu0
        %v2941 = vadd.f32 %v2748, %v2940
        %v2942 = vpop.f32.mrb[0].mxu0
        %v2943 = vadd.f32 %v2750, %v2942
        %v2944 = vpop.f32.mrb[0].mxu0
        %v2945 = vadd.f32 %v2752, %v2944
        %v2946 = vpop.f32.mrb[0].mxu0
        %v2947 = vadd.f32 %v2754, %v2946
        %2948 = vmatprep.mubr.bf16.mxu0 0
        %2949 = vmatmul.mubr.bf16.gmra.mrb[0].mxu0 %v2206
        %v2950 = vpop.f32.mrb[0].mxu0
        %v2951 = vadd.f32 %v2758, %v2950
        %v2952 = vpop.f32.mrb[0].mxu0
        %v2953 = vadd.f32 %v2760, %v2952
        %v2954 = vpop.f32.mrb[0].mxu0
        %v2955 = vadd.f32 %v2762, %v2954
        %v2956 = vpop.f32.mrb[0].mxu0
        %v2957 = vadd.f32 %v2764, %v2956
        %2958 = vmatprep.mubr.bf16.mxu0 0
        %2959 = vmatmul.mubr.bf16.gmra.mrb[0].mxu0 %v2209
        %v2960 = vpop.f32.mrb[0].mxu0
        %v2961 = vadd.f32 %v2768, %v2960
        %v2962 = vpop.f32.mrb[0].mxu0
        %v2963 = vadd.f32 %v2770, %v2962
        %v2964 = vpop.f32.mrb[0].mxu0
        %v2965 = vadd.f32 %v2772, %v2964
        %v2966 = vpop.f32.mrb[0].mxu0
        %v2967 = vadd.f32 %v2774, %v2966
        %2968 = vmatprep.mubr.bf16.mxu0 0
        %2969 = vmatmul.mubr.bf16.gmra.mrb[0].mxu0 %v2212
        %v2970 = vpop.f32.mrb[0].mxu0
        %v2971 = vadd.f32 %v2778, %v2970
        %v2972 = vpop.f32.mrb[0].mxu0
        %v2973 = vadd.f32 %v2780, %v2972
        %v2974 = vpop.f32.mrb[0].mxu0
        %v2975 = vadd.f32 %v2782, %v2974
        %v2976 = vpop.f32.mrb[0].mxu0
        %v2977 = vadd.f32 %v2784, %v2976
        %2978 = vmatprep.mubr.bf16.mxu0 0
        %2979 = vmatmul.mubr.bf16.gmra.mrb[0].mxu0 %v2215
        %v2980 = vpop.f32.mrb[0].mxu0
        %v2981 = vadd.f32 %v2788, %v2980
        %v2982 = vpop.f32.mrb[0].mxu0
        %v2983 = vadd.f32 %v2790, %v2982
        %v2984 = vpop.f32.mrb[0].mxu0
        %v2985 = vadd.f32 %v2792, %v2984
        %v2986 = vpop.f32.mrb[0].mxu0
        %v2987 = vadd.f32 %v2794, %v2986
        %2988 = vdwg.mxu0
        %2989 = vmatprep.subr.bf16.mxu0 %v1779
        %2990 = vmatpush1.bf16.msra.mxu0 %v1778
        %2991 = vmatprep.subr.bf16.mxu0 %v1783
        %2992 = vmatpush1.bf16.msra.mxu0 %v1782
        %2993 = vmatprep.subr.bf16.mxu0 %v1787
        %2994 = vmatpush1.bf16.msra.mxu0 %v1786
        %2995 = vmatprep.subr.bf16.mxu0 %v1791
        %2996 = vmatpush1.bf16.msra.mxu0 %v1790
        %2997 = vmatprep.subr.bf16.mxu0 %v1795
        %2998 = vmatpush1.bf16.msra.mxu0 %v1794
        %2999 = vmatprep.subr.bf16.mxu0 %v1799
        %3000 = vmatpush1.bf16.msra.mxu0 %v1798
        %3001 = vmatprep.subr.bf16.mxu0 %v1803
        %3002 = vmatpush1.bf16.msra.mxu0 %v1802
        %3003 = vmatprep.subr.bf16.mxu0 %v1807
        %3004 = vmatpush1.bf16.msra.mxu0 %v1806
        %3005 = vmatprep.subr.bf16.mxu0 %v1811
        %3006 = vmatpush1.bf16.msra.mxu0 %v1810
        %3007 = vmatprep.subr.bf16.mxu0 %v1815
        %3008 = vmatpush1.bf16.msra.mxu0 %v1814
        %3009 = vmatprep.subr.bf16.mxu0 %v1819
        %3010 = vmatpush1.bf16.msra.mxu0 %v1818
        %3011 = vmatprep.subr.bf16.mxu0 %v1823
        %3012 = vmatpush1.bf16.msra.mxu0 %v1822
        %3013 = vmatprep.subr.bf16.mxu0 %v1827
        %3014 = vmatpush1.bf16.msra.mxu0 %v1826
        %3015 = vmatprep.subr.bf16.mxu0 %v1831
        %3016 = vmatpush1.bf16.msra.mxu0 %v1830
        %3017 = vmatprep.subr.bf16.mxu0 %v1835
        %3018 = vmatpush1.bf16.msra.mxu0 %v1834
        %3019 = vmatprep.subr.bf16.mxu0 %v1839
        %3020 = vmatpush1.bf16.msra.mxu0 %v1838
        %3021 = vmatprep.mubr.bf16.mxu0 %v981
        %3022 = vmatmul.mubr.bf16.gmra.mrb[0].mxu0 %v980
        %v3023 = vpop.f32.mrb[0].mxu0
        %v3024 = vadd.f32 %v619, %v3023
        %v3025 = vpop.f32.mrb[0].mxu0
        %v3026 = vadd.f32 %v623, %v3025
        %v3027 = vpop.f32.mrb[0].mxu0
        %v3028 = vadd.f32 %v619, %v3027
        %v3029 = vpop.f32.mrb[0].mxu0
        %v3030 = vadd.f32 %v623, %v3029
        %3031 = vmatprep.mubr.bf16.mxu0 %v988
        %3032 = vmatmul.mubr.bf16.gmra.mrb[0].mxu0 %v987
        %v3033 = vpop.f32.mrb[0].mxu0
        %v3034 = vadd.f32 %v619, %v3033
        %v3035 = vpop.f32.mrb[0].mxu0
        %v3036 = vadd.f32 %v623, %v3035
        %v3037 = vpop.f32.mrb[0].mxu0
        %v3038 = vadd.f32 %v619, %v3037
        %v3039 = vpop.f32.mrb[0].mxu0
        %v3040 = vadd.f32 %v623, %v3039
        %3041 = vmatprep.mubr.bf16.mxu0 %v995
        %3042 = vmatmul.mubr.bf16.gmra.mrb[0].mxu0 %v994
        %v3043 = vpop.f32.mrb[0].mxu0
        %v3044 = vadd.f32 %v619, %v3043
        %v3045 = vpop.f32.mrb[0].mxu0
        %v3046 = vadd.f32 %v623, %v3045
        %v3047 = vpop.f32.mrb[0].mxu0
        %v3048 = vadd.f32 %v619, %v3047
        %v3049 = vpop.f32.mrb[0].mxu0
        %v3050 = vadd.f32 %v623, %v3049
        %3051 = vmatprep.mubr.bf16.mxu0 %v1002
        %3052 = vmatmul.mubr.bf16.gmra.mrb[0].mxu0 %v1001
        %v3053 = vpop.f32.mrb[0].mxu0
        %v3054 = vadd.f32 %v619, %v3053
        %v3055 = vpop.f32.mrb[0].mxu0
        %v3056 = vadd.f32 %v623, %v3055
        %v3057 = vpop.f32.mrb[0].mxu0
        %v3058 = vadd.f32 %v619, %v3057
        %v3059 = vpop.f32.mrb[0].mxu0
        %v3060 = vadd.f32 %v623, %v3059
        %3061 = vmatprep.mubr.bf16.mxu0 %v1009
        %3062 = vmatmul.mubr.bf16.gmra.mrb[0].mxu0 %v1008
        %v3063 = vpop.f32.mrb[0].mxu0
        %v3064 = vadd.f32 %v619, %v3063
        %v3065 = vpop.f32.mrb[0].mxu0
        %v3066 = vadd.f32 %v623, %v3065
        %v3067 = vpop.f32.mrb[0].mxu0
        %v3068 = vadd.f32 %v619, %v3067
        %v3069 = vpop.f32.mrb[0].mxu0
        %v3070 = vadd.f32 %v623, %v3069
        %3071 = vmatprep.mubr.bf16.mxu0 %v1016
        %3072 = vmatmul.mubr.bf16.gmra.mrb[0].mxu0 %v1015
        %v3073 = vpop.f32.mrb[0].mxu0
        %v3074 = vadd.f32 %v619, %v3073
        %v3075 = vpop.f32.mrb[0].mxu0
        %v3076 = vadd.f32 %v623, %v3075
        %v3077 = vpop.f32.mrb[0].mxu0
        %v3078 = vadd.f32 %v619, %v3077
        %v3079 = vpop.f32.mrb[0].mxu0
        %v3080 = vadd.f32 %v623, %v3079
        %3081 = vmatprep.mubr.bf16.mxu0 %v1023
        %3082 = vmatmul.mubr.bf16.gmra.mrb[0].mxu0 %v1022
        %v3083 = vpop.f32.mrb[0].mxu0
        %v3084 = vadd.f32 %v619, %v3083
        %v3085 = vpop.f32.mrb[0].mxu0
        %v3086 = vadd.f32 %v623, %v3085
        %v3087 = vpop.f32.mrb[0].mxu0
        %v3088 = vadd.f32 %v619, %v3087
        %v3089 = vpop.f32.mrb[0].mxu0
        %v3090 = vadd.f32 %v623, %v3089
        %3091 = vmatprep.mubr.bf16.mxu0 %v1030
        %3092 = vmatmul.mubr.bf16.gmra.mrb[0].mxu0 %v1029
        %v3093 = vpop.f32.mrb[0].mxu0
        %v3094 = vadd.f32 %v619, %v3093
        %v3095 = vpop.f32.mrb[0].mxu0
        %v3096 = vadd.f32 %v623, %v3095
        %v3097 = vpop.f32.mrb[0].mxu0
        %v3098 = vadd.f32 %v619, %v3097
        %v3099 = vpop.f32.mrb[0].mxu0
        %v3100 = vadd.f32 %v623, %v3099
        %3101 = vmatprep.mubr.bf16.mxu0 %v1037
        %3102 = vmatmul.mubr.bf16.gmra.mrb[0].mxu0 %v1036
        %v3103 = vpop.f32.mrb[0].mxu0
        %v3104 = vadd.f32 %v619, %v3103
        %v3105 = vpop.f32.mrb[0].mxu0
        %v3106 = vadd.f32 %v623, %v3105
        %v3107 = vpop.f32.mrb[0].mxu0
        %v3108 = vadd.f32 %v619, %v3107
        %v3109 = vpop.f32.mrb[0].mxu0
        %v3110 = vadd.f32 %v623, %v3109
        %3111 = vmatprep.mubr.bf16.mxu0 %v1044
        %3112 = vmatmul.mubr.bf16.gmra.mrb[0].mxu0 %v1043
        %v3113 = vpop.f32.mrb[0].mxu0
        %v3114 = vadd.f32 %v619, %v3113
        %v3115 = vpop.f32.mrb[0].mxu0
        %v3116 = vadd.f32 %v623, %v3115
        %v3117 = vpop.f32.mrb[0].mxu0
        %v3118 = vadd.f32 %v619, %v3117
        %v3119 = vpop.f32.mrb[0].mxu0
        %v3120 = vadd.f32 %v623, %v3119
        %3121 = vmatprep.mubr.bf16.mxu0 %v1051
        %3122 = vmatmul.mubr.bf16.gmra.mrb[0].mxu0 %v1050
        %v3123 = vpop.f32.mrb[0].mxu0
        %v3124 = vadd.f32 %v619, %v3123
        %v3125 = vpop.f32.mrb[0].mxu0
        %v3126 = vadd.f32 %v623, %v3125
        %v3127 = vpop.f32.mrb[0].mxu0
        %v3128 = vadd.f32 %v619, %v3127
        %v3129 = vpop.f32.mrb[0].mxu0
        %v3130 = vadd.f32 %v623, %v3129
        %3131 = vmatprep.mubr.bf16.mxu0 %v1058
        %3132 = vmatmul.mubr.bf16.gmra.mrb[0].mxu0 %v1057
        %v3133 = vpop.f32.mrb[0].mxu0
        %v3134 = vadd.f32 %v619, %v3133
        %v3135 = vpop.f32.mrb[0].mxu0
        %v3136 = vadd.f32 %v623, %v3135
        %v3137 = vpop.f32.mrb[0].mxu0
        %v3138 = vadd.f32 %v619, %v3137
        %v3139 = vpop.f32.mrb[0].mxu0
        %v3140 = vadd.f32 %v623, %v3139
        %3141 = vmatprep.mubr.bf16.mxu0 %v1065
        %3142 = vmatmul.mubr.bf16.gmra.mrb[0].mxu0 %v1064
        %v3143 = vpop.f32.mrb[0].mxu0
        %v3144 = vadd.f32 %v619, %v3143
        %v3145 = vpop.f32.mrb[0].mxu0
        %v3146 = vadd.f32 %v623, %v3145
        %v3147 = vpop.f32.mrb[0].mxu0
        %v3148 = vadd.f32 %v619, %v3147
        %v3149 = vpop.f32.mrb[0].mxu0
        %v3150 = vadd.f32 %v623, %v3149
        %3151 = vmatprep.mubr.bf16.mxu0 %v1072
        %3152 = vmatmul.mubr.bf16.gmra.mrb[0].mxu0 %v1071
        %v3153 = vpop.f32.mrb[0].mxu0
        %v3154 = vadd.f32 %v619, %v3153
        %v3155 = vpop.f32.mrb[0].mxu0
        %v3156 = vadd.f32 %v623, %v3155
        %v3157 = vpop.f32.mrb[0].mxu0
        %v3158 = vadd.f32 %v619, %v3157
        %v3159 = vpop.f32.mrb[0].mxu0
        %v3160 = vadd.f32 %v623, %v3159
        %3161 = vmatprep.mubr.bf16.mxu0 %v1079
        %3162 = vmatmul.mubr.bf16.gmra.mrb[0].mxu0 %v1078
        %v3163 = vpop.f32.mrb[0].mxu0
        %v3164 = vadd.f32 %v619, %v3163
        %v3165 = vpop.f32.mrb[0].mxu0
        %v3166 = vadd.f32 %v623, %v3165
        %v3167 = vpop.f32.mrb[0].mxu0
        %v3168 = vadd.f32 %v619, %v3167
        %v3169 = vpop.f32.mrb[0].mxu0
        %v3170 = vadd.f32 %v623, %v3169
        %3171 = vmatprep.mubr.bf16.mxu0 %v1086
        %3172 = vmatmul.mubr.bf16.gmra.mrb[0].mxu0 %v1085
        %v3173 = vpop.f32.mrb[0].mxu0
        %v3174 = vadd.f32 %v619, %v3173
        %v3175 = vpop.f32.mrb[0].mxu0
        %v3176 = vadd.f32 %v623, %v3175
        %v3177 = vpop.f32.mrb[0].mxu0
        %v3178 = vadd.f32 %v619, %v3177
        %v3179 = vpop.f32.mrb[0].mxu0
        %v3180 = vadd.f32 %v623, %v3179
        %3181 = vdwg.mxu0
        %3182 = vmatprep.subr.bf16.mxu0 %v1843
        %3183 = vmatpush1.bf16.msra.mxu0 %v1842
        %3184 = vmatprep.subr.bf16.mxu0 %v1847
        %3185 = vmatpush1.bf16.msra.mxu0 %v1846
        %3186 = vmatprep.subr.bf16.mxu0 %v1851
        %3187 = vmatpush1.bf16.msra.mxu0 %v1850
        %3188 = vmatprep.subr.bf16.mxu0 %v1855
        %3189 = vmatpush1.bf16.msra.mxu0 %v1854
        %3190 = vmatprep.subr.bf16.mxu0 %v1859
        %3191 = vmatpush1.bf16.msra.mxu0 %v1858
        %3192 = vmatprep.subr.bf16.mxu0 %v1863
        %3193 = vmatpush1.bf16.msra.mxu0 %v1862
        %3194 = vmatprep.subr.bf16.mxu0 %v1867
        %3195 = vmatpush1.bf16.msra.mxu0 %v1866
        %3196 = vmatprep.subr.bf16.mxu0 %v1871
        %3197 = vmatpush1.bf16.msra.mxu0 %v1870
        %3198 = vmatprep.subr.bf16.mxu0 %v1875
        %3199 = vmatpush1.bf16.msra.mxu0 %v1874
        %3200 = vmatprep.subr.bf16.mxu0 %v1879
        %3201 = vmatpush1.bf16.msra.mxu0 %v1878
        %3202 = vmatprep.subr.bf16.mxu0 %v1883
        %3203 = vmatpush1.bf16.msra.mxu0 %v1882
        %3204 = vmatprep.subr.bf16.mxu0 %v1887
        %3205 = vmatpush1.bf16.msra.mxu0 %v1886
        %3206 = vmatprep.subr.bf16.mxu0 %v1891
        %3207 = vmatpush1.bf16.msra.mxu0 %v1890
        %3208 = vmatprep.subr.bf16.mxu0 %v1895
        %3209 = vmatpush1.bf16.msra.mxu0 %v1894
        %3210 = vmatprep.subr.bf16.mxu0 %v1899
        %3211 = vmatpush1.bf16.msra.mxu0 %v1898
        %3212 = vmatprep.subr.bf16.mxu0 %v1903
        %3213 = vmatpush1.bf16.msra.mxu0 %v1902
        %3214 = vmatprep.mubr.bf16.mxu0 %v983
        %3215 = vmatmul.mubr.bf16.gmra.mrb[0].mxu0 %v982
        %v3216 = vpop.f32.mrb[0].mxu0
        %v3217 = vadd.f32 %v3024, %v3216
        %v3218 = vpop.f32.mrb[0].mxu0
        %v3219 = vadd.f32 %v3026, %v3218
        %v3220 = vpop.f32.mrb[0].mxu0
        %v3221 = vadd.f32 %v3028, %v3220
        %v3222 = vpop.f32.mrb[0].mxu0
        %v3223 = vadd.f32 %v3030, %v3222
        %3224 = vmatprep.mubr.bf16.mxu0 %v990
        %3225 = vmatmul.mubr.bf16.gmra.mrb[0].mxu0 %v989
        %v3226 = vpop.f32.mrb[0].mxu0
        %v3227 = vadd.f32 %v3034, %v3226
        %v3228 = vpop.f32.mrb[0].mxu0
        %v3229 = vadd.f32 %v3036, %v3228
        %v3230 = vpop.f32.mrb[0].mxu0
        %v3231 = vadd.f32 %v3038, %v3230
        %v3232 = vpop.f32.mrb[0].mxu0
        %v3233 = vadd.f32 %v3040, %v3232
        %3234 = vmatprep.mubr.bf16.mxu0 %v997
        %3235 = vmatmul.mubr.bf16.gmra.mrb[0].mxu0 %v996
        %v3236 = vpop.f32.mrb[0].mxu0
        %v3237 = vadd.f32 %v3044, %v3236
        %v3238 = vpop.f32.mrb[0].mxu0
        %v3239 = vadd.f32 %v3046, %v3238
        %v3240 = vpop.f32.mrb[0].mxu0
        %v3241 = vadd.f32 %v3048, %v3240
        %v3242 = vpop.f32.mrb[0].mxu0
        %v3243 = vadd.f32 %v3050, %v3242
        %3244 = vmatprep.mubr.bf16.mxu0 %v1004
        %3245 = vmatmul.mubr.bf16.gmra.mrb[0].mxu0 %v1003
        %v3246 = vpop.f32.mrb[0].mxu0
        %v3247 = vadd.f32 %v3054, %v3246
        %v3248 = vpop.f32.mrb[0].mxu0
        %v3249 = vadd.f32 %v3056, %v3248
        %v3250 = vpop.f32.mrb[0].mxu0
        %v3251 = vadd.f32 %v3058, %v3250
        %v3252 = vpop.f32.mrb[0].mxu0
        %v3253 = vadd.f32 %v3060, %v3252
        %3254 = vmatprep.mubr.bf16.mxu0 %v1011
        %3255 = vmatmul.mubr.bf16.gmra.mrb[0].mxu0 %v1010
        %v3256 = vpop.f32.mrb[0].mxu0
        %v3257 = vadd.f32 %v3064, %v3256
        %v3258 = vpop.f32.mrb[0].mxu0
        %v3259 = vadd.f32 %v3066, %v3258
        %v3260 = vpop.f32.mrb[0].mxu0
        %v3261 = vadd.f32 %v3068, %v3260
        %v3262 = vpop.f32.mrb[0].mxu0
        %v3263 = vadd.f32 %v3070, %v3262
        %3264 = vmatprep.mubr.bf16.mxu0 %v1018
        %3265 = vmatmul.mubr.bf16.gmra.mrb[0].mxu0 %v1017
        %v3266 = vpop.f32.mrb[0].mxu0
        %v3267 = vadd.f32 %v3074, %v3266
        %v3268 = vpop.f32.mrb[0].mxu0
        %v3269 = vadd.f32 %v3076, %v3268
        %v3270 = vpop.f32.mrb[0].mxu0
        %v3271 = vadd.f32 %v3078, %v3270
        %v3272 = vpop.f32.mrb[0].mxu0
        %v3273 = vadd.f32 %v3080, %v3272
        %3274 = vmatprep.mubr.bf16.mxu0 %v1025
        %3275 = vmatmul.mubr.bf16.gmra.mrb[0].mxu0 %v1024
        %v3276 = vpop.f32.mrb[0].mxu0
        %v3277 = vadd.f32 %v3084, %v3276
        %v3278 = vpop.f32.mrb[0].mxu0
        %v3279 = vadd.f32 %v3086, %v3278
        %v3280 = vpop.f32.mrb[0].mxu0
        %v3281 = vadd.f32 %v3088, %v3280
        %v3282 = vpop.f32.mrb[0].mxu0
        %v3283 = vadd.f32 %v3090, %v3282
        %3284 = vmatprep.mubr.bf16.mxu0 %v1032
        %3285 = vmatmul.mubr.bf16.gmra.mrb[0].mxu0 %v1031
        %v3286 = vpop.f32.mrb[0].mxu0
        %v3287 = vadd.f32 %v3094, %v3286
        %v3288 = vpop.f32.mrb[0].mxu0
        %v3289 = vadd.f32 %v3096, %v3288
        %v3290 = vpop.f32.mrb[0].mxu0
        %v3291 = vadd.f32 %v3098, %v3290
        %v3292 = vpop.f32.mrb[0].mxu0
        %v3293 = vadd.f32 %v3100, %v3292
        %3294 = vmatprep.mubr.bf16.mxu0 %v1039
        %3295 = vmatmul.mubr.bf16.gmra.mrb[0].mxu0 %v1038
        %v3296 = vpop.f32.mrb[0].mxu0
        %v3297 = vadd.f32 %v3104, %v3296
        %v3298 = vpop.f32.mrb[0].mxu0
        %v3299 = vadd.f32 %v3106, %v3298
        %v3300 = vpop.f32.mrb[0].mxu0
        %v3301 = vadd.f32 %v3108, %v3300
        %v3302 = vpop.f32.mrb[0].mxu0
        %v3303 = vadd.f32 %v3110, %v3302
        %3304 = vmatprep.mubr.bf16.mxu0 %v1046
        %3305 = vmatmul.mubr.bf16.gmra.mrb[0].mxu0 %v1045
        %v3306 = vpop.f32.mrb[0].mxu0
        %v3307 = vadd.f32 %v3114, %v3306
        %v3308 = vpop.f32.mrb[0].mxu0
        %v3309 = vadd.f32 %v3116, %v3308
        %v3310 = vpop.f32.mrb[0].mxu0
        %v3311 = vadd.f32 %v3118, %v3310
        %v3312 = vpop.f32.mrb[0].mxu0
        %v3313 = vadd.f32 %v3120, %v3312
        %3314 = vmatprep.mubr.bf16.mxu0 %v1053
        %3315 = vmatmul.mubr.bf16.gmra.mrb[0].mxu0 %v1052
        %v3316 = vpop.f32.mrb[0].mxu0
        %v3317 = vadd.f32 %v3124, %v3316
        %v3318 = vpop.f32.mrb[0].mxu0
        %v3319 = vadd.f32 %v3126, %v3318
        %v3320 = vpop.f32.mrb[0].mxu0
        %v3321 = vadd.f32 %v3128, %v3320
        %v3322 = vpop.f32.mrb[0].mxu0
        %v3323 = vadd.f32 %v3130, %v3322
        %3324 = vmatprep.mubr.bf16.mxu0 %v1060
        %3325 = vmatmul.mubr.bf16.gmra.mrb[0].mxu0 %v1059
        %v3326 = vpop.f32.mrb[0].mxu0
        %v3327 = vadd.f32 %v3134, %v3326
        %v3328 = vpop.f32.mrb[0].mxu0
        %v3329 = vadd.f32 %v3136, %v3328
        %v3330 = vpop.f32.mrb[0].mxu0
        %v3331 = vadd.f32 %v3138, %v3330
        %v3332 = vpop.f32.mrb[0].mxu0
        %v3333 = vadd.f32 %v3140, %v3332
        %3334 = vmatprep.mubr.bf16.mxu0 %v1067
        %3335 = vmatmul.mubr.bf16.gmra.mrb[0].mxu0 %v1066
        %v3336 = vpop.f32.mrb[0].mxu0
        %v3337 = vadd.f32 %v3144, %v3336
        %v3338 = vpop.f32.mrb[0].mxu0
        %v3339 = vadd.f32 %v3146, %v3338
        %v3340 = vpop.f32.mrb[0].mxu0
        %v3341 = vadd.f32 %v3148, %v3340
        %v3342 = vpop.f32.mrb[0].mxu0
        %v3343 = vadd.f32 %v3150, %v3342
        %3344 = vmatprep.mubr.bf16.mxu0 %v1074
        %3345 = vmatmul.mubr.bf16.gmra.mrb[0].mxu0 %v1073
        %v3346 = vpop.f32.mrb[0].mxu0
        %v3347 = vadd.f32 %v3154, %v3346
        %v3348 = vpop.f32.mrb[0].mxu0
        %v3349 = vadd.f32 %v3156, %v3348
        %v3350 = vpop.f32.mrb[0].mxu0
        %v3351 = vadd.f32 %v3158, %v3350
        %v3352 = vpop.f32.mrb[0].mxu0
        %v3353 = vadd.f32 %v3160, %v3352
        %3354 = vmatprep.mubr.bf16.mxu0 %v1081
        %3355 = vmatmul.mubr.bf16.gmra.mrb[0].mxu0 %v1080
        %v3356 = vpop.f32.mrb[0].mxu0
        %v3357 = vadd.f32 %v3164, %v3356
        %v3358 = vpop.f32.mrb[0].mxu0
        %v3359 = vadd.f32 %v3166, %v3358
        %v3360 = vpop.f32.mrb[0].mxu0
        %v3361 = vadd.f32 %v3168, %v3360
        %v3362 = vpop.f32.mrb[0].mxu0
        %v3363 = vadd.f32 %v3170, %v3362
        %3364 = vmatprep.mubr.bf16.mxu0 %v1088
        %3365 = vmatmul.mubr.bf16.gmra.mrb[0].mxu0 %v1087
        %v3366 = vpop.f32.mrb[0].mxu0
        %v3367 = vadd.f32 %v3174, %v3366
        %v3368 = vpop.f32.mrb[0].mxu0
        %v3369 = vadd.f32 %v3176, %v3368
        %v3370 = vpop.f32.mrb[0].mxu0
        %v3371 = vadd.f32 %v3178, %v3370
        %v3372 = vpop.f32.mrb[0].mxu0
        %v3373 = vadd.f32 %v3180, %v3372
        %3374 = vdwg.mxu0
        %3375 = vmatprep.subr.bf16.mxu0 %v1907
        %3376 = vmatpush1.bf16.msra.mxu0 %v1906
        %3377 = vmatprep.subr.bf16.mxu0 %v1911
        %3378 = vmatpush1.bf16.msra.mxu0 %v1910
        %3379 = vmatprep.subr.bf16.mxu0 %v1915
        %3380 = vmatpush1.bf16.msra.mxu0 %v1914
        %3381 = vmatprep.subr.bf16.mxu0 %v1919
        %3382 = vmatpush1.bf16.msra.mxu0 %v1918
        %3383 = vmatprep.subr.bf16.mxu0 %v1923
        %3384 = vmatpush1.bf16.msra.mxu0 %v1922
        %3385 = vmatprep.subr.bf16.mxu0 %v1927
        %3386 = vmatpush1.bf16.msra.mxu0 %v1926
        %3387 = vmatprep.subr.bf16.mxu0 %v1931
        %3388 = vmatpush1.bf16.msra.mxu0 %v1930
        %3389 = vmatprep.subr.bf16.mxu0 %v1935
        %3390 = vmatpush1.bf16.msra.mxu0 %v1934
        %3391 = vmatprep.subr.bf16.mxu0 %v1939
        %3392 = vmatpush1.bf16.msra.mxu0 %v1938
        %3393 = vmatprep.subr.bf16.mxu0 %v1943
        %3394 = vmatpush1.bf16.msra.mxu0 %v1942
        %3395 = vmatprep.subr.bf16.mxu0 %v1947
        %3396 = vmatpush1.bf16.msra.mxu0 %v1946
        %3397 = vmatprep.subr.bf16.mxu0 %v1951
        %3398 = vmatpush1.bf16.msra.mxu0 %v1950
        %3399 = vmatprep.subr.bf16.mxu0 %v1955
        %3400 = vmatpush1.bf16.msra.mxu0 %v1954
        %3401 = vmatprep.subr.bf16.mxu0 %v1959
        %3402 = vmatpush1.bf16.msra.mxu0 %v1958
        %3403 = vmatprep.subr.bf16.mxu0 %v1963
        %3404 = vmatpush1.bf16.msra.mxu0 %v1962
        %3405 = vmatprep.subr.bf16.mxu0 %v1967
        %3406 = vmatpush1.bf16.msra.mxu0 %v1966
        %3407 = vmatprep.mubr.bf16.mxu0 %v985
        %3408 = vmatmul.mubr.bf16.gmra.mrb[0].mxu0 %v984
        %v3409 = vpop.f32.mrb[0].mxu0
        %v3410 = vadd.f32 %v3217, %v3409
        %v3411 = vpop.f32.mrb[0].mxu0
        %v3412 = vadd.f32 %v3219, %v3411
        %v3413 = vpop.f32.mrb[0].mxu0
        %v3414 = vadd.f32 %v3221, %v3413
        %v3415 = vpop.f32.mrb[0].mxu0
        %v3416 = vadd.f32 %v3223, %v3415
        %3417 = vmatprep.mubr.bf16.mxu0 %v992
        %3418 = vmatmul.mubr.bf16.gmra.mrb[0].mxu0 %v991
        %v3419 = vpop.f32.mrb[0].mxu0
        %v3420 = vadd.f32 %v3227, %v3419
        %v3421 = vpop.f32.mrb[0].mxu0
        %v3422 = vadd.f32 %v3229, %v3421
        %v3423 = vpop.f32.mrb[0].mxu0
        %v3424 = vadd.f32 %v3231, %v3423
        %v3425 = vpop.f32.mrb[0].mxu0
        %v3426 = vadd.f32 %v3233, %v3425
        %3427 = vmatprep.mubr.bf16.mxu0 %v999
        %3428 = vmatmul.mubr.bf16.gmra.mrb[0].mxu0 %v998
        %v3429 = vpop.f32.mrb[0].mxu0
        %v3430 = vadd.f32 %v3237, %v3429
        %v3431 = vpop.f32.mrb[0].mxu0
        %v3432 = vadd.f32 %v3239, %v3431
        %v3433 = vpop.f32.mrb[0].mxu0
        %v3434 = vadd.f32 %v3241, %v3433
        %v3435 = vpop.f32.mrb[0].mxu0
        %v3436 = vadd.f32 %v3243, %v3435
        %3437 = vmatprep.mubr.bf16.mxu0 %v1006
        %3438 = vmatmul.mubr.bf16.gmra.mrb[0].mxu0 %v1005
        %v3439 = vpop.f32.mrb[0].mxu0
        %v3440 = vadd.f32 %v3247, %v3439
        %v3441 = vpop.f32.mrb[0].mxu0
        %v3442 = vadd.f32 %v3249, %v3441
        %v3443 = vpop.f32.mrb[0].mxu0
        %v3444 = vadd.f32 %v3251, %v3443
        %v3445 = vpop.f32.mrb[0].mxu0
        %v3446 = vadd.f32 %v3253, %v3445
        %3447 = vmatprep.mubr.bf16.mxu0 %v1013
        %3448 = vmatmul.mubr.bf16.gmra.mrb[0].mxu0 %v1012
        %v3449 = vpop.f32.mrb[0].mxu0
        %v3450 = vadd.f32 %v3257, %v3449
        %v3451 = vpop.f32.mrb[0].mxu0
        %v3452 = vadd.f32 %v3259, %v3451
        %v3453 = vpop.f32.mrb[0].mxu0
        %v3454 = vadd.f32 %v3261, %v3453
        %v3455 = vpop.f32.mrb[0].mxu0
        %v3456 = vadd.f32 %v3263, %v3455
        %3457 = vmatprep.mubr.bf16.mxu0 %v1020
        %3458 = vmatmul.mubr.bf16.gmra.mrb[0].mxu0 %v1019
        %v3459 = vpop.f32.mrb[0].mxu0
        %v3460 = vadd.f32 %v3267, %v3459
        %v3461 = vpop.f32.mrb[0].mxu0
        %v3462 = vadd.f32 %v3269, %v3461
        %v3463 = vpop.f32.mrb[0].mxu0
        %v3464 = vadd.f32 %v3271, %v3463
        %v3465 = vpop.f32.mrb[0].mxu0
        %v3466 = vadd.f32 %v3273, %v3465
        %3467 = vmatprep.mubr.bf16.mxu0 %v1027
        %3468 = vmatmul.mubr.bf16.gmra.mrb[0].mxu0 %v1026
        %v3469 = vpop.f32.mrb[0].mxu0
        %v3470 = vadd.f32 %v3277, %v3469
        %v3471 = vpop.f32.mrb[0].mxu0
        %v3472 = vadd.f32 %v3279, %v3471
        %v3473 = vpop.f32.mrb[0].mxu0
        %v3474 = vadd.f32 %v3281, %v3473
        %v3475 = vpop.f32.mrb[0].mxu0
        %v3476 = vadd.f32 %v3283, %v3475
        %3477 = vmatprep.mubr.bf16.mxu0 %v1034
        %3478 = vmatmul.mubr.bf16.gmra.mrb[0].mxu0 %v1033
        %v3479 = vpop.f32.mrb[0].mxu0
        %v3480 = vadd.f32 %v3287, %v3479
        %v3481 = vpop.f32.mrb[0].mxu0
        %v3482 = vadd.f32 %v3289, %v3481
        %v3483 = vpop.f32.mrb[0].mxu0
        %v3484 = vadd.f32 %v3291, %v3483
        %v3485 = vpop.f32.mrb[0].mxu0
        %v3486 = vadd.f32 %v3293, %v3485
        %3487 = vmatprep.mubr.bf16.mxu0 %v1041
        %3488 = vmatmul.mubr.bf16.gmra.mrb[0].mxu0 %v1040
        %v3489 = vpop.f32.mrb[0].mxu0
        %v3490 = vadd.f32 %v3297, %v3489
        %v3491 = vpop.f32.mrb[0].mxu0
        %v3492 = vadd.f32 %v3299, %v3491
        %v3493 = vpop.f32.mrb[0].mxu0
        %v3494 = vadd.f32 %v3301, %v3493
        %v3495 = vpop.f32.mrb[0].mxu0
        %v3496 = vadd.f32 %v3303, %v3495
        %3497 = vmatprep.mubr.bf16.mxu0 %v1048
        %3498 = vmatmul.mubr.bf16.gmra.mrb[0].mxu0 %v1047
        %v3499 = vpop.f32.mrb[0].mxu0
        %v3500 = vadd.f32 %v3307, %v3499
        %v3501 = vpop.f32.mrb[0].mxu0
        %v3502 = vadd.f32 %v3309, %v3501
        %v3503 = vpop.f32.mrb[0].mxu0
        %v3504 = vadd.f32 %v3311, %v3503
        %v3505 = vpop.f32.mrb[0].mxu0
        %v3506 = vadd.f32 %v3313, %v3505
        %3507 = vmatprep.mubr.bf16.mxu0 %v1055
        %3508 = vmatmul.mubr.bf16.gmra.mrb[0].mxu0 %v1054
        %v3509 = vpop.f32.mrb[0].mxu0
        %v3510 = vadd.f32 %v3317, %v3509
        %v3511 = vpop.f32.mrb[0].mxu0
        %v3512 = vadd.f32 %v3319, %v3511
        %v3513 = vpop.f32.mrb[0].mxu0
        %v3514 = vadd.f32 %v3321, %v3513
        %v3515 = vpop.f32.mrb[0].mxu0
        %v3516 = vadd.f32 %v3323, %v3515
        %3517 = vmatprep.mubr.bf16.mxu0 %v1062
        %3518 = vmatmul.mubr.bf16.gmra.mrb[0].mxu0 %v1061
        %v3519 = vpop.f32.mrb[0].mxu0
        %v3520 = vadd.f32 %v3327, %v3519
        %v3521 = vpop.f32.mrb[0].mxu0
        %v3522 = vadd.f32 %v3329, %v3521
        %v3523 = vpop.f32.mrb[0].mxu0
        %v3524 = vadd.f32 %v3331, %v3523
        %v3525 = vpop.f32.mrb[0].mxu0
        %v3526 = vadd.f32 %v3333, %v3525
        %3527 = vmatprep.mubr.bf16.mxu0 %v1069
        %3528 = vmatmul.mubr.bf16.gmra.mrb[0].mxu0 %v1068
        %v3529 = vpop.f32.mrb[0].mxu0
        %v3530 = vadd.f32 %v3337, %v3529
        %v3531 = vpop.f32.mrb[0].mxu0
        %v3532 = vadd.f32 %v3339, %v3531
        %v3533 = vpop.f32.mrb[0].mxu0
        %v3534 = vadd.f32 %v3341, %v3533
        %v3535 = vpop.f32.mrb[0].mxu0
        %v3536 = vadd.f32 %v3343, %v3535
        %3537 = vmatprep.mubr.bf16.mxu0 %v1076
        %3538 = vmatmul.mubr.bf16.gmra.mrb[0].mxu0 %v1075
        %v3539 = vpop.f32.mrb[0].mxu0
        %v3540 = vadd.f32 %v3347, %v3539
        %v3541 = vpop.f32.mrb[0].mxu0
        %v3542 = vadd.f32 %v3349, %v3541
        %v3543 = vpop.f32.mrb[0].mxu0
        %v3544 = vadd.f32 %v3351, %v3543
        %v3545 = vpop.f32.mrb[0].mxu0
        %v3546 = vadd.f32 %v3353, %v3545
        %3547 = vmatprep.mubr.bf16.mxu0 %v1083
        %3548 = vmatmul.mubr.bf16.gmra.mrb[0].mxu0 %v1082
        %v3549 = vpop.f32.mrb[0].mxu0
        %v3550 = vadd.f32 %v3357, %v3549
        %v3551 = vpop.f32.mrb[0].mxu0
        %v3552 = vadd.f32 %v3359, %v3551
        %v3553 = vpop.f32.mrb[0].mxu0
        %v3554 = vadd.f32 %v3361, %v3553
        %v3555 = vpop.f32.mrb[0].mxu0
        %v3556 = vadd.f32 %v3363, %v3555
        %3557 = vmatprep.mubr.bf16.mxu0 %v1090
        %3558 = vmatmul.mubr.bf16.gmra.mrb[0].mxu0 %v1089
        %v3559 = vpop.f32.mrb[0].mxu0
        %v3560 = vadd.f32 %v3367, %v3559
        %v3561 = vpop.f32.mrb[0].mxu0
        %v3562 = vadd.f32 %v3369, %v3561
        %v3563 = vpop.f32.mrb[0].mxu0
        %v3564 = vadd.f32 %v3371, %v3563
        %v3565 = vpop.f32.mrb[0].mxu0
        %v3566 = vadd.f32 %v3373, %v3565
        %3567 = vdwg.mxu0
        %3568 = vmatprep.subr.bf16.mxu0 %v1971
        %3569 = vmatpush1.bf16.msra.mxu0 %v1970
        %3570 = vmatprep.subr.bf16.mxu0 0
        %3571 = vmatpush1.bf16.msra.mxu0 0
        %3572 = vmatprep.subr.bf16.mxu0 0
        %3573 = vmatpush1.bf16.msra.mxu0 0
        %3574 = vmatprep.subr.bf16.mxu0 0
        %3575 = vmatpush1.bf16.msra.mxu0 0
        %3576 = vmatprep.subr.bf16.mxu0 0
        %3577 = vmatpush1.bf16.msra.mxu0 0
        %3578 = vmatprep.subr.bf16.mxu0 0
        %3579 = vmatpush1.bf16.msra.mxu0 0
        %3580 = vmatprep.subr.bf16.mxu0 0
        %3581 = vmatpush1.bf16.msra.mxu0 0
        %3582 = vmatprep.subr.bf16.mxu0 0
        %3583 = vmatpush1.bf16.msra.mxu0 0
        %3584 = vmatprep.subr.bf16.mxu0 0
        %3585 = vmatpush1.bf16.msra.mxu0 0
        %3586 = vmatprep.subr.bf16.mxu0 0
        %3587 = vmatpush1.bf16.msra.mxu0 0
        %3588 = vmatprep.subr.bf16.mxu0 0
        %3589 = vmatpush1.bf16.msra.mxu0 0
        %3590 = vmatprep.subr.bf16.mxu0 0
        %3591 = vmatpush1.bf16.msra.mxu0 0
        %3592 = vmatprep.subr.bf16.mxu0 0
        %3593 = vmatpush1.bf16.msra.mxu0 0
        %3594 = vmatprep.subr.bf16.mxu0 0
        %3595 = vmatpush1.bf16.msra.mxu0 0
        %3596 = vmatprep.subr.bf16.mxu0 0
        %3597 = vmatpush1.bf16.msra.mxu0 0
        %3598 = vmatprep.subr.bf16.mxu0 0
        %3599 = vmatpush1.bf16.msra.mxu0 0
        %3600 = vmatprep.mubr.bf16.mxu0 0
        %3601 = vmatmul.mubr.bf16.gmra.mrb[0].mxu0 %v2170
        %v3602 = vpop.f32.mrb[0].mxu0
        %v3603 = vadd.f32 %v3410, %v3602
        %v3604 = vpop.f32.mrb[0].mxu0
        %v3605 = vadd.f32 %v3412, %v3604
        %v3606 = vpop.f32.mrb[0].mxu0
        %v3607 = vadd.f32 %v3414, %v3606
        %v3608 = vpop.f32.mrb[0].mxu0
        %v3609 = vadd.f32 %v3416, %v3608
        %3610 = vmatprep.mubr.bf16.mxu0 0
        %3611 = vmatmul.mubr.bf16.gmra.mrb[0].mxu0 %v2173
        %v3612 = vpop.f32.mrb[0].mxu0
        %v3613 = vadd.f32 %v3420, %v3612
        %v3614 = vpop.f32.mrb[0].mxu0
        %v3615 = vadd.f32 %v3422, %v3614
        %v3616 = vpop.f32.mrb[0].mxu0
        %v3617 = vadd.f32 %v3424, %v3616
        %v3618 = vpop.f32.mrb[0].mxu0
        %v3619 = vadd.f32 %v3426, %v3618
        %3620 = vmatprep.mubr.bf16.mxu0 0
        %3621 = vmatmul.mubr.bf16.gmra.mrb[0].mxu0 %v2176
        %v3622 = vpop.f32.mrb[0].mxu0
        %v3623 = vadd.f32 %v3430, %v3622
        %v3624 = vpop.f32.mrb[0].mxu0
        %v3625 = vadd.f32 %v3432, %v3624
        %v3626 = vpop.f32.mrb[0].mxu0
        %v3627 = vadd.f32 %v3434, %v3626
        %v3628 = vpop.f32.mrb[0].mxu0
        %v3629 = vadd.f32 %v3436, %v3628
        %3630 = vmatprep.mubr.bf16.mxu0 0
        %3631 = vmatmul.mubr.bf16.gmra.mrb[0].mxu0 %v2179
        %v3632 = vpop.f32.mrb[0].mxu0
        %v3633 = vadd.f32 %v3440, %v3632
        %v3634 = vpop.f32.mrb[0].mxu0
        %v3635 = vadd.f32 %v3442, %v3634
        %v3636 = vpop.f32.mrb[0].mxu0
        %v3637 = vadd.f32 %v3444, %v3636
        %v3638 = vpop.f32.mrb[0].mxu0
        %v3639 = vadd.f32 %v3446, %v3638
        %3640 = vmatprep.mubr.bf16.mxu0 0
        %3641 = vmatmul.mubr.bf16.gmra.mrb[0].mxu0 %v2182
        %v3642 = vpop.f32.mrb[0].mxu0
        %v3643 = vadd.f32 %v3450, %v3642
        %v3644 = vpop.f32.mrb[0].mxu0
        %v3645 = vadd.f32 %v3452, %v3644
        %v3646 = vpop.f32.mrb[0].mxu0
        %v3647 = vadd.f32 %v3454, %v3646
        %v3648 = vpop.f32.mrb[0].mxu0
        %v3649 = vadd.f32 %v3456, %v3648
        %3650 = vmatprep.mubr.bf16.mxu0 0
        %3651 = vmatmul.mubr.bf16.gmra.mrb[0].mxu0 %v2185
        %v3652 = vpop.f32.mrb[0].mxu0
        %v3653 = vadd.f32 %v3460, %v3652
        %v3654 = vpop.f32.mrb[0].mxu0
        %v3655 = vadd.f32 %v3462, %v3654
        %v3656 = vpop.f32.mrb[0].mxu0
        %v3657 = vadd.f32 %v3464, %v3656
        %v3658 = vpop.f32.mrb[0].mxu0
        %v3659 = vadd.f32 %v3466, %v3658
        %3660 = vmatprep.mubr.bf16.mxu0 0
        %3661 = vmatmul.mubr.bf16.gmra.mrb[0].mxu0 %v2188
        %v3662 = vpop.f32.mrb[0].mxu0
        %v3663 = vadd.f32 %v3470, %v3662
        %v3664 = vpop.f32.mrb[0].mxu0
        %v3665 = vadd.f32 %v3472, %v3664
        %v3666 = vpop.f32.mrb[0].mxu0
        %v3667 = vadd.f32 %v3474, %v3666
        %v3668 = vpop.f32.mrb[0].mxu0
        %v3669 = vadd.f32 %v3476, %v3668
        %3670 = vmatprep.mubr.bf16.mxu0 0
        %3671 = vmatmul.mubr.bf16.gmra.mrb[0].mxu0 %v2191
        %v3672 = vpop.f32.mrb[0].mxu0
        %v3673 = vadd.f32 %v3480, %v3672
        %v3674 = vpop.f32.mrb[0].mxu0
        %v3675 = vadd.f32 %v3482, %v3674
        %v3676 = vpop.f32.mrb[0].mxu0
        %v3677 = vadd.f32 %v3484, %v3676
        %v3678 = vpop.f32.mrb[0].mxu0
        %v3679 = vadd.f32 %v3486, %v3678
        %3680 = vmatprep.mubr.bf16.mxu0 0
        %3681 = vmatmul.mubr.bf16.gmra.mrb[0].mxu0 %v2194
        %v3682 = vpop.f32.mrb[0].mxu0
        %v3683 = vadd.f32 %v3490, %v3682
        %v3684 = vpop.f32.mrb[0].mxu0
        %v3685 = vadd.f32 %v3492, %v3684
        %v3686 = vpop.f32.mrb[0].mxu0
        %v3687 = vadd.f32 %v3494, %v3686
        %v3688 = vpop.f32.mrb[0].mxu0
        %v3689 = vadd.f32 %v3496, %v3688
        %3690 = vmatprep.mubr.bf16.mxu0 0
        %3691 = vmatmul.mubr.bf16.gmra.mrb[0].mxu0 %v2197
        %v3692 = vpop.f32.mrb[0].mxu0
        %v3693 = vadd.f32 %v3500, %v3692
        %v3694 = vpop.f32.mrb[0].mxu0
        %v3695 = vadd.f32 %v3502, %v3694
        %v3696 = vpop.f32.mrb[0].mxu0
        %v3697 = vadd.f32 %v3504, %v3696
        %v3698 = vpop.f32.mrb[0].mxu0
        %v3699 = vadd.f32 %v3506, %v3698
        %3700 = vmatprep.mubr.bf16.mxu0 0
        %3701 = vmatmul.mubr.bf16.gmra.mrb[0].mxu0 %v2200
        %v3702 = vpop.f32.mrb[0].mxu0
        %v3703 = vadd.f32 %v3510, %v3702
        %v3704 = vpop.f32.mrb[0].mxu0
        %v3705 = vadd.f32 %v3512, %v3704
        %v3706 = vpop.f32.mrb[0].mxu0
        %v3707 = vadd.f32 %v3514, %v3706
        %v3708 = vpop.f32.mrb[0].mxu0
        %v3709 = vadd.f32 %v3516, %v3708
        %3710 = vmatprep.mubr.bf16.mxu0 0
        %3711 = vmatmul.mubr.bf16.gmra.mrb[0].mxu0 %v2203
        %v3712 = vpop.f32.mrb[0].mxu0
        %v3713 = vadd.f32 %v3520, %v3712
        %v3714 = vpop.f32.mrb[0].mxu0
        %v3715 = vadd.f32 %v3522, %v3714
        %v3716 = vpop.f32.mrb[0].mxu0
        %v3717 = vadd.f32 %v3524, %v3716
        %v3718 = vpop.f32.mrb[0].mxu0
        %v3719 = vadd.f32 %v3526, %v3718
        %3720 = vmatprep.mubr.bf16.mxu0 0
        %3721 = vmatmul.mubr.bf16.gmra.mrb[0].mxu0 %v2206
        %v3722 = vpop.f32.mrb[0].mxu0
        %v3723 = vadd.f32 %v3530, %v3722
        %v3724 = vpop.f32.mrb[0].mxu0
        %v3725 = vadd.f32 %v3532, %v3724
        %v3726 = vpop.f32.mrb[0].mxu0
        %v3727 = vadd.f32 %v3534, %v3726
        %v3728 = vpop.f32.mrb[0].mxu0
        %v3729 = vadd.f32 %v3536, %v3728
        %3730 = vmatprep.mubr.bf16.mxu0 0
        %3731 = vmatmul.mubr.bf16.gmra.mrb[0].mxu0 %v2209
        %v3732 = vpop.f32.mrb[0].mxu0
        %v3733 = vadd.f32 %v3540, %v3732
        %v3734 = vpop.f32.mrb[0].mxu0
        %v3735 = vadd.f32 %v3542, %v3734
        %v3736 = vpop.f32.mrb[0].mxu0
        %v3737 = vadd.f32 %v3544, %v3736
        %v3738 = vpop.f32.mrb[0].mxu0
        %v3739 = vadd.f32 %v3546, %v3738
        %3740 = vmatprep.mubr.bf16.mxu0 0
        %3741 = vmatmul.mubr.bf16.gmra.mrb[0].mxu0 %v2212
        %v3742 = vpop.f32.mrb[0].mxu0
        %v3743 = vadd.f32 %v3550, %v3742
        %v3744 = vpop.f32.mrb[0].mxu0
        %v3745 = vadd.f32 %v3552, %v3744
        %v3746 = vpop.f32.mrb[0].mxu0
        %v3747 = vadd.f32 %v3554, %v3746
        %v3748 = vpop.f32.mrb[0].mxu0
        %v3749 = vadd.f32 %v3556, %v3748
        %3750 = vmatprep.mubr.bf16.mxu0 0
        %3751 = vmatmul.mubr.bf16.gmra.mrb[0].mxu0 %v2215
        %v3752 = vpop.f32.mrb[0].mxu0
        %v3753 = vadd.f32 %v3560, %v3752
        %v3754 = vpop.f32.mrb[0].mxu0
        %v3755 = vadd.f32 %v3562, %v3754
        %v3756 = vpop.f32.mrb[0].mxu0
        %v3757 = vadd.f32 %v3564, %v3756
        %v3758 = vpop.f32.mrb[0].mxu0
        %v3759 = vadd.f32 %v3566, %v3758
        %3760 = vdwg.mxu0
        %v3761 = vmax.f32 %v2831, 0.0
        %v3762 = vmax.f32 %v2833, 0.0
        %v3763 = vmax.f32 %v3603, 0.0
        %v3764 = vmax.f32 %v3605, 0.0
        %v3765 = vmax.f32 %v2835, 0.0
        %v3766 = vmax.f32 %v2837, 0.0
        %v3767 = vmax.f32 %v3607, 0.0
        %v3768 = vmax.f32 %v3609, 0.0
        %v3769 = vmax.f32 %v2841, 0.0
        %v3770 = vmax.f32 %v2843, 0.0
        %v3771 = vmax.f32 %v3613, 0.0
        %v3772 = vmax.f32 %v3615, 0.0
        %v3773 = vmax.f32 %v2845, 0.0
        %v3774 = vmax.f32 %v2847, 0.0
        %v3775 = vmax.f32 %v3617, 0.0
        %v3776 = vmax.f32 %v3619, 0.0
        %v3777 = vmax.f32 %v2851, 0.0
        %v3778 = vmax.f32 %v2853, 0.0
        %v3779 = vmax.f32 %v3623, 0.0
        %v3780 = vmax.f32 %v3625, 0.0
        %v3781 = vmax.f32 %v2855, 0.0
        %v3782 = vmax.f32 %v2857, 0.0
        %v3783 = vmax.f32 %v3627, 0.0
        %v3784 = vmax.f32 %v3629, 0.0
        %v3785 = vmax.f32 %v2861, 0.0
        %v3786 = vmax.f32 %v2863, 0.0
        %v3787 = vmax.f32 %v3633, 0.0
        %v3788 = vmax.f32 %v3635, 0.0
        %v3789 = vmax.f32 %v2865, 0.0
        %v3790 = vmax.f32 %v2867, 0.0
        %v3791 = vmax.f32 %v3637, 0.0
        %v3792 = vmax.f32 %v3639, 0.0
        %v3793 = vmax.f32 %v2871, 0.0
        %v3794 = vmax.f32 %v2873, 0.0
        %v3795 = vmax.f32 %v3643, 0.0
        %v3796 = vmax.f32 %v3645, 0.0
        %v3797 = vmax.f32 %v2875, 0.0
        %v3798 = vmax.f32 %v2877, 0.0
        %v3799 = vmax.f32 %v3647, 0.0
        %v3800 = vmax.f32 %v3649, 0.0
        %v3801 = vmax.f32 %v2881, 0.0
        %v3802 = vmax.f32 %v2883, 0.0
        %v3803 = vmax.f32 %v3653, 0.0
        %v3804 = vmax.f32 %v3655, 0.0
        %v3805 = vmax.f32 %v2885, 0.0
        %v3806 = vmax.f32 %v2887, 0.0
        %v3807 = vmax.f32 %v3657, 0.0
        %v3808 = vmax.f32 %v3659, 0.0
        %v3809 = vmax.f32 %v2891, 0.0
        %v3810 = vmax.f32 %v2893, 0.0
        %v3811 = vmax.f32 %v3663, 0.0
        %v3812 = vmax.f32 %v3665, 0.0
        %v3813 = vmax.f32 %v2895, 0.0
        %v3814 = vmax.f32 %v2897, 0.0
        %v3815 = vmax.f32 %v3667, 0.0
        %v3816 = vmax.f32 %v3669, 0.0
        %v3817 = vmax.f32 %v2901, 0.0
        %v3818 = vmax.f32 %v2903, 0.0
        %v3819 = vmax.f32 %v3673, 0.0
        %v3820 = vmax.f32 %v3675, 0.0
        %v3821 = vmax.f32 %v2905, 0.0
        %v3822 = vmax.f32 %v2907, 0.0
        %v3823 = vmax.f32 %v3677, 0.0
        %v3824 = vmax.f32 %v3679, 0.0
        %v3825 = vmax.f32 %v2911, 0.0
        %v3826 = vmax.f32 %v2913, 0.0
        %v3827 = vmax.f32 %v3683, 0.0
        %v3828 = vmax.f32 %v3685, 0.0
        %v3829 = vmax.f32 %v2915, 0.0
        %v3830 = vmax.f32 %v2917, 0.0
        %v3831 = vmax.f32 %v3687, 0.0
        %v3832 = vmax.f32 %v3689, 0.0
        %v3833 = vmax.f32 %v2921, 0.0
        %v3834 = vmax.f32 %v2923, 0.0
        %v3835 = vmax.f32 %v3693, 0.0
        %v3836 = vmax.f32 %v3695, 0.0
        %v3837 = vmax.f32 %v2925, 0.0
        %v3838 = vmax.f32 %v2927, 0.0
        %v3839 = vmax.f32 %v3697, 0.0
        %v3840 = vmax.f32 %v3699, 0.0
        %v3841 = vmax.f32 %v2931, 0.0
        %v3842 = vmax.f32 %v2933, 0.0
        %v3843 = vmax.f32 %v3703, 0.0
        %v3844 = vmax.f32 %v3705, 0.0
        %v3845 = vmax.f32 %v2935, 0.0
        %v3846 = vmax.f32 %v2937, 0.0
        %v3847 = vmax.f32 %v3707, 0.0
        %v3848 = vmax.f32 %v3709, 0.0
        %v3849 = vmax.f32 %v2941, 0.0
        %v3850 = vmax.f32 %v2943, 0.0
        %v3851 = vmax.f32 %v3713, 0.0
        %v3852 = vmax.f32 %v3715, 0.0
        %v3853 = vmax.f32 %v2945, 0.0
        %v3854 = vmax.f32 %v2947, 0.0
        %v3855 = vmax.f32 %v3717, 0.0
        %v3856 = vmax.f32 %v3719, 0.0
        %v3857 = vmax.f32 %v2951, 0.0
        %v3858 = vmax.f32 %v2953, 0.0
        %v3859 = vmax.f32 %v3723, 0.0
        %v3860 = vmax.f32 %v3725, 0.0
        %v3861 = vmax.f32 %v2955, 0.0
        %v3862 = vmax.f32 %v2957, 0.0
        %v3863 = vmax.f32 %v3727, 0.0
        %v3864 = vmax.f32 %v3729, 0.0
        %v3865 = vmax.f32 %v2961, 0.0
        %v3866 = vmax.f32 %v2963, 0.0
        %v3867 = vmax.f32 %v3733, 0.0
        %v3868 = vmax.f32 %v3735, 0.0
        %v3869 = vmax.f32 %v2965, 0.0
        %v3870 = vmax.f32 %v2967, 0.0
        %v3871 = vmax.f32 %v3737, 0.0
        %v3872 = vmax.f32 %v3739, 0.0
        %v3873 = vmax.f32 %v2971, 0.0
        %v3874 = vmax.f32 %v2973, 0.0
        %v3875 = vmax.f32 %v3743, 0.0
        %v3876 = vmax.f32 %v3745, 0.0
        %v3877 = vmax.f32 %v2975, 0.0
        %v3878 = vmax.f32 %v2977, 0.0
        %v3879 = vmax.f32 %v3747, 0.0
        %v3880 = vmax.f32 %v3749, 0.0
        %v3881 = vmax.f32 %v2981, 0.0
        %v3882 = vmax.f32 %v2983, 0.0
        %v3883 = vmax.f32 %v3753, 0.0
        %v3884 = vmax.f32 %v3755, 0.0
        %v3885 = vmax.f32 %v2985, 0.0
        %v3886 = vmax.f32 %v2987, 0.0
        %v3887 = vmax.f32 %v3757, 0.0
        %v3888 = vmax.f32 %v3759, 0.0
        %v3889 = vld [vmem:[%s278] sm:$0xff]
        %v3890 = vld [vmem:[%s278 + $0x8] sm:$0xff]
        %v3891 = vld [vmem:[%s278 + $0x10] sm:$0xff]
        %v3892 = vld [vmem:[%s278 + $0x18] sm:$0xff]
        %v3893 = vld [vmem:[%s278 + $0x20] sm:$0xff]
        %v3894 = vld [vmem:[%s278 + $0x28] sm:$0xff]
        %v3895 = vld [vmem:[%s278 + $0x30] sm:$0xff]
        %v3896 = vld [vmem:[%s278 + $0x38] sm:$0xff]
        %v3897 = vld [vmem:[%s278 + $0x40] sm:$0xff]
        %v3898 = vld [vmem:[%s278 + $0x48] sm:$0xff]
        %v3899 = vld [vmem:[%s278 + $0x50] sm:$0xff]
        %v3900 = vld [vmem:[%s278 + $0x58] sm:$0xff]
        %v3901 = vld [vmem:[%s278 + $0x60] sm:$0xff]
        %v3902 = vld [vmem:[%s278 + $0x68] sm:$0xff]
        %v3903 = vld [vmem:[%s278 + $0x70] sm:$0xff]
        %v3904 = vld [vmem:[%s278 + $0x78] sm:$0xff]
        %v3905 = vld [vmem:[%s278 + $0x80] sm:$0xff]
        %v3906 = vld [vmem:[%s278 + $0x88] sm:$0xff]
        %v3907 = vld [vmem:[%s278 + $0x90] sm:$0xff]
        %v3908 = vld [vmem:[%s278 + $0x98] sm:$0xff]
        %v3909 = vld [vmem:[%s278 + $0xa0] sm:$0xff]
        %v3910 = vld [vmem:[%s278 + $0xa8] sm:$0xff]
        %v3911 = vld [vmem:[%s278 + $0xb0] sm:$0xff]
        %v3912 = vld [vmem:[%s278 + $0xb8] sm:$0xff]
        %v3913 = vld [vmem:[%s278 + $0xc0] sm:$0xff]
        %v3914 = vld [vmem:[%s278 + $0xc8] sm:$0xff]
        %v3915 = vld [vmem:[%s278 + $0xd0] sm:$0xff]
        %v3916 = vld [vmem:[%s278 + $0xd8] sm:$0xff]
        %v3917 = vld [vmem:[%s278 + $0xe0] sm:$0xff]
        %v3918 = vld [vmem:[%s278 + $0xe8] sm:$0xff]
        %v3919 = vld [vmem:[%s278 + $0xf0] sm:$0xff]
        %v3920 = vld [vmem:[%s278 + $0xf8] sm:$0xff]
        %v3921 = vld [vmem:[%s278 + $0x100] sm:$0xff]
        %v3922 = vld [vmem:[%s278 + $0x108] sm:$0xff]
        %v3923 = vld [vmem:[%s278 + $0x110] sm:$0xff]
        %v3924 = vld [vmem:[%s278 + $0x118] sm:$0xff]
        %v3925 = vld [vmem:[%s278 + $0x120] sm:$0xff]
        %v3926 = vld [vmem:[%s278 + $0x128] sm:$0xff]
        %v3927 = vld [vmem:[%s278 + $0x130] sm:$0xff]
        %v3928 = vld [vmem:[%s278 + $0x138] sm:$0xff]
        %v3929 = vld [vmem:[%s278 + $0x140] sm:$0xff]
        %v3930 = vld [vmem:[%s278 + $0x148] sm:$0xff]
        %v3931 = vld [vmem:[%s278 + $0x150] sm:$0xff]
        %v3932 = vld [vmem:[%s278 + $0x158] sm:$0xff]
        %v3933 = vld [vmem:[%s278 + $0x160] sm:$0xff]
        %v3934 = vld [vmem:[%s278 + $0x168] sm:$0xff]
        %v3935 = vld [vmem:[%s278 + $0x170] sm:$0xff]
        %v3936 = vld [vmem:[%s278 + $0x178] sm:$0xff]
        %v3937 = vld [vmem:[%s278 + $0x180] sm:$0xff]
        %v3938 = vld [vmem:[%s278 + $0x188] sm:$0xff]
        %v3939 = vld [vmem:[%s278 + $0x190] sm:$0xff]
        %v3940 = vld [vmem:[%s278 + $0x198] sm:$0xff]
        %v3941 = vld [vmem:[%s278 + $0x1a0] sm:$0xff]
        %v3942 = vld [vmem:[%s278 + $0x1a8] sm:$0xff]
        %v3943 = vld [vmem:[%s278 + $0x1b0] sm:$0xff]
        %v3944 = vld [vmem:[%s278 + $0x1b8] sm:$0xff]
        %v3945 = vld [vmem:[%s278 + $0x1c0] sm:$0xff]
        %v3946 = vld [vmem:[%s278 + $0x1c8] sm:$0xff]
        %v3947 = vld [vmem:[%s278 + $0x1d0] sm:$0xff]
        %v3948 = vld [vmem:[%s278 + $0x1d8] sm:$0xff]
        %v3949 = vld [vmem:[%s278 + $0x1e0] sm:$0xff]
        %v3950 = vld [vmem:[%s278 + $0x1e8] sm:$0xff]
        %v3951 = vld [vmem:[%s278 + $0x1f0] sm:$0xff]
        %v3952 = vld [vmem:[%s278 + $0x1f8] sm:$0xff]
        %v3953 = vld [vmem:[%s278 + $0x200] sm:$0xff]
        %v3954 = vld [vmem:[%s278 + $0x208] sm:$0xff]
        %v3955 = vld [vmem:[%s278 + $0x210] sm:$0xff]
        %v3956 = vld [vmem:[%s278 + $0x218] sm:$0xff]
        %v3957 = vld [vmem:[%s278 + $0x220] sm:$0xff]
        %v3958 = vld [vmem:[%s278 + $0x228] sm:$0xff]
        %v3959 = vld [vmem:[%s278 + $0x230] sm:$0xff]
        %v3960 = vld [vmem:[%s278 + $0x238] sm:$0xff]
        %v3961 = vld [vmem:[%s278 + $0x240] sm:$0xff]
        %v3962 = vld [vmem:[%s278 + $0x248] sm:$0xff]
        %v3963 = vld [vmem:[%s278 + $0x250] sm:$0xff]
        %v3964 = vld [vmem:[%s278 + $0x258] sm:$0xff]
        %v3965 = vld [vmem:[%s278 + $0x260] sm:$0xff]
        %v3966 = vld [vmem:[%s278 + $0x268] sm:$0xff]
        %v3967 = vld [vmem:[%s278 + $0x270] sm:$0xff]
        %v3968 = vld [vmem:[%s278 + $0x278] sm:$0xff]
        %v3969 = vld [vmem:[%s278 + $0x280] sm:$0xff]
        %v3970 = vld [vmem:[%s278 + $0x288] sm:$0xff]
        %v3971 = vld [vmem:[%s278 + $0x290] sm:$0xff]
        %v3972 = vld [vmem:[%s278 + $0x298] sm:$0xff]
        %v3973 = vld [vmem:[%s278 + $0x2a0] sm:$0xff]
        %v3974 = vld [vmem:[%s278 + $0x2a8] sm:$0xff]
        %v3975 = vld [vmem:[%s278 + $0x2b0] sm:$0xff]
        %v3976 = vld [vmem:[%s278 + $0x2b8] sm:$0xff]
        %v3977 = vld [vmem:[%s278 + $0x2c0] sm:$0xff]
        %v3978 = vld [vmem:[%s278 + $0x2c8] sm:$0xff]
        %v3979 = vld [vmem:[%s278 + $0x2d0] sm:$0xff]
        %v3980 = vld [vmem:[%s278 + $0x2d8] sm:$0xff]
        %v3981 = vld [vmem:[%s278 + $0x2e0] sm:$0xff]
        %v3982 = vld [vmem:[%s278 + $0x2e8] sm:$0xff]
        %v3983 = vld [vmem:[%s278 + $0x2f0] sm:$0xff]
        %v3984 = vld [vmem:[%s278 + $0x2f8] sm:$0xff]
        %v3985 = vld [vmem:[%s278 + $0x300] sm:$0xff]
        %v3986 = vld [vmem:[%s278 + $0x308] sm:$0xff]
        %v3987 = vld [vmem:[%s278 + $0x310] sm:$0xff]
        %v3988 = vld [vmem:[%s278 + $0x318] sm:$0xff]
        %v3989 = vld [vmem:[%s278 + $0x320] sm:$0xff]
        %v3990 = vld [vmem:[%s278 + $0x328] sm:$0xff]
        %v3991 = vld [vmem:[%s278 + $0x330] sm:$0xff]
        %v3992 = vld [vmem:[%s278 + $0x338] sm:$0xff]
        %v3993 = vld [vmem:[%s278 + $0x340] sm:$0xff]
        %v3994 = vld [vmem:[%s278 + $0x348] sm:$0xff]
        %v3995 = vld [vmem:[%s278 + $0x350] sm:$0xff]
        %v3996 = vld [vmem:[%s278 + $0x358] sm:$0xff]
        %v3997 = vld [vmem:[%s278 + $0x360] sm:$0xff]
        %v3998 = vld [vmem:[%s278 + $0x368] sm:$0xff]
        %v3999 = vld [vmem:[%s278 + $0x370] sm:$0xff]
        %v4000 = vld [vmem:[%s278 + $0x378] sm:$0xff]
        %v4001 = vld [vmem:[%s278 + $0x380] sm:$0xff]
        %v4002 = vld [vmem:[%s278 + $0x388] sm:$0xff]
        %v4003 = vld [vmem:[%s278 + $0x390] sm:$0xff]
        %v4004 = vld [vmem:[%s278 + $0x398] sm:$0xff]
        %v4005 = vld [vmem:[%s278 + $0x3a0] sm:$0xff]
        %v4006 = vld [vmem:[%s278 + $0x3a8] sm:$0xff]
        %v4007 = vld [vmem:[%s278 + $0x3b0] sm:$0xff]
        %v4008 = vld [vmem:[%s278 + $0x3b8] sm:$0xff]
        %v4009 = vld [vmem:[%s278 + $0x3c0] sm:$0xff]
        %v4010 = vld [vmem:[%s278 + $0x3c8] sm:$0xff]
        %v4011 = vld [vmem:[%s278 + $0x3d0] sm:$0xff]
        %v4012 = vld [vmem:[%s278 + $0x3d8] sm:$0xff]
        %v4013 = vld [vmem:[%s278 + $0x3e0] sm:$0xff]
        %v4014 = vld [vmem:[%s278 + $0x3e8] sm:$0xff]
        %v4015 = vld [vmem:[%s278 + $0x3f0] sm:$0xff]
        %v4016 = vld [vmem:[%s278 + $0x3f8] sm:$0xff]
        %v4017 = vmul.f32 %v3761, %v3889
        %v4018 = vmul.f32 %v3762, %v3890
        %v4019 = vmul.f32 %v3763, %v3891
        %v4020 = vmul.f32 %v3764, %v3892
        %v4021 = vmul.f32 %v3765, %v3893
        %v4022 = vmul.f32 %v3766, %v3894
        %v4023 = vmul.f32 %v3767, %v3895
        %v4024 = vmul.f32 %v3768, %v3896
        %v4025 = vmul.f32 %v3769, %v3897
        %v4026 = vmul.f32 %v3770, %v3898
        %v4027 = vmul.f32 %v3771, %v3899
        %v4028 = vmul.f32 %v3772, %v3900
        %v4029 = vmul.f32 %v3773, %v3901
        %v4030 = vmul.f32 %v3774, %v3902
        %v4031 = vmul.f32 %v3775, %v3903
        %v4032 = vmul.f32 %v3776, %v3904
        %v4033 = vmul.f32 %v3777, %v3905
        %v4034 = vmul.f32 %v3778, %v3906
        %v4035 = vmul.f32 %v3779, %v3907
        %v4036 = vmul.f32 %v3780, %v3908
        %v4037 = vmul.f32 %v3781, %v3909
        %v4038 = vmul.f32 %v3782, %v3910
        %v4039 = vmul.f32 %v3783, %v3911
        %v4040 = vmul.f32 %v3784, %v3912
        %v4041 = vmul.f32 %v3785, %v3913
        %v4042 = vmul.f32 %v3786, %v3914
        %v4043 = vmul.f32 %v3787, %v3915
        %v4044 = vmul.f32 %v3788, %v3916
        %v4045 = vmul.f32 %v3789, %v3917
        %v4046 = vmul.f32 %v3790, %v3918
        %v4047 = vmul.f32 %v3791, %v3919
        %v4048 = vmul.f32 %v3792, %v3920
        %v4049 = vmul.f32 %v3793, %v3921
        %v4050 = vmul.f32 %v3794, %v3922
        %v4051 = vmul.f32 %v3795, %v3923
        %v4052 = vmul.f32 %v3796, %v3924
        %v4053 = vmul.f32 %v3797, %v3925
        %v4054 = vmul.f32 %v3798, %v3926
        %v4055 = vmul.f32 %v3799, %v3927
        %v4056 = vmul.f32 %v3800, %v3928
        %v4057 = vmul.f32 %v3801, %v3929
        %v4058 = vmul.f32 %v3802, %v3930
        %v4059 = vmul.f32 %v3803, %v3931
        %v4060 = vmul.f32 %v3804, %v3932
        %v4061 = vmul.f32 %v3805, %v3933
        %v4062 = vmul.f32 %v3806, %v3934
        %v4063 = vmul.f32 %v3807, %v3935
        %v4064 = vmul.f32 %v3808, %v3936
        %v4065 = vmul.f32 %v3809, %v3937
        %v4066 = vmul.f32 %v3810, %v3938
        %v4067 = vmul.f32 %v3811, %v3939
        %v4068 = vmul.f32 %v3812, %v3940
        %v4069 = vmul.f32 %v3813, %v3941
        %v4070 = vmul.f32 %v3814, %v3942
        %v4071 = vmul.f32 %v3815, %v3943
        %v4072 = vmul.f32 %v3816, %v3944
        %v4073 = vmul.f32 %v3817, %v3945
        %v4074 = vmul.f32 %v3818, %v3946
        %v4075 = vmul.f32 %v3819, %v3947
        %v4076 = vmul.f32 %v3820, %v3948
        %v4077 = vmul.f32 %v3821, %v3949
        %v4078 = vmul.f32 %v3822, %v3950
        %v4079 = vmul.f32 %v3823, %v3951
        %v4080 = vmul.f32 %v3824, %v3952
        %v4081 = vmul.f32 %v3825, %v3953
        %v4082 = vmul.f32 %v3826, %v3954
        %v4083 = vmul.f32 %v3827, %v3955
        %v4084 = vmul.f32 %v3828, %v3956
        %v4085 = vmul.f32 %v3829, %v3957
        %v4086 = vmul.f32 %v3830, %v3958
        %v4087 = vmul.f32 %v3831, %v3959
        %v4088 = vmul.f32 %v3832, %v3960
        %v4089 = vmul.f32 %v3833, %v3961
        %v4090 = vmul.f32 %v3834, %v3962
        %v4091 = vmul.f32 %v3835, %v3963
        %v4092 = vmul.f32 %v3836, %v3964
        %v4093 = vmul.f32 %v3837, %v3965
        %v4094 = vmul.f32 %v3838, %v3966
        %v4095 = vmul.f32 %v3839, %v3967
        %v4096 = vmul.f32 %v3840, %v3968
        %v4097 = vmul.f32 %v3841, %v3969
        %v4098 = vmul.f32 %v3842, %v3970
        %v4099 = vmul.f32 %v3843, %v3971
        %v4100 = vmul.f32 %v3844, %v3972
        %v4101 = vmul.f32 %v3845, %v3973
        %v4102 = vmul.f32 %v3846, %v3974
        %v4103 = vmul.f32 %v3847, %v3975
        %v4104 = vmul.f32 %v3848, %v3976
        %v4105 = vmul.f32 %v3849, %v3977
        %v4106 = vmul.f32 %v3850, %v3978
        %v4107 = vmul.f32 %v3851, %v3979
        %v4108 = vmul.f32 %v3852, %v3980
        %v4109 = vmul.f32 %v3853, %v3981
        %v4110 = vmul.f32 %v3854, %v3982
        %v4111 = vmul.f32 %v3855, %v3983
        %v4112 = vmul.f32 %v3856, %v3984
        %v4113 = vmul.f32 %v3857, %v3985
        %v4114 = vmul.f32 %v3858, %v3986
        %v4115 = vmul.f32 %v3859, %v3987
        %v4116 = vmul.f32 %v3860, %v3988
        %v4117 = vmul.f32 %v3861, %v3989
        %v4118 = vmul.f32 %v3862, %v3990
        %v4119 = vmul.f32 %v3863, %v3991
        %v4120 = vmul.f32 %v3864, %v3992
        %v4121 = vmul.f32 %v3865, %v3993
        %v4122 = vmul.f32 %v3866, %v3994
        %v4123 = vmul.f32 %v3867, %v3995
        %v4124 = vmul.f32 %v3868, %v3996
        %v4125 = vmul.f32 %v3869, %v3997
        %v4126 = vmul.f32 %v3870, %v3998
        %v4127 = vmul.f32 %v3871, %v3999
        %v4128 = vmul.f32 %v3872, %v4000
        %v4129 = vmul.f32 %v3873, %v4001
        %v4130 = vmul.f32 %v3874, %v4002
        %v4131 = vmul.f32 %v3875, %v4003
        %v4132 = vmul.f32 %v3876, %v4004
        %v4133 = vmul.f32 %v3877, %v4005
        %v4134 = vmul.f32 %v3878, %v4006
        %v4135 = vmul.f32 %v3879, %v4007
        %v4136 = vmul.f32 %v3880, %v4008
        %v4137 = vmul.f32 %v3881, %v4009
        %v4138 = vmul.f32 %v3882, %v4010
        %v4139 = vmul.f32 %v3883, %v4011
        %v4140 = vmul.f32 %v3884, %v4012
        %v4141 = vmul.f32 %v3885, %v4013
        %v4142 = vmul.f32 %v3886, %v4014
        %v4143 = vmul.f32 %v3887, %v4015
        %v4144 = vmul.f32 %v3888, %v4016
        %v4145 = vpack.c.bf16 %v4021, %v4017
        %v4146 = vpack.c.bf16 %v4022, %v4018
        %v4147 = vpack.c.bf16 %v4023, %v4019
        %v4148 = vpack.c.bf16 %v4024, %v4020
        %v4149 = vpack.c.bf16 %v4029, %v4025
        %v4150 = vpack.c.bf16 %v4030, %v4026
        %v4151 = vpack.c.bf16 %v4031, %v4027
        %v4152 = vpack.c.bf16 %v4032, %v4028
        %v4153 = vpack.c.bf16 %v4037, %v4033
        %v4154 = vpack.c.bf16 %v4038, %v4034
        %v4155 = vpack.c.bf16 %v4039, %v4035
        %v4156 = vpack.c.bf16 %v4040, %v4036
        %v4157 = vpack.c.bf16 %v4045, %v4041
        %v4158 = vpack.c.bf16 %v4046, %v4042
        %v4159 = vpack.c.bf16 %v4047, %v4043
        %v4160 = vpack.c.bf16 %v4048, %v4044
        %v4161 = vpack.c.bf16 %v4053, %v4049
        %v4162 = vpack.c.bf16 %v4054, %v4050
        %v4163 = vpack.c.bf16 %v4055, %v4051
        %v4164 = vpack.c.bf16 %v4056, %v4052
        %v4165 = vpack.c.bf16 %v4061, %v4057
        %v4166 = vpack.c.bf16 %v4062, %v4058
        %v4167 = vpack.c.bf16 %v4063, %v4059
        %v4168 = vpack.c.bf16 %v4064, %v4060
        %v4169 = vpack.c.bf16 %v4069, %v4065
        %v4170 = vpack.c.bf16 %v4070, %v4066
        %v4171 = vpack.c.bf16 %v4071, %v4067
        %v4172 = vpack.c.bf16 %v4072, %v4068
        %v4173 = vpack.c.bf16 %v4077, %v4073
        %v4174 = vpack.c.bf16 %v4078, %v4074
        %v4175 = vpack.c.bf16 %v4079, %v4075
        %v4176 = vpack.c.bf16 %v4080, %v4076
        %v4177 = vpack.c.bf16 %v4085, %v4081
        %v4178 = vpack.c.bf16 %v4086, %v4082
        %v4179 = vpack.c.bf16 %v4087, %v4083
        %v4180 = vpack.c.bf16 %v4088, %v4084
        %v4181 = vpack.c.bf16 %v4093, %v4089
        %v4182 = vpack.c.bf16 %v4094, %v4090
        %v4183 = vpack.c.bf16 %v4095, %v4091
        %v4184 = vpack.c.bf16 %v4096, %v4092
        %v4185 = vpack.c.bf16 %v4101, %v4097
        %v4186 = vpack.c.bf16 %v4102, %v4098
        %v4187 = vpack.c.bf16 %v4103, %v4099
        %v4188 = vpack.c.bf16 %v4104, %v4100
        %v4189 = vpack.c.bf16 %v4109, %v4105
        %v4190 = vpack.c.bf16 %v4110, %v4106
        %v4191 = vpack.c.bf16 %v4111, %v4107
        %v4192 = vpack.c.bf16 %v4112, %v4108
        %v4193 = vpack.c.bf16 %v4117, %v4113
        %v4194 = vpack.c.bf16 %v4118, %v4114
        %v4195 = vpack.c.bf16 %v4119, %v4115
        %v4196 = vpack.c.bf16 %v4120, %v4116
        %v4197 = vpack.c.bf16 %v4125, %v4121
        %v4198 = vpack.c.bf16 %v4126, %v4122
        %v4199 = vpack.c.bf16 %v4127, %v4123
        %v4200 = vpack.c.bf16 %v4128, %v4124
        %v4201 = vpack.c.bf16 %v4133, %v4129
        %v4202 = vpack.c.bf16 %v4134, %v4130
        %v4203 = vpack.c.bf16 %v4135, %v4131
        %v4204 = vpack.c.bf16 %v4136, %v4132
        %v4205 = vpack.c.bf16 %v4141, %v4137
        %v4206 = vpack.c.bf16 %v4142, %v4138
        %v4207 = vpack.c.bf16 %v4143, %v4139
        %v4208 = vpack.c.bf16 %v4144, %v4140
        %v4209 = vld [vmem:[%s4] sm:$0xf]
        %v4210 = vld [vmem:[%s4 + $0x4] sm:$0xf]
        %v4211 = vld [vmem:[%s4 + $0x8] sm:$0xf]
        %v4212 = vld [vmem:[%s4 + $0xc] sm:$0xf]
        %v4213 = vld [vmem:[%s4 + $0x10] sm:$0xf]
        %v4214 = vld [vmem:[%s4 + $0x14] sm:$0xf]
        %v4215 = vld [vmem:[%s4 + $0x18] sm:$0xf]
        %v4216 = vld [vmem:[%s4 + $0x1c] sm:$0xf]
        %v4217 = vld [vmem:[%s4 + $0x20] sm:$0xf]
        %v4218 = vld [vmem:[%s4 + $0x24] sm:$0xf]
        %v4219 = vld [vmem:[%s4 + $0x28] sm:$0xf]
        %v4220 = vld [vmem:[%s4 + $0x2c] sm:$0xf]
        %v4221 = vld [vmem:[%s4 + $0x30] sm:$0xf]
        %v4222 = vld [vmem:[%s4 + $0x34] sm:$0xf]
        %v4223 = vld [vmem:[%s4 + $0x38] sm:$0xf]
        %v4224 = vld [vmem:[%s4 + $0x3c] sm:$0xf]
        %v4225 = vld [vmem:[%s4 + $0x40] sm:$0xf]
        %v4226 = vld [vmem:[%s4 + $0x44] sm:$0xf]
        %v4227 = vld [vmem:[%s4 + $0x48] sm:$0xf]
        %v4228 = vld [vmem:[%s4 + $0x4c] sm:$0xf]
        %v4229 = vld [vmem:[%s4 + $0x50] sm:$0xf]
        %v4230 = vld [vmem:[%s4 + $0x54] sm:$0xf]
        %v4231 = vld [vmem:[%s4 + $0x58] sm:$0xf]
        %v4232 = vld [vmem:[%s4 + $0x5c] sm:$0xf]
        %v4233 = vld [vmem:[%s4 + $0x60] sm:$0xf]
        %v4234 = vld [vmem:[%s4 + $0x64] sm:$0xf]
        %v4235 = vld [vmem:[%s4 + $0x68] sm:$0xf]
        %v4236 = vld [vmem:[%s4 + $0x6c] sm:$0xf]
        %v4237 = vld [vmem:[%s4 + $0x70] sm:$0xf]
        %v4238 = vld [vmem:[%s4 + $0x74] sm:$0xf]
        %v4239 = vld [vmem:[%s4 + $0x78] sm:$0xf]
        %v4240 = vld [vmem:[%s4 + $0x7c] sm:$0xf]
        %v4241 = vld [vmem:[%s4 + $0x80] sm:$0xf]
        %v4242 = vld [vmem:[%s4 + $0x84] sm:$0xf]
        %v4243 = vld [vmem:[%s4 + $0x88] sm:$0xf]
        %v4244 = vld [vmem:[%s4 + $0x8c] sm:$0xf]
        %v4245 = vld [vmem:[%s4 + $0x90] sm:$0xf]
        %v4246 = vld [vmem:[%s4 + $0x94] sm:$0xf]
        %v4247 = vld [vmem:[%s4 + $0x98] sm:$0xf]
        %v4248 = vld [vmem:[%s4 + $0x9c] sm:$0xf]
        %v4249 = vld [vmem:[%s4 + $0xa0] sm:$0xf]
        %v4250 = vld [vmem:[%s4 + $0xa4] sm:$0xf]
        %v4251 = vld [vmem:[%s4 + $0xa8] sm:$0xf]
        %v4252 = vld [vmem:[%s4 + $0xac] sm:$0xf]
        %v4253 = vld [vmem:[%s4 + $0xb0] sm:$0xf]
        %v4254 = vld [vmem:[%s4 + $0xb4] sm:$0xf]
        %v4255 = vld [vmem:[%s4 + $0xb8] sm:$0xf]
        %v4256 = vld [vmem:[%s4 + $0xbc] sm:$0xf]
        %v4257 = vld [vmem:[%s4 + $0xc0] sm:$0xf]
        %v4258 = vld [vmem:[%s4 + $0xc4] sm:$0xf]
        %v4259 = vld [vmem:[%s4 + $0xc8] sm:$0xf]
        %v4260 = vld [vmem:[%s4 + $0xcc] sm:$0xf]
        %v4261 = vld [vmem:[%s4 + $0xd0] sm:$0xf]
        %v4262 = vld [vmem:[%s4 + $0xd4] sm:$0xf]
        %v4263 = vld [vmem:[%s4 + $0xd8] sm:$0xf]
        %v4264 = vld [vmem:[%s4 + $0xdc] sm:$0xf]
        %v4265 = vld [vmem:[%s4 + $0xe0] sm:$0xf]
        %v4266 = vld [vmem:[%s4 + $0xe4] sm:$0xf]
        %v4267 = vld [vmem:[%s4 + $0xe8] sm:$0xf]
        %v4268 = vld [vmem:[%s4 + $0xec] sm:$0xf]
        %v4269 = vld [vmem:[%s4 + $0xf0] sm:$0xf]
        %v4270 = vld [vmem:[%s4 + $0xf4] sm:$0xf]
        %v4271 = vld [vmem:[%s4 + $0xf8] sm:$0xf]
        %v4272 = vld [vmem:[%s4 + $0xfc] sm:$0xf]
        %v4273 = vld [vmem:[%s5] sm:$0x1]
        %v4275 = vlaneseq
        %v4276 = vshrl.u32 %v4275, 7
        %v4277 = vsub.s32 0, %v4276
        %v4278 = vrot.slane %v4273, %v4277
        %v4344 = vunpack.c.l.b16 %v4209
        %v4345 = vunpack.c.l.b16 %v4210
        %v4346 = vunpack.c.l.b16 %v4211
        %v4347 = vunpack.c.l.b16 %v4212
        %v4348 = vunpack.c.l.b16 %v4213
        %v4349 = vunpack.c.l.b16 %v4214
        %v4350 = vunpack.c.l.b16 %v4215
        %v4351 = vunpack.c.l.b16 %v4216
        %v4352 = vunpack.c.l.b16 %v4217
        %v4353 = vunpack.c.l.b16 %v4218
        %v4354 = vunpack.c.l.b16 %v4219
        %v4355 = vunpack.c.l.b16 %v4220
        %v4356 = vunpack.c.l.b16 %v4221
        %v4357 = vunpack.c.l.b16 %v4222
        %v4358 = vunpack.c.l.b16 %v4223
        %v4359 = vunpack.c.l.b16 %v4224
        %v4360 = vunpack.c.l.b16 %v4225
        %v4361 = vunpack.c.l.b16 %v4226
        %v4362 = vunpack.c.l.b16 %v4227
        %v4363 = vunpack.c.l.b16 %v4228
        %v4364 = vunpack.c.l.b16 %v4229
        %v4365 = vunpack.c.l.b16 %v4230
        %v4366 = vunpack.c.l.b16 %v4231
        %v4367 = vunpack.c.l.b16 %v4232
        %v4368 = vunpack.c.l.b16 %v4233
        %v4369 = vunpack.c.l.b16 %v4234
        %v4370 = vunpack.c.l.b16 %v4235
        %v4371 = vunpack.c.l.b16 %v4236
        %v4372 = vunpack.c.l.b16 %v4237
        %v4373 = vunpack.c.l.b16 %v4238
        %v4374 = vunpack.c.l.b16 %v4239
        %v4375 = vunpack.c.l.b16 %v4240
        %v4376 = vunpack.c.l.b16 %v4241
        %v4377 = vunpack.c.l.b16 %v4242
        %v4378 = vunpack.c.l.b16 %v4243
        %v4379 = vunpack.c.l.b16 %v4244
        %v4380 = vunpack.c.l.b16 %v4245
        %v4381 = vunpack.c.l.b16 %v4246
        %v4382 = vunpack.c.l.b16 %v4247
        %v4383 = vunpack.c.l.b16 %v4248
        %v4384 = vunpack.c.l.b16 %v4249
        %v4385 = vunpack.c.l.b16 %v4250
        %v4386 = vunpack.c.l.b16 %v4251
        %v4387 = vunpack.c.l.b16 %v4252
        %v4388 = vunpack.c.l.b16 %v4253
        %v4389 = vunpack.c.l.b16 %v4254
        %v4390 = vunpack.c.l.b16 %v4255
        %v4391 = vunpack.c.l.b16 %v4256
        %v4392 = vunpack.c.l.b16 %v4257
        %v4393 = vunpack.c.l.b16 %v4258
        %v4394 = vunpack.c.l.b16 %v4259
        %v4395 = vunpack.c.l.b16 %v4260
        %v4396 = vunpack.c.l.b16 %v4261
        %v4397 = vunpack.c.l.b16 %v4262
        %v4398 = vunpack.c.l.b16 %v4263
        %v4399 = vunpack.c.l.b16 %v4264
        %v4400 = vunpack.c.l.b16 %v4265
        %v4401 = vunpack.c.l.b16 %v4266
        %v4402 = vunpack.c.l.b16 %v4267
        %v4403 = vunpack.c.l.b16 %v4268
        %v4404 = vunpack.c.l.b16 %v4269
        %v4405 = vunpack.c.l.b16 %v4270
        %v4406 = vunpack.c.l.b16 %v4271
        %v4407 = vunpack.c.l.b16 %v4272
        %v4408 = vpack.c.b16 %v4345, %v4344
        %v4409 = vpack.c.b16 %v4347, %v4346
        %v4410 = vpack.c.b16 %v4349, %v4348
        %v4411 = vpack.c.b16 %v4351, %v4350
        %v4412 = vpack.c.b16 %v4353, %v4352
        %v4413 = vpack.c.b16 %v4355, %v4354
        %v4414 = vpack.c.b16 %v4357, %v4356
        %v4415 = vpack.c.b16 %v4359, %v4358
        %v4416 = vpack.c.b16 %v4361, %v4360
        %v4417 = vpack.c.b16 %v4363, %v4362
        %v4418 = vpack.c.b16 %v4365, %v4364
        %v4419 = vpack.c.b16 %v4367, %v4366
        %v4420 = vpack.c.b16 %v4369, %v4368
        %v4421 = vpack.c.b16 %v4371, %v4370
        %v4422 = vpack.c.b16 %v4373, %v4372
        %v4423 = vpack.c.b16 %v4375, %v4374
        %v4424 = vpack.c.b16 %v4377, %v4376
        %v4425 = vpack.c.b16 %v4379, %v4378
        %v4426 = vpack.c.b16 %v4381, %v4380
        %v4427 = vpack.c.b16 %v4383, %v4382
        %v4428 = vpack.c.b16 %v4385, %v4384
        %v4429 = vpack.c.b16 %v4387, %v4386
        %v4430 = vpack.c.b16 %v4389, %v4388
        %v4431 = vpack.c.b16 %v4391, %v4390
        %v4432 = vpack.c.b16 %v4393, %v4392
        %v4433 = vpack.c.b16 %v4395, %v4394
        %v4434 = vpack.c.b16 %v4397, %v4396
        %v4435 = vpack.c.b16 %v4399, %v4398
        %v4436 = vpack.c.b16 %v4401, %v4400
        %v4437 = vpack.c.b16 %v4403, %v4402
        %v4438 = vpack.c.b16 %v4405, %v4404
        %v4439 = vpack.c.b16 %v4407, %v4406
        %4472 = vmatprep.subr.bf16.mxu0 0
        %4473 = vmatpush1.bf16.msra.mxu0 %v4408
        %4474 = vmatprep.subr.bf16.mxu0 0
        %4475 = vmatpush1.bf16.msra.mxu0 %v4409
        %4476 = vmatprep.subr.bf16.mxu0 0
        %4477 = vmatpush1.bf16.msra.mxu0 %v4410
        %4478 = vmatprep.subr.bf16.mxu0 0
        %4479 = vmatpush1.bf16.msra.mxu0 %v4411
        %4480 = vmatprep.subr.bf16.mxu0 0
        %4481 = vmatpush1.bf16.msra.mxu0 %v4412
        %4482 = vmatprep.subr.bf16.mxu0 0
        %4483 = vmatpush1.bf16.msra.mxu0 %v4413
        %4484 = vmatprep.subr.bf16.mxu0 0
        %4485 = vmatpush1.bf16.msra.mxu0 %v4414
        %4486 = vmatprep.subr.bf16.mxu0 0
        %4487 = vmatpush1.bf16.msra.mxu0 %v4415
        %4488 = vmatprep.subr.bf16.mxu0 0
        %4489 = vmatpush1.bf16.msra.mxu0 %v4416
        %4490 = vmatprep.subr.bf16.mxu0 0
        %4491 = vmatpush1.bf16.msra.mxu0 %v4417
        %4492 = vmatprep.subr.bf16.mxu0 0
        %4493 = vmatpush1.bf16.msra.mxu0 %v4418
        %4494 = vmatprep.subr.bf16.mxu0 0
        %4495 = vmatpush1.bf16.msra.mxu0 %v4419
        %4496 = vmatprep.subr.bf16.mxu0 0
        %4497 = vmatpush1.bf16.msra.mxu0 %v4420
        %4498 = vmatprep.subr.bf16.mxu0 0
        %4499 = vmatpush1.bf16.msra.mxu0 %v4421
        %4500 = vmatprep.subr.bf16.mxu0 0
        %4501 = vmatpush1.bf16.msra.mxu0 %v4422
        %4502 = vmatprep.subr.bf16.mxu0 0
        %4503 = vmatpush1.bf16.msra.mxu0 %v4423
        %4504 = vmatprep.mubr.bf16.mxu0 %v4146
        %4505 = vmatmul.mubr.bf16.gmra.mrb[0].mxu0 %v4145
        %v4506 = vpop.f32.mrb[0].mxu0
        %v4507 = vadd.f32 %v4278, %v4506
        %v4508 = vpop.f32.mrb[0].mxu0
        %v4509 = vpop.f32.mrb[0].mxu0
        %v4510 = vadd.f32 %v4278, %v4509
        %v4511 = vpop.f32.mrb[0].mxu0
        %4512 = vmatprep.mubr.bf16.mxu0 %v4150
        %4513 = vmatmul.mubr.bf16.gmra.mrb[0].mxu0 %v4149
        %v4514 = vpop.f32.mrb[0].mxu0
        %v4515 = vadd.f32 %v4278, %v4514
        %v4516 = vpop.f32.mrb[0].mxu0
        %v4517 = vpop.f32.mrb[0].mxu0
        %v4518 = vadd.f32 %v4278, %v4517
        %v4519 = vpop.f32.mrb[0].mxu0
        %4520 = vmatprep.mubr.bf16.mxu0 %v4154
        %4521 = vmatmul.mubr.bf16.gmra.mrb[0].mxu0 %v4153
        %v4522 = vpop.f32.mrb[0].mxu0
        %v4523 = vadd.f32 %v4278, %v4522
        %v4524 = vpop.f32.mrb[0].mxu0
        %v4525 = vpop.f32.mrb[0].mxu0
        %v4526 = vadd.f32 %v4278, %v4525
        %v4527 = vpop.f32.mrb[0].mxu0
        %4528 = vmatprep.mubr.bf16.mxu0 %v4158
        %4529 = vmatmul.mubr.bf16.gmra.mrb[0].mxu0 %v4157
        %v4530 = vpop.f32.mrb[0].mxu0
        %v4531 = vadd.f32 %v4278, %v4530
        %v4532 = vpop.f32.mrb[0].mxu0
        %v4533 = vpop.f32.mrb[0].mxu0
        %v4534 = vadd.f32 %v4278, %v4533
        %v4535 = vpop.f32.mrb[0].mxu0
        %4536 = vmatprep.mubr.bf16.mxu0 %v4162
        %4537 = vmatmul.mubr.bf16.gmra.mrb[0].mxu0 %v4161
        %v4538 = vpop.f32.mrb[0].mxu0
        %v4539 = vadd.f32 %v4278, %v4538
        %v4540 = vpop.f32.mrb[0].mxu0
        %v4541 = vpop.f32.mrb[0].mxu0
        %v4542 = vadd.f32 %v4278, %v4541
        %v4543 = vpop.f32.mrb[0].mxu0
        %4544 = vmatprep.mubr.bf16.mxu0 %v4166
        %4545 = vmatmul.mubr.bf16.gmra.mrb[0].mxu0 %v4165
        %v4546 = vpop.f32.mrb[0].mxu0
        %v4547 = vadd.f32 %v4278, %v4546
        %v4548 = vpop.f32.mrb[0].mxu0
        %v4549 = vpop.f32.mrb[0].mxu0
        %v4550 = vadd.f32 %v4278, %v4549
        %v4551 = vpop.f32.mrb[0].mxu0
        %4552 = vmatprep.mubr.bf16.mxu0 %v4170
        %4553 = vmatmul.mubr.bf16.gmra.mrb[0].mxu0 %v4169
        %v4554 = vpop.f32.mrb[0].mxu0
        %v4555 = vadd.f32 %v4278, %v4554
        %v4556 = vpop.f32.mrb[0].mxu0
        %v4557 = vpop.f32.mrb[0].mxu0
        %v4558 = vadd.f32 %v4278, %v4557
        %v4559 = vpop.f32.mrb[0].mxu0
        %4560 = vmatprep.mubr.bf16.mxu0 %v4174
        %4561 = vmatmul.mubr.bf16.gmra.mrb[0].mxu0 %v4173
        %v4562 = vpop.f32.mrb[0].mxu0
        %v4563 = vadd.f32 %v4278, %v4562
        %v4564 = vpop.f32.mrb[0].mxu0
        %v4565 = vpop.f32.mrb[0].mxu0
        %v4566 = vadd.f32 %v4278, %v4565
        %v4567 = vpop.f32.mrb[0].mxu0
        %4568 = vmatprep.mubr.bf16.mxu0 %v4178
        %4569 = vmatmul.mubr.bf16.gmra.mrb[0].mxu0 %v4177
        %v4570 = vpop.f32.mrb[0].mxu0
        %v4571 = vadd.f32 %v4278, %v4570
        %v4572 = vpop.f32.mrb[0].mxu0
        %v4573 = vpop.f32.mrb[0].mxu0
        %v4574 = vadd.f32 %v4278, %v4573
        %v4575 = vpop.f32.mrb[0].mxu0
        %4576 = vmatprep.mubr.bf16.mxu0 %v4182
        %4577 = vmatmul.mubr.bf16.gmra.mrb[0].mxu0 %v4181
        %v4578 = vpop.f32.mrb[0].mxu0
        %v4579 = vadd.f32 %v4278, %v4578
        %v4580 = vpop.f32.mrb[0].mxu0
        %v4581 = vpop.f32.mrb[0].mxu0
        %v4582 = vadd.f32 %v4278, %v4581
        %v4583 = vpop.f32.mrb[0].mxu0
        %4584 = vmatprep.mubr.bf16.mxu0 %v4186
        %4585 = vmatmul.mubr.bf16.gmra.mrb[0].mxu0 %v4185
        %v4586 = vpop.f32.mrb[0].mxu0
        %v4587 = vadd.f32 %v4278, %v4586
        %v4588 = vpop.f32.mrb[0].mxu0
        %v4589 = vpop.f32.mrb[0].mxu0
        %v4590 = vadd.f32 %v4278, %v4589
        %v4591 = vpop.f32.mrb[0].mxu0
        %4592 = vmatprep.mubr.bf16.mxu0 %v4190
        %4593 = vmatmul.mubr.bf16.gmra.mrb[0].mxu0 %v4189
        %v4594 = vpop.f32.mrb[0].mxu0
        %v4595 = vadd.f32 %v4278, %v4594
        %v4596 = vpop.f32.mrb[0].mxu0
        %v4597 = vpop.f32.mrb[0].mxu0
        %v4598 = vadd.f32 %v4278, %v4597
        %v4599 = vpop.f32.mrb[0].mxu0
        %4600 = vmatprep.mubr.bf16.mxu0 %v4194
        %4601 = vmatmul.mubr.bf16.gmra.mrb[0].mxu0 %v4193
        %v4602 = vpop.f32.mrb[0].mxu0
        %v4603 = vadd.f32 %v4278, %v4602
        %v4604 = vpop.f32.mrb[0].mxu0
        %v4605 = vpop.f32.mrb[0].mxu0
        %v4606 = vadd.f32 %v4278, %v4605
        %v4607 = vpop.f32.mrb[0].mxu0
        %4608 = vmatprep.mubr.bf16.mxu0 %v4198
        %4609 = vmatmul.mubr.bf16.gmra.mrb[0].mxu0 %v4197
        %v4610 = vpop.f32.mrb[0].mxu0
        %v4611 = vadd.f32 %v4278, %v4610
        %v4612 = vpop.f32.mrb[0].mxu0
        %v4613 = vpop.f32.mrb[0].mxu0
        %v4614 = vadd.f32 %v4278, %v4613
        %v4615 = vpop.f32.mrb[0].mxu0
        %4616 = vmatprep.mubr.bf16.mxu0 %v4202
        %4617 = vmatmul.mubr.bf16.gmra.mrb[0].mxu0 %v4201
        %v4618 = vpop.f32.mrb[0].mxu0
        %v4619 = vadd.f32 %v4278, %v4618
        %v4620 = vpop.f32.mrb[0].mxu0
        %v4621 = vpop.f32.mrb[0].mxu0
        %v4622 = vadd.f32 %v4278, %v4621
        %v4623 = vpop.f32.mrb[0].mxu0
        %4624 = vmatprep.mubr.bf16.mxu0 %v4206
        %4625 = vmatmul.mubr.bf16.gmra.mrb[0].mxu0 %v4205
        %v4626 = vpop.f32.mrb[0].mxu0
        %v4627 = vadd.f32 %v4278, %v4626
        %v4628 = vpop.f32.mrb[0].mxu0
        %v4629 = vpop.f32.mrb[0].mxu0
        %v4630 = vadd.f32 %v4278, %v4629
        %v4631 = vpop.f32.mrb[0].mxu0
        %4632 = vdwg.mxu0
        %4633 = vmatprep.subr.bf16.mxu0 0
        %4634 = vmatpush1.bf16.msra.mxu0 %v4424
        %4635 = vmatprep.subr.bf16.mxu0 0
        %4636 = vmatpush1.bf16.msra.mxu0 %v4425
        %4637 = vmatprep.subr.bf16.mxu0 0
        %4638 = vmatpush1.bf16.msra.mxu0 %v4426
        %4639 = vmatprep.subr.bf16.mxu0 0
        %4640 = vmatpush1.bf16.msra.mxu0 %v4427
        %4641 = vmatprep.subr.bf16.mxu0 0
        %4642 = vmatpush1.bf16.msra.mxu0 %v4428
        %4643 = vmatprep.subr.bf16.mxu0 0
        %4644 = vmatpush1.bf16.msra.mxu0 %v4429
        %4645 = vmatprep.subr.bf16.mxu0 0
        %4646 = vmatpush1.bf16.msra.mxu0 %v4430
        %4647 = vmatprep.subr.bf16.mxu0 0
        %4648 = vmatpush1.bf16.msra.mxu0 %v4431
        %4649 = vmatprep.subr.bf16.mxu0 0
        %4650 = vmatpush1.bf16.msra.mxu0 %v4432
        %4651 = vmatprep.subr.bf16.mxu0 0
        %4652 = vmatpush1.bf16.msra.mxu0 %v4433
        %4653 = vmatprep.subr.bf16.mxu0 0
        %4654 = vmatpush1.bf16.msra.mxu0 %v4434
        %4655 = vmatprep.subr.bf16.mxu0 0
        %4656 = vmatpush1.bf16.msra.mxu0 %v4435
        %4657 = vmatprep.subr.bf16.mxu0 0
        %4658 = vmatpush1.bf16.msra.mxu0 %v4436
        %4659 = vmatprep.subr.bf16.mxu0 0
        %4660 = vmatpush1.bf16.msra.mxu0 %v4437
        %4661 = vmatprep.subr.bf16.mxu0 0
        %4662 = vmatpush1.bf16.msra.mxu0 %v4438
        %4663 = vmatprep.subr.bf16.mxu0 0
        %4664 = vmatpush1.bf16.msra.mxu0 %v4439
        %4665 = vmatprep.mubr.bf16.mxu0 %v4148
        %4666 = vmatmul.mubr.bf16.gmra.mrb[0].mxu0 %v4147
        %v4667 = vpop.f32.mrb[0].mxu0
        %v4668 = vadd.f32 %v4507, %v4667
        %v4669 = vpop.f32.mrb[0].mxu0
        %v4670 = vpop.f32.mrb[0].mxu0
        %v4671 = vadd.f32 %v4510, %v4670
        %v4672 = vpop.f32.mrb[0].mxu0
        %4673 = vmatprep.mubr.bf16.mxu0 %v4152
        %4674 = vmatmul.mubr.bf16.gmra.mrb[0].mxu0 %v4151
        %v4675 = vpop.f32.mrb[0].mxu0
        %v4676 = vadd.f32 %v4515, %v4675
        %v4677 = vpop.f32.mrb[0].mxu0
        %v4678 = vpop.f32.mrb[0].mxu0
        %v4679 = vadd.f32 %v4518, %v4678
        %v4680 = vpop.f32.mrb[0].mxu0
        %4681 = vmatprep.mubr.bf16.mxu0 %v4156
        %4682 = vmatmul.mubr.bf16.gmra.mrb[0].mxu0 %v4155
        %v4683 = vpop.f32.mrb[0].mxu0
        %v4684 = vadd.f32 %v4523, %v4683
        %v4685 = vpop.f32.mrb[0].mxu0
        %v4686 = vpop.f32.mrb[0].mxu0
        %v4687 = vadd.f32 %v4526, %v4686
        %v4688 = vpop.f32.mrb[0].mxu0
        %4689 = vmatprep.mubr.bf16.mxu0 %v4160
        %4690 = vmatmul.mubr.bf16.gmra.mrb[0].mxu0 %v4159
        %v4691 = vpop.f32.mrb[0].mxu0
        %v4692 = vadd.f32 %v4531, %v4691
        %v4693 = vpop.f32.mrb[0].mxu0
        %v4694 = vpop.f32.mrb[0].mxu0
        %v4695 = vadd.f32 %v4534, %v4694
        %v4696 = vpop.f32.mrb[0].mxu0
        %4697 = vmatprep.mubr.bf16.mxu0 %v4164
        %4698 = vmatmul.mubr.bf16.gmra.mrb[0].mxu0 %v4163
        %v4699 = vpop.f32.mrb[0].mxu0
        %v4700 = vadd.f32 %v4539, %v4699
        %v4701 = vpop.f32.mrb[0].mxu0
        %v4702 = vpop.f32.mrb[0].mxu0
        %v4703 = vadd.f32 %v4542, %v4702
        %v4704 = vpop.f32.mrb[0].mxu0
        %4705 = vmatprep.mubr.bf16.mxu0 %v4168
        %4706 = vmatmul.mubr.bf16.gmra.mrb[0].mxu0 %v4167
        %v4707 = vpop.f32.mrb[0].mxu0
        %v4708 = vadd.f32 %v4547, %v4707
        %v4709 = vpop.f32.mrb[0].mxu0
        %v4710 = vpop.f32.mrb[0].mxu0
        %v4711 = vadd.f32 %v4550, %v4710
        %v4712 = vpop.f32.mrb[0].mxu0
        %4713 = vmatprep.mubr.bf16.mxu0 %v4172
        %4714 = vmatmul.mubr.bf16.gmra.mrb[0].mxu0 %v4171
        %v4715 = vpop.f32.mrb[0].mxu0
        %v4716 = vadd.f32 %v4555, %v4715
        %v4717 = vpop.f32.mrb[0].mxu0
        %v4718 = vpop.f32.mrb[0].mxu0
        %v4719 = vadd.f32 %v4558, %v4718
        %v4720 = vpop.f32.mrb[0].mxu0
        %4721 = vmatprep.mubr.bf16.mxu0 %v4176
        %4722 = vmatmul.mubr.bf16.gmra.mrb[0].mxu0 %v4175
        %v4723 = vpop.f32.mrb[0].mxu0
        %v4724 = vadd.f32 %v4563, %v4723
        %v4725 = vpop.f32.mrb[0].mxu0
        %v4726 = vpop.f32.mrb[0].mxu0
        %v4727 = vadd.f32 %v4566, %v4726
        %v4728 = vpop.f32.mrb[0].mxu0
        %4729 = vmatprep.mubr.bf16.mxu0 %v4180
        %4730 = vmatmul.mubr.bf16.gmra.mrb[0].mxu0 %v4179
        %v4731 = vpop.f32.mrb[0].mxu0
        %v4732 = vadd.f32 %v4571, %v4731
        %v4733 = vpop.f32.mrb[0].mxu0
        %v4734 = vpop.f32.mrb[0].mxu0
        %v4735 = vadd.f32 %v4574, %v4734
        %v4736 = vpop.f32.mrb[0].mxu0
        %4737 = vmatprep.mubr.bf16.mxu0 %v4184
        %4738 = vmatmul.mubr.bf16.gmra.mrb[0].mxu0 %v4183
        %v4739 = vpop.f32.mrb[0].mxu0
        %v4740 = vadd.f32 %v4579, %v4739
        %v4741 = vpop.f32.mrb[0].mxu0
        %v4742 = vpop.f32.mrb[0].mxu0
        %v4743 = vadd.f32 %v4582, %v4742
        %v4744 = vpop.f32.mrb[0].mxu0
        %4745 = vmatprep.mubr.bf16.mxu0 %v4188
        %4746 = vmatmul.mubr.bf16.gmra.mrb[0].mxu0 %v4187
        %v4747 = vpop.f32.mrb[0].mxu0
        %v4748 = vadd.f32 %v4587, %v4747
        %v4749 = vpop.f32.mrb[0].mxu0
        %v4750 = vpop.f32.mrb[0].mxu0
        %v4751 = vadd.f32 %v4590, %v4750
        %v4752 = vpop.f32.mrb[0].mxu0
        %4753 = vmatprep.mubr.bf16.mxu0 %v4192
        %4754 = vmatmul.mubr.bf16.gmra.mrb[0].mxu0 %v4191
        %v4755 = vpop.f32.mrb[0].mxu0
        %v4756 = vadd.f32 %v4595, %v4755
        %v4757 = vpop.f32.mrb[0].mxu0
        %v4758 = vpop.f32.mrb[0].mxu0
        %v4759 = vadd.f32 %v4598, %v4758
        %v4760 = vpop.f32.mrb[0].mxu0
        %4761 = vmatprep.mubr.bf16.mxu0 %v4196
        %4762 = vmatmul.mubr.bf16.gmra.mrb[0].mxu0 %v4195
        %v4763 = vpop.f32.mrb[0].mxu0
        %v4764 = vadd.f32 %v4603, %v4763
        %v4765 = vpop.f32.mrb[0].mxu0
        %v4766 = vpop.f32.mrb[0].mxu0
        %v4767 = vadd.f32 %v4606, %v4766
        %v4768 = vpop.f32.mrb[0].mxu0
        %4769 = vmatprep.mubr.bf16.mxu0 %v4200
        %4770 = vmatmul.mubr.bf16.gmra.mrb[0].mxu0 %v4199
        %v4771 = vpop.f32.mrb[0].mxu0
        %v4772 = vadd.f32 %v4611, %v4771
        %v4773 = vpop.f32.mrb[0].mxu0
        %v4774 = vpop.f32.mrb[0].mxu0
        %v4775 = vadd.f32 %v4614, %v4774
        %v4776 = vpop.f32.mrb[0].mxu0
        %4777 = vmatprep.mubr.bf16.mxu0 %v4204
        %4778 = vmatmul.mubr.bf16.gmra.mrb[0].mxu0 %v4203
        %v4779 = vpop.f32.mrb[0].mxu0
        %v4780 = vadd.f32 %v4619, %v4779
        %v4781 = vpop.f32.mrb[0].mxu0
        %v4782 = vpop.f32.mrb[0].mxu0
        %v4783 = vadd.f32 %v4622, %v4782
        %v4784 = vpop.f32.mrb[0].mxu0
        %4785 = vmatprep.mubr.bf16.mxu0 %v4208
        %4786 = vmatmul.mubr.bf16.gmra.mrb[0].mxu0 %v4207
        %v4787 = vpop.f32.mrb[0].mxu0
        %v4788 = vadd.f32 %v4627, %v4787
        %v4789 = vpop.f32.mrb[0].mxu0
        %v4790 = vpop.f32.mrb[0].mxu0
        %v4791 = vadd.f32 %v4630, %v4790
        %v4792 = vpop.f32.mrb[0].mxu0
        %4793 = vdwg.mxu0
        %v4794 = vxor.u32 %v4668, 2147483648
        %v4795 = vxor.u32 %v4671, 2147483648
        %v4796 = vxor.u32 %v4676, 2147483648
        %v4797 = vxor.u32 %v4679, 2147483648
        %v4798 = vxor.u32 %v4684, 2147483648
        %v4799 = vxor.u32 %v4687, 2147483648
        %v4800 = vxor.u32 %v4692, 2147483648
        %v4801 = vxor.u32 %v4695, 2147483648
        %v4802 = vxor.u32 %v4700, 2147483648
        %v4803 = vxor.u32 %v4703, 2147483648
        %v4804 = vxor.u32 %v4708, 2147483648
        %v4805 = vxor.u32 %v4711, 2147483648
        %v4806 = vxor.u32 %v4716, 2147483648
        %v4807 = vxor.u32 %v4719, 2147483648
        %v4808 = vxor.u32 %v4724, 2147483648
        %v4809 = vxor.u32 %v4727, 2147483648
        %v4810 = vxor.u32 %v4732, 2147483648
        %v4811 = vxor.u32 %v4735, 2147483648
        %v4812 = vxor.u32 %v4740, 2147483648
        %v4813 = vxor.u32 %v4743, 2147483648
        %v4814 = vxor.u32 %v4748, 2147483648
        %v4815 = vxor.u32 %v4751, 2147483648
        %v4816 = vxor.u32 %v4756, 2147483648
        %v4817 = vxor.u32 %v4759, 2147483648
        %v4818 = vxor.u32 %v4764, 2147483648
        %v4819 = vxor.u32 %v4767, 2147483648
        %v4820 = vxor.u32 %v4772, 2147483648
        %v4821 = vxor.u32 %v4775, 2147483648
        %v4822 = vxor.u32 %v4780, 2147483648
        %v4823 = vxor.u32 %v4783, 2147483648
        %v4824 = vxor.u32 %v4788, 2147483648
        %v4825 = vxor.u32 %v4791, 2147483648
        %v4826 = vmul.f32 %v4794, 1.442695
        %v4827 = vpow.pop %v4826
        %v4828 = vmul.f32 %v4795, 1.442695
        %v4829 = vpow.pop %v4828
        %v4830 = vmul.f32 %v4796, 1.442695
        %v4831 = vpow.pop %v4830
        %v4832 = vmul.f32 %v4797, 1.442695
        %v4833 = vpow.pop %v4832
        %v4834 = vmul.f32 %v4798, 1.442695
        %v4835 = vpow.pop %v4834
        %v4836 = vmul.f32 %v4799, 1.442695
        %v4837 = vpow.pop %v4836
        %v4838 = vmul.f32 %v4800, 1.442695
        %v4839 = vpow.pop %v4838
        %v4840 = vmul.f32 %v4801, 1.442695
        %v4841 = vpow.pop %v4840
        %v4842 = vmul.f32 %v4802, 1.442695
        %v4843 = vpow.pop %v4842
        %v4844 = vmul.f32 %v4803, 1.442695
        %v4845 = vpow.pop %v4844
        %v4846 = vmul.f32 %v4804, 1.442695
        %v4847 = vpow.pop %v4846
        %v4848 = vmul.f32 %v4805, 1.442695
        %v4849 = vpow.pop %v4848
        %v4850 = vmul.f32 %v4806, 1.442695
        %v4851 = vpow.pop %v4850
        %v4852 = vmul.f32 %v4807, 1.442695
        %v4853 = vpow.pop %v4852
        %v4854 = vmul.f32 %v4808, 1.442695
        %v4855 = vpow.pop %v4854
        %v4856 = vmul.f32 %v4809, 1.442695
        %v4857 = vpow.pop %v4856
        %v4858 = vmul.f32 %v4810, 1.442695
        %v4859 = vpow.pop %v4858
        %v4860 = vmul.f32 %v4811, 1.442695
        %v4861 = vpow.pop %v4860
        %v4862 = vmul.f32 %v4812, 1.442695
        %v4863 = vpow.pop %v4862
        %v4864 = vmul.f32 %v4813, 1.442695
        %v4865 = vpow.pop %v4864
        %v4866 = vmul.f32 %v4814, 1.442695
        %v4867 = vpow.pop %v4866
        %v4868 = vmul.f32 %v4815, 1.442695
        %v4869 = vpow.pop %v4868
        %v4870 = vmul.f32 %v4816, 1.442695
        %v4871 = vpow.pop %v4870
        %v4872 = vmul.f32 %v4817, 1.442695
        %v4873 = vpow.pop %v4872
        %v4874 = vmul.f32 %v4818, 1.442695
        %v4875 = vpow.pop %v4874
        %v4876 = vmul.f32 %v4819, 1.442695
        %v4877 = vpow.pop %v4876
        %v4878 = vmul.f32 %v4820, 1.442695
        %v4879 = vpow.pop %v4878
        %v4880 = vmul.f32 %v4821, 1.442695
        %v4881 = vpow.pop %v4880
        %v4882 = vmul.f32 %v4822, 1.442695
        %v4883 = vpow.pop %v4882
        %v4884 = vmul.f32 %v4823, 1.442695
        %v4885 = vpow.pop %v4884
        %v4886 = vmul.f32 %v4824, 1.442695
        %v4887 = vpow.pop %v4886
        %v4888 = vmul.f32 %v4825, 1.442695
        %v4889 = vpow.pop %v4888
        %v4890 = vadd.f32 %v4827, 1.0
        %v4891 = vadd.f32 %v4829, 1.0
        %v4892 = vadd.f32 %v4831, 1.0
        %v4893 = vadd.f32 %v4833, 1.0
        %v4894 = vadd.f32 %v4835, 1.0
        %v4895 = vadd.f32 %v4837, 1.0
        %v4896 = vadd.f32 %v4839, 1.0
        %v4897 = vadd.f32 %v4841, 1.0
        %v4898 = vadd.f32 %v4843, 1.0
        %v4899 = vadd.f32 %v4845, 1.0
        %v4900 = vadd.f32 %v4847, 1.0
        %v4901 = vadd.f32 %v4849, 1.0
        %v4902 = vadd.f32 %v4851, 1.0
        %v4903 = vadd.f32 %v4853, 1.0
        %v4904 = vadd.f32 %v4855, 1.0
        %v4905 = vadd.f32 %v4857, 1.0
        %v4906 = vadd.f32 %v4859, 1.0
        %v4907 = vadd.f32 %v4861, 1.0
        %v4908 = vadd.f32 %v4863, 1.0
        %v4909 = vadd.f32 %v4865, 1.0
        %v4910 = vadd.f32 %v4867, 1.0
        %v4911 = vadd.f32 %v4869, 1.0
        %v4912 = vadd.f32 %v4871, 1.0
        %v4913 = vadd.f32 %v4873, 1.0
        %v4914 = vadd.f32 %v4875, 1.0
        %v4915 = vadd.f32 %v4877, 1.0
        %v4916 = vadd.f32 %v4879, 1.0
        %v4917 = vadd.f32 %v4881, 1.0
        %v4918 = vadd.f32 %v4883, 1.0
        %v4919 = vadd.f32 %v4885, 1.0
        %v4920 = vadd.f32 %v4887, 1.0
        %v4921 = vadd.f32 %v4889, 1.0
        %v4922 = vrcp.pop %v4890
        %v4923 = vmul.f32 1.0, %v4922
        %v4924 = vrcp.pop %v4891
        %v4925 = vmul.f32 1.0, %v4924
        %v4926 = vrcp.pop %v4892
        %v4927 = vmul.f32 1.0, %v4926
        %v4928 = vrcp.pop %v4893
        %v4929 = vmul.f32 1.0, %v4928
        %v4930 = vrcp.pop %v4894
        %v4931 = vmul.f32 1.0, %v4930
        %v4932 = vrcp.pop %v4895
        %v4933 = vmul.f32 1.0, %v4932
        %v4934 = vrcp.pop %v4896
        %v4935 = vmul.f32 1.0, %v4934
        %v4936 = vrcp.pop %v4897
        %v4937 = vmul.f32 1.0, %v4936
        %v4938 = vrcp.pop %v4898
        %v4939 = vmul.f32 1.0, %v4938
        %v4940 = vrcp.pop %v4899
        %v4941 = vmul.f32 1.0, %v4940
        %v4942 = vrcp.pop %v4900
        %v4943 = vmul.f32 1.0, %v4942
        %v4944 = vrcp.pop %v4901
        %v4945 = vmul.f32 1.0, %v4944
        %v4946 = vrcp.pop %v4902
        %v4947 = vmul.f32 1.0, %v4946
        %v4948 = vrcp.pop %v4903
        %v4949 = vmul.f32 1.0, %v4948
        %v4950 = vrcp.pop %v4904
        %v4951 = vmul.f32 1.0, %v4950
        %v4952 = vrcp.pop %v4905
        %v4953 = vmul.f32 1.0, %v4952
        %v4954 = vrcp.pop %v4906
        %v4955 = vmul.f32 1.0, %v4954
        %v4956 = vrcp.pop %v4907
        %v4957 = vmul.f32 1.0, %v4956
        %v4958 = vrcp.pop %v4908
        %v4959 = vmul.f32 1.0, %v4958
        %v4960 = vrcp.pop %v4909
        %v4961 = vmul.f32 1.0, %v4960
        %v4962 = vrcp.pop %v4910
        %v4963 = vmul.f32 1.0, %v4962
        %v4964 = vrcp.pop %v4911
        %v4965 = vmul.f32 1.0, %v4964
        %v4966 = vrcp.pop %v4912
        %v4967 = vmul.f32 1.0, %v4966
        %v4968 = vrcp.pop %v4913
        %v4969 = vmul.f32 1.0, %v4968
        %v4970 = vrcp.pop %v4914
        %v4971 = vmul.f32 1.0, %v4970
        %v4972 = vrcp.pop %v4915
        %v4973 = vmul.f32 1.0, %v4972
        %v4974 = vrcp.pop %v4916
        %v4975 = vmul.f32 1.0, %v4974
        %v4976 = vrcp.pop %v4917
        %v4977 = vmul.f32 1.0, %v4976
        %v4978 = vrcp.pop %v4918
        %v4979 = vmul.f32 1.0, %v4978
        %v4980 = vrcp.pop %v4919
        %v4981 = vmul.f32 1.0, %v4980
        %v4982 = vrcp.pop %v4920
        %v4983 = vmul.f32 1.0, %v4982
        %v4984 = vrcp.pop %v4921
        %v4985 = vmul.f32 1.0, %v4984
        %4986 = vst [vmem:[%s265] sm:$0xff] %v4923
        %4987 = vst [vmem:[%s265 + $0x8] sm:$0xff] %v4925
        %4988 = vst [vmem:[%s265 + $0x10] sm:$0xff] %v4927
        %4989 = vst [vmem:[%s265 + $0x18] sm:$0xff] %v4929
        %4990 = vst [vmem:[%s265 + $0x20] sm:$0xff] %v4931
        %4991 = vst [vmem:[%s265 + $0x28] sm:$0xff] %v4933
        %4992 = vst [vmem:[%s265 + $0x30] sm:$0xff] %v4935
        %4993 = vst [vmem:[%s265 + $0x38] sm:$0xff] %v4937
        %4994 = vst [vmem:[%s265 + $0x40] sm:$0xff] %v4939
        %4995 = vst [vmem:[%s265 + $0x48] sm:$0xff] %v4941
        %4996 = vst [vmem:[%s265 + $0x50] sm:$0xff] %v4943
        %4997 = vst [vmem:[%s265 + $0x58] sm:$0xff] %v4945
        %4998 = vst [vmem:[%s265 + $0x60] sm:$0xff] %v4947
        %4999 = vst [vmem:[%s265 + $0x68] sm:$0xff] %v4949
        %5000 = vst [vmem:[%s265 + $0x70] sm:$0xff] %v4951
        %5001 = vst [vmem:[%s265 + $0x78] sm:$0xff] %v4953
        %5002 = vst [vmem:[%s265 + $0x80] sm:$0xff] %v4955
        %5003 = vst [vmem:[%s265 + $0x88] sm:$0xff] %v4957
        %5004 = vst [vmem:[%s265 + $0x90] sm:$0xff] %v4959
        %5005 = vst [vmem:[%s265 + $0x98] sm:$0xff] %v4961
        %5006 = vst [vmem:[%s265 + $0xa0] sm:$0xff] %v4963
        %5007 = vst [vmem:[%s265 + $0xa8] sm:$0xff] %v4965
        %5008 = vst [vmem:[%s265 + $0xb0] sm:$0xff] %v4967
        %5009 = vst [vmem:[%s265 + $0xb8] sm:$0xff] %v4969
        %5010 = vst [vmem:[%s265 + $0xc0] sm:$0xff] %v4971
        %5011 = vst [vmem:[%s265 + $0xc8] sm:$0xff] %v4973
        %5012 = vst [vmem:[%s265 + $0xd0] sm:$0xff] %v4975
        %5013 = vst [vmem:[%s265 + $0xd8] sm:$0xff] %v4977
        %5014 = vst [vmem:[%s265 + $0xe0] sm:$0xff] %v4979
        %5015 = vst [vmem:[%s265 + $0xe8] sm:$0xff] %v4981
        %5016 = vst [vmem:[%s265 + $0xf0] sm:$0xff] %v4983
        %5017 = vst [vmem:[%s265 + $0xf8] sm:$0xff] %v4985
        %s5018 = sand.u32 %s164, 1
        %s5019 = scalar_lea.sflag [#allocation3], %s5018
        %s5020 = sand.u32 %s164, 1
        %s5021 = smul.addr %s5020, 256
        %s5022 = scalar_lea.vmem [#allocation2], %s5021
        // Predicated region
        $region45: #{_forward_padded.1} parent=43 // pred_check
          %p5023 = pneg %p174
        $region46: #{_forward_padded.1} parent=43 // pred_check_branch
          %5025 = sbr.rel (%p5023) target = $region48
        $region47: #{_forward_padded.1} parent=43 // pred_region
          %s5026 = smul.u32 32, %s20
          %s5028 = ssub.s32 4096, 4096
          %5029 = vsyncadd %s5019, %s5028
          %s5030 = smul.addr %s5026, 128
          %s5031 = scalar_lea.hbm %s6, %s5030
          %s5032 = sshll.u32 %s5022, 4
          %s5033 = int_to_ptr.vmem [resolvable:$true] %s5032
          %5038 = dma.vmem_to_hbm [thread:$0]  %s5033, 4096, %s5031, %s5019, 128, 128, 8
        $region48: #{_forward_padded.1} parent=43 // pred_fallthru
          _
      $region44: #{_forward_padded.1} parent=5 // pred_fallthru
        _
      %p5039 = scmp.le.s32.totalorder 2, %s15
      // Predicated region
      $region49: #{_forward_padded.1} parent=5 // pred_check
        %p5040 = pneg %p5039
      $region50: #{_forward_padded.1} parent=5 // pred_check_branch
        %5042 = sbr.rel (%p5040) target = $region52
      $region51: #{_forward_padded.1} parent=5 // pred_region
        %s5043 = ssub.s32 %s15, 2
        // Predicated region
        $region53: #{_forward_padded.1} parent=51 // pred_check
          %p5044 = pneg %p180
        $region54: #{_forward_padded.1} parent=51 // pred_check_branch
          %5046 = sbr.rel (%p5044) target = $region56
        $region55: #{_forward_padded.1} parent=51 // pred_region
          %s5047 = sand.u32 %s165, 1
          %s5048 = scalar_lea.sflag [#allocation3], %s5047
          %s5049 = sand.u32 %s165, 1
          %s5050 = smul.addr %s5049, 256
          %s5051 = scalar_lea.vmem [#allocation2], %s5050
          %5052 = dma.done %s5048, 4096
        $region56: #{_forward_padded.1} parent=51 // pred_fallthru
          _
      $region52: #{_forward_padded.1} parent=5 // pred_fallthru
        _
    $region6: #{_forward_padded.1} parent=1 // loop_footer
      %s19 = sadd.s32 1, %s15
    $region7: #{_forward_padded.1} parent=1 // loop_footer_branch
      %14 = sbr.rel target = $region3
    $region8: #{_forward_padded.1} parent=1 // loop_exit
      _
    %5053 = vsyncpa [#allocation3], 1
    %s5054 = scalar_lea.sflag [#allocation3], 1
    %5055 = vsyncpa %s5054, 1

</llo_original>
